<compile_context>
chip_gen: v7x
topology: tpu7x:2x2x1
jax: 0.10.0
libtpu: 0.0.40
codegen_flags: <defaults>
</compile_context>

<pallas_src>
import math

import numpy as np
import jax
import jax.numpy as jnp
from jax.experimental import pallas as pl
from jax.experimental.pallas import tpu as pltpu

# ----------------------------- config ---------------------------------------
VOCAB = 64
H = 32                 # n_embd
NH = 4                 # attention heads
HD = H // NH           # head dim
NLAYER = 2
SEQ = 8
BATCH = 4              # rows of input_ids; first half chosen, second rejected
NPAIR = BATCH // 2
BS_TOK = BATCH * SEQ   # total tokens (rows of the hidden state)
R = NH * BS_TOK        # head-replicated rows, index = (head, batch, seq)
PAD_ID = VOCAB - 1
LN_EPS = 1e-5
LANES = 128
NEG_INF = -1e9


# ----------------------------- slab layout -----------------------------------
def _build_layout():
    layout = {}
    row = [0]

    def add(name, nrows, ncols):
        layout[name] = (row[0], nrows, ncols)
        row[0] += ((nrows + 7) // 8) * 8   # keep every entry 8-row aligned

    add("wte", VOCAB, H)
    add("wpe_rep", BS_TOK, H)        # wpe already replicated to all B sequences
    add("attn_bias", R, R)           # block-diagonal (head,batch) + causal bias
    add("rep", R, BS_TOK)            # token-row replication matrix E
    add("head_mask", R, H)           # per-row-block head lane mask
    add("merge", BS_TOK, R)          # head merge matrix M = E^T
    add("scatter", BS_TOK, SEQ)      # token-column -> [token, seq] scatter
    add("sel_c", NPAIR, BS_TOK)      # chosen-row selection
    add("sel_r", NPAIR, BS_TOK)      # rejected-row selection
    add("pad8", 8, NPAIR)            # pad bs rows to an (8,128) output block
    add("lnf_g", 1, H)
    add("lnf_b", 1, H)
    add("v_head", 1, H)
    for l in range(NLAYER):
        add(f"ln1_g_{l}", 1, H); add(f"ln1_b_{l}", 1, H)
        add(f"w_q_{l}", H, H);   add(f"b_q_{l}", 1, H)
        add(f"w_k_{l}", H, H);   add(f"b_k_{l}", 1, H)
        add(f"w_v_{l}", H, H);   add(f"b_v_{l}", 1, H)
        add(f"w_o_{l}", H, H);   add(f"b_o_{l}", 1, H)
        add(f"ln2_g_{l}", 1, H); add(f"ln2_b_{l}", 1, H)
        add(f"w_fc_{l}", H, 4 * H); add(f"b_fc_{l}", 1, 4 * H)
        add(f"w_pr_{l}", 4 * H, H); add(f"b_pr_{l}", 1, H)
    return layout, row[0]


LAYOUT, SLAB_ROWS = _build_layout()


# ----------------------------- fused kernel ----------------------------------
def fused_reward_kernel(ids_col_ref, ids_pair_ref, slab_ref, out_ref):
    f32 = jnp.float32

    def ld(name):
        r0, nr, nc = LAYOUT[name]
        return slab_ref[r0:r0 + nr, 0:nc]     # static slice: read at use

    def layer_norm(x, gname, bname):
        mu = jnp.mean(x, axis=-1, keepdims=True)
        var = jnp.mean((x - mu) ** 2, axis=-1, keepdims=True)
        return (x - mu) * jax.lax.rsqrt(var + LN_EPS) * ld(gname) + ld(bname)

    def log1p_acc(x):
        # accurate log(1+x) using only log/div/where (no log1p primitive)
        u = 1.0 + x
        return jnp.where(u == 1.0, x, jnp.log(u) * (x / (u - 1.0)))

    # ---- embedding: gather-free one-hot matmul + precomputed positional add --
    ids_col = ids_col_ref[...]                                        # [BS,1] i32
    vocab_iota = jax.lax.broadcasted_iota(jnp.int32, (BS_TOK, VOCAB), 1)
    onehot = (ids_col == vocab_iota).astype(f32)                      # [BS,VOCAB]
    h = jnp.dot(onehot, ld("wte"), preferred_element_type=f32) + ld("wpe_rep")

    # ---- transformer layers (pre-LN GPT-2 blocks), fully VMEM-resident -------
    for l in range(NLAYER):
        a = layer_norm(h, f"ln1_g_{l}", f"ln1_b_{l}")                 # [BS,H]
        # replicate token rows into NH head blocks on the MXU
        a_rep = jnp.dot(ld("rep"), a, preferred_element_type=f32)     # [R,H]
        # q/k projections; per-head lanes selected with a constant mask.
        # (the 1/sqrt(HD) scale is folded into w_q/b_q on the host)
        q = (jnp.dot(a_rep, ld(f"w_q_{l}"), preferred_element_type=f32)
             + ld(f"b_q_{l}")) * ld("head_mask")
        k = (jnp.dot(a_rep, ld(f"w_k_{l}"), preferred_element_type=f32)
             + ld(f"b_k_{l}")) * ld("head_mask")
        # one wide scores matmul contracting over H; cross-head terms are 0 and
        # masked by the block-diagonal+causal bias anyway.
        scores = jax.lax.dot_general(q, k, (((1,), (1,)), ((), ())),
                                     preferred_element_type=f32) + ld("attn_bias")
        m = jnp.max(scores, axis=-1, keepdims=True)
        p = jnp.exp(scores - m)
        p = p / jnp.sum(p, axis=-1, keepdims=True)                    # exact div
        # recompute the replication after the softmax so only `a` stays live
        a_rep2 = jnp.dot(ld("rep"), a, preferred_element_type=f32)
        v = (jnp.dot(a_rep2, ld(f"w_v_{l}"), preferred_element_type=f32)
             + ld(f"b_v_{l}")) * ld("head_mask")
        oh = jnp.dot(p, v, preferred_element_type=f32)                # [R,H]
        merged = jnp.dot(ld("merge"), oh, preferred_element_type=f32) # [BS,H]
        h = h + (jnp.dot(merged, ld(f"w_o_{l}"), preferred_element_type=f32)
                 + ld(f"b_o_{l}"))

        u = layer_norm(h, f"ln2_g_{l}", f"ln2_b_{l}")
        g = jax.nn.gelu(jnp.dot(u, ld(f"w_fc_{l}"), preferred_element_type=f32)
                        + ld(f"b_fc_{l}"), approximate=True)
        h = h + (jnp.dot(g, ld(f"w_pr_{l}"), preferred_element_type=f32)
                 + ld(f"b_pr_{l}"))

    h = layer_norm(h, "lnf_g", "lnf_b")

    # ---- v_head (Linear(H,1,bias=False)) + pairwise relayout on the MXU ------
    rew_col = jnp.sum(h * ld("v_head"), axis=-1, keepdims=True)       # [BS,1]
    rew_scatter = rew_col * ld("scatter")                             # [BS,S]
    crw = jnp.dot(ld("sel_c"), rew_scatter, preferred_element_type=f32)   # [bs,S]
    rrw = jnp.dot(ld("sel_r"), rew_scatter, preferred_element_type=f32)   # [bs,S]

    # ---- pairwise loss & end scores ------------------------------------------
    cid = ids_pair_ref[0:NPAIR, :]
    rid = ids_pair_ref[NPAIR:BATCH, :]
    idx = jax.lax.broadcasted_iota(jnp.int32, (NPAIR, SEQ), 1)
    big = jnp.int32(SEQ)
    c_ind = jnp.min(jnp.where(cid == PAD_ID, idx, big), axis=1, keepdims=True)
    r_ind = jnp.min(jnp.where(rid == PAD_ID, idx, big), axis=1, keepdims=True)
    end_ind = jnp.maximum(c_ind, r_ind)
    div_ind = jnp.min(jnp.where(cid != rid, idx, big), axis=1, keepdims=True)

    in_range = ((idx >= div_ind) & (idx < end_ind)).astype(jnp.float32)
    diff = crw - rrw
    # stable, accurate softplus(-diff) == -log(sigmoid(diff))
    nll = jnp.maximum(-diff, 0.0) + log1p_acc(jnp.exp(-jnp.abs(diff)))
    cnt = jnp.sum(in_range, axis=1, keepdims=True)
    # TODO(synk): identical pairs / divergence>=end (cnt==0) are not defined in
    # the reference either; clamping cnt avoids NaN-poisoning the batch mean.
    per_pair = jnp.sum(nll * in_range, axis=1, keepdims=True) / jnp.maximum(cnt, 1.0)
    total_loss = jnp.sum(per_pair, axis=0, keepdims=True) * (1.0 / NPAIR)  # [1,1]

    last_mask = (idx == (end_ind - 1)).astype(jnp.float32)
    c_end = jnp.sum(crw * last_mask, axis=1, keepdims=True)           # [bs,1]
    r_end = jnp.sum(rrw * last_mask, axis=1, keepdims=True)           # [bs,1]

    # ---- lane-dense packed output, padded to one (8,128) unmasked store ------
    # lane 0 = chosen_end, lane 1 = rejected_end, lane 2 = total loss
    lane = jax.lax.broadcasted_iota(jnp.int32, (NPAIR, LANES), 1)
    packed = (jnp.where(lane == 0, c_end, 0.0)
              + jnp.where(lane == 1, r_end, 0.0)
              + jnp.where(lane == 2, total_loss, 0.0))                # [bs,128]
    out_ref[...] = jnp.dot(ld("pad8"), packed, preferred_element_type=f32)  # [8,128]


# ------------------------------ wrapper ---------------------------------------
@jax.jit
def reward_model_forward(slab, input_ids):
    assert input_ids.ndim == 2
    B, S = input_ids.shape
    assert B == BATCH and S == SEQ and B % 2 == 0

    ids_col = input_ids.reshape(B * S, 1).astype(jnp.int32)   # token column
    ids_pair = input_ids.astype(jnp.int32)                    # chosen rows first

    vmem = pl.BlockSpec(memory_space=pltpu.MemorySpace.VMEM)
    packed = pl.pallas_call(
        fused_reward_kernel,
        out_shape=jax.ShapeDtypeStruct((8, LANES), jnp.float32),
        in_specs=[vmem, vmem, vmem],
        out_specs=vmem,
    )(ids_col, ids_pair, slab)

    return {
        "loss": packed[0, 2],
        "chosen_end_scores": packed[:NPAIR, 0],
        "rejected_end_scores": packed[:NPAIR, 1],
    }


# ------------------------------ params & packing ------------------------------
def init_params(key):
    ks = iter(jax.random.split(key, 64))

    def nrm(shape, std=0.02):
        return jax.random.normal(next(ks), shape, jnp.float32) * std

    ones = lambda n: jnp.ones((n,), jnp.float32)
    zeros = lambda n: jnp.zeros((n,), jnp.float32)

    layers = []
    for _ in range(NLAYER):
        layers.append(dict(
            ln1_g=ones(H), ln1_b=zeros(H),
            w_q=nrm((H, H)), b_q=zeros(H),
            w_k=nrm((H, H)), b_k=zeros(H),
            w_v=nrm((H, H)), b_v=zeros(H),
            w_o=nrm((H, H)), b_o=zeros(H),
            ln2_g=ones(H), ln2_b=zeros(H),
            w_fc=nrm((H, 4 * H)), b_fc=zeros(4 * H),
            w_pr=nrm((4 * H, H)), b_pr=zeros(H),
        ))
    return dict(wte=nrm((VOCAB, H)), wpe=nrm((SEQ, H)),
                lnf_g=ones(H), lnf_b=zeros(H),
                v_head=nrm((H,), std=1.0 / math.sqrt(H)),
                layers=layers)


def pack_slab(params):
    """Pack all weights + precomputed kernel constants into one [N,128] slab."""
    slab = np.zeros((SLAB_ROWS, LANES), np.float32)

    def put(name, arr):
        r0, nr, nc = LAYOUT[name]
        slab[r0:r0 + nr, :nc] = np.asarray(arr, np.float32).reshape(nr, nc)

    # ---- constants hoisted out of the kernel --------------------------------
    r = np.arange(R)
    same_block = (r[:, None] // SEQ) == (r[None, :] // SEQ)   # same (head,batch)
    causal = (r[None, :] % SEQ) <= (r[:, None] % SEQ)
    put("attn_bias", np.where(same_block & causal, 0.0, NEG_INF))
    put("rep", np.tile(np.eye(BS_TOK, dtype=np.float32), (NH, 1)))
    put("merge", np.tile(np.eye(BS_TOK, dtype=np.float32), (1, NH)))
    put("head_mask", np.kron(np.eye(NH, dtype=np.float32),
                             np.ones((BS_TOK, HD), np.float32)))
    put("scatter", np.tile(np.eye(SEQ, dtype=np.float32), (BATCH, 1)))
    full_sel = np.kron(np.eye(BATCH, dtype=np.float32),
                       np.ones((1, SEQ), np.float32))          # [B, B*S]
    put("sel_c", full_sel[:NPAIR])
    put("sel_r", full_sel[NPAIR:])
    put("pad8", np.eye(8, NPAIR, dtype=np.float32))

    # ---- weights -------------------------------------------------------------
    put("wte", params["wte"])
    put("wpe_rep", np.tile(np.asarray(params["wpe"]), (BATCH, 1)))
    put("lnf_g", params["lnf_g"])
    put("lnf_b", params["lnf_b"])
    put("v_head", params["v_head"])
    scale = 1.0 / math.sqrt(HD)
    for l, lp in enumerate(params["layers"]):
        put(f"ln1_g_{l}", lp["ln1_g"]); put(f"ln1_b_{l}", lp["ln1_b"])
        put(f"w_q_{l}", np.asarray(lp["w_q"]) * scale)   # fold 1/sqrt(HD)
        put(f"b_q_{l}", np.asarray(lp["b_q"]) * scale)
        put(f"w_k_{l}", lp["w_k"]); put(f"b_k_{l}", lp["b_k"])
        put(f"w_v_{l}", lp["w_v"]); put(f"b_v_{l}", lp["b_v"])
        put(f"w_o_{l}", lp["w_o"]); put(f"b_o_{l}", lp["b_o"])
        put(f"ln2_g_{l}", lp["ln2_g"]); put(f"ln2_b_{l}", lp["ln2_b"])
        put(f"w_fc_{l}", lp["w_fc"]); put(f"b_fc_{l}", lp["b_fc"])
        put(f"w_pr_{l}", lp["w_pr"]); put(f"b_pr_{l}", lp["b_pr"])
    return jnp.asarray(slab)


# ------------------------------ main -------------------------------------------
if __name__ == "__main__":
    key = jax.random.PRNGKey(0)
    params = init_params(key)
    slab = pack_slab(params)   # built once; reused across calls

    # deterministic input_ids [B, S]: first bs rows = "chosen", last bs = "rejected"
    # (each pair diverges after a shared prefix; PAD_ID pads the tails)
    chosen = jnp.array([
        [5, 7, 9, 11, 13, PAD_ID, PAD_ID, PAD_ID],
        [3, 8, 12, 20, 21, 22, 30, 31],
    ], dtype=jnp.int32)
    rejected = jnp.array([
        [5, 7, 2, 4, PAD_ID, PAD_ID, PAD_ID, PAD_ID],
        [3, 8, 12, 20, 40, 41, PAD_ID, PAD_ID],
    ], dtype=jnp.int32)
    input_ids = jnp.concatenate([chosen, rejected], axis=0)   # [4, 8]

    out = reward_model_forward(slab, input_ids)
    out = jax.block_until_ready(out)

    assert out["chosen_end_scores"].shape == (NPAIR,)
    assert out["rejected_end_scores"].shape == (NPAIR,)
    assert bool(jnp.isfinite(out["loss"]))
    print("KERNEL_OK")
</pallas_src>

<mosaic_0001>
module attributes {stable_mosaic.version = 11 : i64} {
  func.func @fused_reward_kernel(%arg0: memref<32x1xi32, #tpu.memory_space<vmem>>, %arg1: memref<4x8xi32, #tpu.memory_space<vmem>>, %arg2: memref<1328x128xf32, #tpu.memory_space<vmem>>, %arg3: memref<8x128xf32, #tpu.memory_space<vmem>>) attributes {dimension_semantics = [], scalar_prefetch = 0 : i64, scratch_operands = 0 : i64, tpu.core_type = #tpu.core_type<tc>} {
    %c0 = arith.constant 0 : index
    %c0_0 = arith.constant 0 : index
    %0 = vector.load %arg0[%c0, %c0_0] : memref<32x1xi32, #tpu.memory_space<vmem>>, vector<32x1xi32>
    %1 = tpu.iota {dimensions = array<i32: 1>} : vector<32x64xi32>
    %2 = vector.broadcast %0 : vector<32x1xi32> to vector<32x64xi32>
    %3 = arith.cmpi eq, %2, %1 : vector<32x64xi32>
    %4 = arith.extui %3 : vector<32x64xi1> to vector<32x64xi32>
    %5 = arith.sitofp %4 : vector<32x64xi32> to vector<32x64xf32>
    %c0_1 = arith.constant 0 : index
    %c0_2 = arith.constant 0 : index
    %6 = vector.load %arg2[%c0_1, %c0_2] : memref<1328x128xf32, #tpu.memory_space<vmem>>, vector<64x32xf32>
    %cst = arith.constant dense<0.000000e+00> : vector<32x32xf32>
    %7 = tpu.matmul %5, %6, %cst {dimension_numbers = #tpu.dot_dimension_numbers<[1], [0], [0], [1], [0, 0, 1, 1], [], []>} : vector<32x64xf32>, vector<64x32xf32>, vector<32x32xf32> -> vector<32x32xf32>
    %c64 = arith.constant 64 : index
    %c0_3 = arith.constant 0 : index
    %8 = vector.load %arg2[%c64, %c0_3] : memref<1328x128xf32, #tpu.memory_space<vmem>>, vector<32x32xf32>
    %9 = arith.addf %7, %8 : vector<32x32xf32>
    %cst_4 = arith.constant dense<0.000000e+00> : vector<32xf32>
    %10 = vector.multi_reduction <add>, %9, %cst_4 [1] : vector<32x32xf32> to vector<32xf32>
    %11 = vector.shape_cast %10 : vector<32xf32> to vector<32x1xf32>
    %cst_5 = arith.constant 3.200000e+01 : f32
    %12 = vector.broadcast %cst_5 : f32 to vector<32x1xf32>
    %13 = arith.divf %11, %12 : vector<32x1xf32>
    %14 = vector.broadcast %13 : vector<32x1xf32> to vector<32x32xf32>
    %15 = arith.subf %9, %14 : vector<32x32xf32>
    %16 = arith.mulf %15, %15 : vector<32x32xf32>
    %cst_6 = arith.constant dense<0.000000e+00> : vector<32xf32>
    %17 = vector.multi_reduction <add>, %16, %cst_6 [1] : vector<32x32xf32> to vector<32xf32>
    %18 = vector.shape_cast %17 : vector<32xf32> to vector<32x1xf32>
    %cst_7 = arith.constant 3.200000e+01 : f32
    %19 = vector.broadcast %cst_7 : f32 to vector<32x1xf32>
    %20 = arith.divf %18, %19 : vector<32x1xf32>
    %21 = vector.broadcast %13 : vector<32x1xf32> to vector<32x32xf32>
    %22 = arith.subf %9, %21 : vector<32x32xf32>
    %cst_8 = arith.constant 9.99999974E-6 : f32
    %23 = vector.broadcast %cst_8 : f32 to vector<32x1xf32>
    %24 = arith.addf %20, %23 : vector<32x1xf32>
    %25 = math.rsqrt %24 : vector<32x1xf32>
    %26 = vector.broadcast %25 : vector<32x1xf32> to vector<32x32xf32>
    %27 = arith.mulf %22, %26 : vector<32x32xf32>
    %c592 = arith.constant 592 : index
    %c0_9 = arith.constant 0 : index
    %28 = vector.load %arg2[%c592, %c0_9] : memref<1328x128xf32, #tpu.memory_space<vmem>>, vector<1x32xf32>
    %29 = vector.broadcast %28 : vector<1x32xf32> to vector<32x32xf32>
    %30 = arith.mulf %27, %29 : vector<32x32xf32>
    %c600 = arith.constant 600 : index
    %c0_10 = arith.constant 0 : index
    %31 = vector.load %arg2[%c600, %c0_10] : memref<1328x128xf32, #tpu.memory_space<vmem>>, vector<1x32xf32>
    %32 = vector.broadcast %31 : vector<1x32xf32> to vector<32x32xf32>
    %33 = arith.addf %30, %32 : vector<32x32xf32>
    %c224 = arith.constant 224 : index
    %c0_11 = arith.constant 0 : index
    %34 = vector.load %arg2[%c224, %c0_11] : memref<1328x128xf32, #tpu.memory_space<vmem>>, vector<128x32xf32>
    %cst_12 = arith.constant dense<0.000000e+00> : vector<128x32xf32>
    %35 = tpu.matmul %34, %33, %cst_12 {dimension_numbers = #tpu.dot_dimension_numbers<[1], [0], [0], [1], [0, 0, 1, 1], [], []>} : vector<128x32xf32>, vector<32x32xf32>, vector<128x32xf32> -> vector<128x32xf32>
    %c608 = arith.constant 608 : index
    %c0_13 = arith.constant 0 : index
    %36 = vector.load %arg2[%c608, %c0_13] : memref<1328x128xf32, #tpu.memory_space<vmem>>, vector<32x32xf32>
    %cst_14 = arith.constant dense<0.000000e+00> : vector<128x32xf32>
    %37 = tpu.matmul %35, %36, %cst_14 {dimension_numbers = #tpu.dot_dimension_numbers<[1], [0], [0], [1], [0, 0, 1, 1], [], []>} : vector<128x32xf32>, vector<32x32xf32>, vector<128x32xf32> -> vector<128x32xf32>
    %c640 = arith.constant 640 : index
    %c0_15 = arith.constant 0 : index
    %38 = vector.load %arg2[%c640, %c0_15] : memref<1328x128xf32, #tpu.memory_space<vmem>>, vector<1x32xf32>
    %39 = vector.broadcast %38 : vector<1x32xf32> to vector<128x32xf32>
    %40 = arith.addf %37, %39 : vector<128x32xf32>
    %c352 = arith.constant 352 : index
    %c0_16 = arith.constant 0 : index
    %41 = vector.load %arg2[%c352, %c0_16] : memref<1328x128xf32, #tpu.memory_space<vmem>>, vector<128x32xf32>
    %42 = arith.mulf %40, %41 : vector<128x32xf32>
    %c648 = arith.constant 648 : index
    %c0_17 = arith.constant 0 : index
    %43 = vector.load %arg2[%c648, %c0_17] : memref<1328x128xf32, #tpu.memory_space<vmem>>, vector<32x32xf32>
    %cst_18 = arith.constant dense<0.000000e+00> : vector<128x32xf32>
    %44 = tpu.matmul %35, %43, %cst_18 {dimension_numbers = #tpu.dot_dimension_numbers<[1], [0], [0], [1], [0, 0, 1, 1], [], []>} : vector<128x32xf32>, vector<32x32xf32>, vector<128x32xf32> -> vector<128x32xf32>
    %c680 = arith.constant 680 : index
    %c0_19 = arith.constant 0 : index
    %45 = vector.load %arg2[%c680, %c0_19] : memref<1328x128xf32, #tpu.memory_space<vmem>>, vector<1x32xf32>
    %46 = vector.broadcast %45 : vector<1x32xf32> to vector<128x32xf32>
    %47 = arith.addf %44, %46 : vector<128x32xf32>
    %c352_20 = arith.constant 352 : index
    %c0_21 = arith.constant 0 : index
    %48 = vector.load %arg2[%c352_20, %c0_21] : memref<1328x128xf32, #tpu.memory_space<vmem>>, vector<128x32xf32>
    %49 = arith.mulf %47, %48 : vector<128x32xf32>
    %cst_22 = arith.constant dense<0.000000e+00> : vector<128x128xf32>
    %50 = tpu.matmul %42, %49, %cst_22 {dimension_numbers = #tpu.dot_dimension_numbers<[1], [1], [0], [0], [0, 0, 1, 0], [], []>} : vector<128x32xf32>, vector<128x32xf32>, vector<128x128xf32> -> vector<128x128xf32>
    %c96 = arith.constant 96 : index
    %c0_23 = arith.constant 0 : index
    %51 = vector.load %arg2[%c96, %c0_23] : memref<1328x128xf32, #tpu.memory_space<vmem>>, vector<128x128xf32>
    %52 = arith.addf %50, %51 : vector<128x128xf32>
    %cst_24 = arith.constant dense<0xFF800000> : vector<128xf32>
    %53 = vector.multi_reduction <maximumf>, %52, %cst_24 [1] : vector<128x128xf32> to vector<128xf32>
    %54 = vector.shape_cast %53 : vector<128xf32> to vector<128x1xf32>
    %55 = vector.broadcast %54 : vector<128x1xf32> to vector<128x128xf32>
    %56 = arith.subf %52, %55 : vector<128x128xf32>
    %57 = math.exp %56 : vector<128x128xf32>
    %cst_25 = arith.constant dense<0.000000e+00> : vector<128xf32>
    %58 = vector.multi_reduction <add>, %57, %cst_25 [1] : vector<128x128xf32> to vector<128xf32>
    %59 = vector.shape_cast %58 : vector<128xf32> to vector<128x1xf32>
    %60 = vector.broadcast %59 : vector<128x1xf32> to vector<128x128xf32>
    %61 = arith.divf %57, %60 : vector<128x128xf32>
    %c224_26 = arith.constant 224 : index
    %c0_27 = arith.constant 0 : index
    %62 = vector.load %arg2[%c224_26, %c0_27] : memref<1328x128xf32, #tpu.memory_space<vmem>>, vector<128x32xf32>
    %cst_28 = arith.constant dense<0.000000e+00> : vector<128x32xf32>
    %63 = tpu.matmul %62, %33, %cst_28 {dimension_numbers = #tpu.dot_dimension_numbers<[1], [0], [0], [1], [0, 0, 1, 1], [], []>} : vector<128x32xf32>, vector<32x32xf32>, vector<128x32xf32> -> vector<128x32xf32>
    %c688 = arith.constant 688 : index
    %c0_29 = arith.constant 0 : index
    %64 = vector.load %arg2[%c688, %c0_29] : memref<1328x128xf32, #tpu.memory_space<vmem>>, vector<32x32xf32>
    %cst_30 = arith.constant dense<0.000000e+00> : vector<128x32xf32>
    %65 = tpu.matmul %63, %64, %cst_30 {dimension_numbers = #tpu.dot_dimension_numbers<[1], [0], [0], [1], [0, 0, 1, 1], [], []>} : vector<128x32xf32>, vector<32x32xf32>, vector<128x32xf32> -> vector<128x32xf32>
    %c720 = arith.constant 720 : index
    %c0_31 = arith.constant 0 : index
    %66 = vector.load %arg2[%c720, %c0_31] : memref<1328x128xf32, #tpu.memory_space<vmem>>, vector<1x32xf32>
    %67 = vector.broadcast %66 : vector<1x32xf32> to vector<128x32xf32>
    %68 = arith.addf %65, %67 : vector<128x32xf32>
    %c352_32 = arith.constant 352 : index
    %c0_33 = arith.constant 0 : index
    %69 = vector.load %arg2[%c352_32, %c0_33] : memref<1328x128xf32, #tpu.memory_space<vmem>>, vector<128x32xf32>
    %70 = arith.mulf %68, %69 : vector<128x32xf32>
    %cst_34 = arith.constant dense<0.000000e+00> : vector<128x32xf32>
    %71 = tpu.matmul %61, %70, %cst_34 {dimension_numbers = #tpu.dot_dimension_numbers<[1], [0], [0], [1], [0, 0, 1, 1], [], []>} : vector<128x128xf32>, vector<128x32xf32>, vector<128x32xf32> -> vector<128x32xf32>
    %c480 = arith.constant 480 : index
    %c0_35 = arith.constant 0 : index
    %72 = vector.load %arg2[%c480, %c0_35] : memref<1328x128xf32, #tpu.memory_space<vmem>>, vector<32x128xf32>
    %cst_36 = arith.constant dense<0.000000e+00> : vector<32x32xf32>
    %73 = tpu.matmul %72, %71, %cst_36 {dimension_numbers = #tpu.dot_dimension_numbers<[1], [0], [0], [1], [0, 0, 1, 1], [], []>} : vector<32x128xf32>, vector<128x32xf32>, vector<32x32xf32> -> vector<32x32xf32>
    %c728 = arith.constant 728 : index
    %c0_37 = arith.constant 0 : index
    %74 = vector.load %arg2[%c728, %c0_37] : memref<1328x128xf32, #tpu.memory_space<vmem>>, vector<32x32xf32>
    %cst_38 = arith.constant dense<0.000000e+00> : vector<32x32xf32>
    %75 = tpu.matmul %73, %74, %cst_38 {dimension_numbers = #tpu.dot_dimension_numbers<[1], [0], [0], [1], [0, 0, 1, 1], [], []>} : vector<32x32xf32>, vector<32x32xf32>, vector<32x32xf32> -> vector<32x32xf32>
    %c760 = arith.constant 760 : index
    %c0_39 = arith.constant 0 : index
    %76 = vector.load %arg2[%c760, %c0_39] : memref<1328x128xf32, #tpu.memory_space<vmem>>, vector<1x32xf32>
    %77 = vector.broadcast %76 : vector<1x32xf32> to vector<32x32xf32>
    %78 = arith.addf %75, %77 : vector<32x32xf32>
    %79 = arith.addf %9, %78 : vector<32x32xf32>
    %cst_40 = arith.constant dense<0.000000e+00> : vector<32xf32>
    %80 = vector.multi_reduction <add>, %79, %cst_40 [1] : vector<32x32xf32> to vector<32xf32>
    %81 = vector.shape_cast %80 : vector<32xf32> to vector<32x1xf32>
    %cst_41 = arith.constant 3.200000e+01 : f32
    %82 = vector.broadcast %cst_41 : f32 to vector<32x1xf32>
    %83 = arith.divf %81, %82 : vector<32x1xf32>
    %84 = vector.broadcast %83 : vector<32x1xf32> to vector<32x32xf32>
    %85 = arith.subf %79, %84 : vector<32x32xf32>
    %86 = arith.mulf %85, %85 : vector<32x32xf32>
    %cst_42 = arith.constant dense<0.000000e+00> : vector<32xf32>
    %87 = vector.multi_reduction <add>, %86, %cst_42 [1] : vector<32x32xf32> to vector<32xf32>
    %88 = vector.shape_cast %87 : vector<32xf32> to vector<32x1xf32>
    %cst_43 = arith.constant 3.200000e+01 : f32
    %89 = vector.broadcast %cst_43 : f32 to vector<32x1xf32>
    %90 = arith.divf %88, %89 : vector<32x1xf32>
    %91 = vector.broadcast %83 : vector<32x1xf32> to vector<32x32xf32>
    %92 = arith.subf %79, %91 : vector<32x32xf32>
    %cst_44 = arith.constant 9.99999974E-6 : f32
    %93 = vector.broadcast %cst_44 : f32 to vector<32x1xf32>
    %94 = arith.addf %90, %93 : vector<32x1xf32>
    %95 = math.rsqrt %94 : vector<32x1xf32>
    %96 = vector.broadcast %95 : vector<32x1xf32> to vector<32x32xf32>
    %97 = arith.mulf %92, %96 : vector<32x32xf32>
    %c768 = arith.constant 768 : index
    %c0_45 = arith.constant 0 : index
    %98 = vector.load %arg2[%c768, %c0_45] : memref<1328x128xf32, #tpu.memory_space<vmem>>, vector<1x32xf32>
    %99 = vector.broadcast %98 : vector<1x32xf32> to vector<32x32xf32>
    %100 = arith.mulf %97, %99 : vector<32x32xf32>
    %c776 = arith.constant 776 : index
    %c0_46 = arith.constant 0 : index
    %101 = vector.load %arg2[%c776, %c0_46] : memref<1328x128xf32, #tpu.memory_space<vmem>>, vector<1x32xf32>
    %102 = vector.broadcast %101 : vector<1x32xf32> to vector<32x32xf32>
    %103 = arith.addf %100, %102 : vector<32x32xf32>
    %c784 = arith.constant 784 : index
    %c0_47 = arith.constant 0 : index
    %104 = vector.load %arg2[%c784, %c0_47] : memref<1328x128xf32, #tpu.memory_space<vmem>>, vector<32x128xf32>
    %cst_48 = arith.constant dense<0.000000e+00> : vector<32x128xf32>
    %105 = tpu.matmul %103, %104, %cst_48 {dimension_numbers = #tpu.dot_dimension_numbers<[1], [0], [0], [1], [0, 0, 1, 1], [], []>} : vector<32x32xf32>, vector<32x128xf32>, vector<32x128xf32> -> vector<32x128xf32>
    %c816 = arith.constant 816 : index
    %c0_49 = arith.constant 0 : index
    %106 = vector.load %arg2[%c816, %c0_49] : memref<1328x128xf32, #tpu.memory_space<vmem>>, vector<1x128xf32>
    %107 = vector.broadcast %106 : vector<1x128xf32> to vector<32x128xf32>
    %108 = arith.addf %105, %107 : vector<32x128xf32>
    %109 = arith.mulf %108, %108 : vector<32x128xf32>
    %110 = arith.mulf %108, %109 : vector<32x128xf32>
    %cst_50 = arith.constant 4.471500e-02 : f32
    %111 = vector.broadcast %cst_50 : f32 to vector<32x128xf32>
    %112 = arith.mulf %111, %110 : vector<32x128xf32>
    %113 = arith.addf %108, %112 : vector<32x128xf32>
    %cst_51 = arith.constant 0.797884583 : f32
    %114 = vector.broadcast %cst_51 : f32 to vector<32x128xf32>
    %115 = arith.mulf %114, %113 : vector<32x128xf32>
    %116 = math.tanh %115 : vector<32x128xf32>
    %cst_52 = arith.constant 1.000000e+00 : f32
    %117 = vector.broadcast %cst_52 : f32 to vector<32x128xf32>
    %118 = arith.addf %117, %116 : vector<32x128xf32>
    %cst_53 = arith.constant 5.000000e-01 : f32
    %119 = vector.broadcast %cst_53 : f32 to vector<32x128xf32>
    %120 = arith.mulf %119, %118 : vector<32x128xf32>
    %121 = arith.mulf %108, %120 : vector<32x128xf32>
    %c824 = arith.constant 824 : index
    %c0_54 = arith.constant 0 : index
    %122 = vector.load %arg2[%c824, %c0_54] : memref<1328x128xf32, #tpu.memory_space<vmem>>, vector<128x32xf32>
    %cst_55 = arith.constant dense<0.000000e+00> : vector<32x32xf32>
    %123 = tpu.matmul %121, %122, %cst_55 {dimension_numbers = #tpu.dot_dimension_numbers<[1], [0], [0], [1], [0, 0, 1, 1], [], []>} : vector<32x128xf32>, vector<128x32xf32>, vector<32x32xf32> -> vector<32x32xf32>
    %c952 = arith.constant 952 : index
    %c0_56 = arith.constant 0 : index
    %124 = vector.load %arg2[%c952, %c0_56] : memref<1328x128xf32, #tpu.memory_space<vmem>>, vector<1x32xf32>
    %125 = vector.broadcast %124 : vector<1x32xf32> to vector<32x32xf32>
    %126 = arith.addf %123, %125 : vector<32x32xf32>
    %127 = arith.addf %79, %126 : vector<32x32xf32>
    %cst_57 = arith.constant dense<0.000000e+00> : vector<32xf32>
    %128 = vector.multi_reduction <add>, %127, %cst_57 [1] : vector<32x32xf32> to vector<32xf32>
    %129 = vector.shape_cast %128 : vector<32xf32> to vector<32x1xf32>
    %cst_58 = arith.constant 3.200000e+01 : f32
    %130 = vector.broadcast %cst_58 : f32 to vector<32x1xf32>
    %131 = arith.divf %129, %130 : vector<32x1xf32>
    %132 = vector.broadcast %131 : vector<32x1xf32> to vector<32x32xf32>
    %133 = arith.subf %127, %132 : vector<32x32xf32>
    %134 = arith.mulf %133, %133 : vector<32x32xf32>
    %cst_59 = arith.constant dense<0.000000e+00> : vector<32xf32>
    %135 = vector.multi_reduction <add>, %134, %cst_59 [1] : vector<32x32xf32> to vector<32xf32>
    %136 = vector.shape_cast %135 : vector<32xf32> to vector<32x1xf32>
    %cst_60 = arith.constant 3.200000e+01 : f32
    %137 = vector.broadcast %cst_60 : f32 to vector<32x1xf32>
    %138 = arith.divf %136, %137 : vector<32x1xf32>
    %139 = vector.broadcast %131 : vector<32x1xf32> to vector<32x32xf32>
    %140 = arith.subf %127, %139 : vector<32x32xf32>
    %cst_61 = arith.constant 9.99999974E-6 : f32
    %141 = vector.broadcast %cst_61 : f32 to vector<32x1xf32>
    %142 = arith.addf %138, %141 : vector<32x1xf32>
    %143 = math.rsqrt %142 : vector<32x1xf32>
    %144 = vector.broadcast %143 : vector<32x1xf32> to vector<32x32xf32>
    %145 = arith.mulf %140, %144 : vector<32x32xf32>
    %c960 = arith.constant 960 : index
    %c0_62 = arith.constant 0 : index
    %146 = vector.load %arg2[%c960, %c0_62] : memref<1328x128xf32, #tpu.memory_space<vmem>>, vector<1x32xf32>
    %147 = vector.broadcast %146 : vector<1x32xf32> to vector<32x32xf32>
    %148 = arith.mulf %145, %147 : vector<32x32xf32>
    %c968 = arith.constant 968 : index
    %c0_63 = arith.constant 0 : index
    %149 = vector.load %arg2[%c968, %c0_63] : memref<1328x128xf32, #tpu.memory_space<vmem>>, vector<1x32xf32>
    %150 = vector.broadcast %149 : vector<1x32xf32> to vector<32x32xf32>
    %151 = arith.addf %148, %150 : vector<32x32xf32>
    %c224_64 = arith.constant 224 : index
    %c0_65 = arith.constant 0 : index
    %152 = vector.load %arg2[%c224_64, %c0_65] : memref<1328x128xf32, #tpu.memory_space<vmem>>, vector<128x32xf32>
    %cst_66 = arith.constant dense<0.000000e+00> : vector<128x32xf32>
    %153 = tpu.matmul %152, %151, %cst_66 {dimension_numbers = #tpu.dot_dimension_numbers<[1], [0], [0], [1], [0, 0, 1, 1], [], []>} : vector<128x32xf32>, vector<32x32xf32>, vector<128x32xf32> -> vector<128x32xf32>
    %c976 = arith.constant 976 : index
    %c0_67 = arith.constant 0 : index
    %154 = vector.load %arg2[%c976, %c0_67] : memref<1328x128xf32, #tpu.memory_space<vmem>>, vector<32x32xf32>
    %cst_68 = arith.constant dense<0.000000e+00> : vector<128x32xf32>
    %155 = tpu.matmul %153, %154, %cst_68 {dimension_numbers = #tpu.dot_dimension_numbers<[1], [0], [0], [1], [0, 0, 1, 1], [], []>} : vector<128x32xf32>, vector<32x32xf32>, vector<128x32xf32> -> vector<128x32xf32>
    %c1008 = arith.constant 1008 : index
    %c0_69 = arith.constant 0 : index
    %156 = vector.load %arg2[%c1008, %c0_69] : memref<1328x128xf32, #tpu.memory_space<vmem>>, vector<1x32xf32>
    %157 = vector.broadcast %156 : vector<1x32xf32> to vector<128x32xf32>
    %158 = arith.addf %155, %157 : vector<128x32xf32>
    %c352_70 = arith.constant 352 : index
    %c0_71 = arith.constant 0 : index
    %159 = vector.load %arg2[%c352_70, %c0_71] : memref<1328x128xf32, #tpu.memory_space<vmem>>, vector<128x32xf32>
    %160 = arith.mulf %158, %159 : vector<128x32xf32>
    %c1016 = arith.constant 1016 : index
    %c0_72 = arith.constant 0 : index
    %161 = vector.load %arg2[%c1016, %c0_72] : memref<1328x128xf32, #tpu.memory_space<vmem>>, vector<32x32xf32>
    %cst_73 = arith.constant dense<0.000000e+00> : vector<128x32xf32>
    %162 = tpu.matmul %153, %161, %cst_73 {dimension_numbers = #tpu.dot_dimension_numbers<[1], [0], [0], [1], [0, 0, 1, 1], [], []>} : vector<128x32xf32>, vector<32x32xf32>, vector<128x32xf32> -> vector<128x32xf32>
    %c1048 = arith.constant 1048 : index
    %c0_74 = arith.constant 0 : index
    %163 = vector.load %arg2[%c1048, %c0_74] : memref<1328x128xf32, #tpu.memory_space<vmem>>, vector<1x32xf32>
    %164 = vector.broadcast %163 : vector<1x32xf32> to vector<128x32xf32>
    %165 = arith.addf %162, %164 : vector<128x32xf32>
    %c352_75 = arith.constant 352 : index
    %c0_76 = arith.constant 0 : index
    %166 = vector.load %arg2[%c352_75, %c0_76] : memref<1328x128xf32, #tpu.memory_space<vmem>>, vector<128x32xf32>
    %167 = arith.mulf %165, %166 : vector<128x32xf32>
    %cst_77 = arith.constant dense<0.000000e+00> : vector<128x128xf32>
    %168 = tpu.matmul %160, %167, %cst_77 {dimension_numbers = #tpu.dot_dimension_numbers<[1], [1], [0], [0], [0, 0, 1, 0], [], []>} : vector<128x32xf32>, vector<128x32xf32>, vector<128x128xf32> -> vector<128x128xf32>
    %c96_78 = arith.constant 96 : index
    %c0_79 = arith.constant 0 : index
    %169 = vector.load %arg2[%c96_78, %c0_79] : memref<1328x128xf32, #tpu.memory_space<vmem>>, vector<128x128xf32>
    %170 = arith.addf %168, %169 : vector<128x128xf32>
    %cst_80 = arith.constant dense<0xFF800000> : vector<128xf32>
    %171 = vector.multi_reduction <maximumf>, %170, %cst_80 [1] : vector<128x128xf32> to vector<128xf32>
    %172 = vector.shape_cast %171 : vector<128xf32> to vector<128x1xf32>
    %173 = vector.broadcast %172 : vector<128x1xf32> to vector<128x128xf32>
    %174 = arith.subf %170, %173 : vector<128x128xf32>
    %175 = math.exp %174 : vector<128x128xf32>
    %cst_81 = arith.constant dense<0.000000e+00> : vector<128xf32>
    %176 = vector.multi_reduction <add>, %175, %cst_81 [1] : vector<128x128xf32> to vector<128xf32>
    %177 = vector.shape_cast %176 : vector<128xf32> to vector<128x1xf32>
    %178 = vector.broadcast %177 : vector<128x1xf32> to vector<128x128xf32>
    %179 = arith.divf %175, %178 : vector<128x128xf32>
    %c224_82 = arith.constant 224 : index
    %c0_83 = arith.constant 0 : index
    %180 = vector.load %arg2[%c224_82, %c0_83] : memref<1328x128xf32, #tpu.memory_space<vmem>>, vector<128x32xf32>
    %cst_84 = arith.constant dense<0.000000e+00> : vector<128x32xf32>
    %181 = tpu.matmul %180, %151, %cst_84 {dimension_numbers = #tpu.dot_dimension_numbers<[1], [0], [0], [1], [0, 0, 1, 1], [], []>} : vector<128x32xf32>, vector<32x32xf32>, vector<128x32xf32> -> vector<128x32xf32>
    %c1056 = arith.constant 1056 : index
    %c0_85 = arith.constant 0 : index
    %182 = vector.load %arg2[%c1056, %c0_85] : memref<1328x128xf32, #tpu.memory_space<vmem>>, vector<32x32xf32>
    %cst_86 = arith.constant dense<0.000000e+00> : vector<128x32xf32>
    %183 = tpu.matmul %181, %182, %cst_86 {dimension_numbers = #tpu.dot_dimension_numbers<[1], [0], [0], [1], [0, 0, 1, 1], [], []>} : vector<128x32xf32>, vector<32x32xf32>, vector<128x32xf32> -> vector<128x32xf32>
    %c1088 = arith.constant 1088 : index
    %c0_87 = arith.constant 0 : index
    %184 = vector.load %arg2[%c1088, %c0_87] : memref<1328x128xf32, #tpu.memory_space<vmem>>, vector<1x32xf32>
    %185 = vector.broadcast %184 : vector<1x32xf32> to vector<128x32xf32>
    %186 = arith.addf %183, %185 : vector<128x32xf32>
    %c352_88 = arith.constant 352 : index
    %c0_89 = arith.constant 0 : index
    %187 = vector.load %arg2[%c352_88, %c0_89] : memref<1328x128xf32, #tpu.memory_space<vmem>>, vector<128x32xf32>
    %188 = arith.mulf %186, %187 : vector<128x32xf32>
    %cst_90 = arith.constant dense<0.000000e+00> : vector<128x32xf32>
    %189 = tpu.matmul %179, %188, %cst_90 {dimension_numbers = #tpu.dot_dimension_numbers<[1], [0], [0], [1], [0, 0, 1, 1], [], []>} : vector<128x128xf32>, vector<128x32xf32>, vector<128x32xf32> -> vector<128x32xf32>
    %c480_91 = arith.constant 480 : index
    %c0_92 = arith.constant 0 : index
    %190 = vector.load %arg2[%c480_91, %c0_92] : memref<1328x128xf32, #tpu.memory_space<vmem>>, vector<32x128xf32>
    %cst_93 = arith.constant dense<0.000000e+00> : vector<32x32xf32>
    %191 = tpu.matmul %190, %189, %cst_93 {dimension_numbers = #tpu.dot_dimension_numbers<[1], [0], [0], [1], [0, 0, 1, 1], [], []>} : vector<32x128xf32>, vector<128x32xf32>, vector<32x32xf32> -> vector<32x32xf32>
    %c1096 = arith.constant 1096 : index
    %c0_94 = arith.constant 0 : index
    %192 = vector.load %arg2[%c1096, %c0_94] : memref<1328x128xf32, #tpu.memory_space<vmem>>, vector<32x32xf32>
    %cst_95 = arith.constant dense<0.000000e+00> : vector<32x32xf32>
    %193 = tpu.matmul %191, %192, %cst_95 {dimension_numbers = #tpu.dot_dimension_numbers<[1], [0], [0], [1], [0, 0, 1, 1], [], []>} : vector<32x32xf32>, vector<32x32xf32>, vector<32x32xf32> -> vector<32x32xf32>
    %c1128 = arith.constant 1128 : index
    %c0_96 = arith.constant 0 : index
    %194 = vector.load %arg2[%c1128, %c0_96] : memref<1328x128xf32, #tpu.memory_space<vmem>>, vector<1x32xf32>
    %195 = vector.broadcast %194 : vector<1x32xf32> to vector<32x32xf32>
    %196 = arith.addf %193, %195 : vector<32x32xf32>
    %197 = arith.addf %127, %196 : vector<32x32xf32>
    %cst_97 = arith.constant dense<0.000000e+00> : vector<32xf32>
    %198 = vector.multi_reduction <add>, %197, %cst_97 [1] : vector<32x32xf32> to vector<32xf32>
    %199 = vector.shape_cast %198 : vector<32xf32> to vector<32x1xf32>
    %cst_98 = arith.constant 3.200000e+01 : f32
    %200 = vector.broadcast %cst_98 : f32 to vector<32x1xf32>
    %201 = arith.divf %199, %200 : vector<32x1xf32>
    %202 = vector.broadcast %201 : vector<32x1xf32> to vector<32x32xf32>
    %203 = arith.subf %197, %202 : vector<32x32xf32>
    %204 = arith.mulf %203, %203 : vector<32x32xf32>
    %cst_99 = arith.constant dense<0.000000e+00> : vector<32xf32>
    %205 = vector.multi_reduction <add>, %204, %cst_99 [1] : vector<32x32xf32> to vector<32xf32>
    %206 = vector.shape_cast %205 : vector<32xf32> to vector<32x1xf32>
    %cst_100 = arith.constant 3.200000e+01 : f32
    %207 = vector.broadcast %cst_100 : f32 to vector<32x1xf32>
    %208 = arith.divf %206, %207 : vector<32x1xf32>
    %209 = vector.broadcast %201 : vector<32x1xf32> to vector<32x32xf32>
    %210 = arith.subf %197, %209 : vector<32x32xf32>
    %cst_101 = arith.constant 9.99999974E-6 : f32
    %211 = vector.broadcast %cst_101 : f32 to vector<32x1xf32>
    %212 = arith.addf %208, %211 : vector<32x1xf32>
    %213 = math.rsqrt %212 : vector<32x1xf32>
    %214 = vector.broadcast %213 : vector<32x1xf32> to vector<32x32xf32>
    %215 = arith.mulf %210, %214 : vector<32x32xf32>
    %c1136 = arith.constant 1136 : index
    %c0_102 = arith.constant 0 : index
    %216 = vector.load %arg2[%c1136, %c0_102] : memref<1328x128xf32, #tpu.memory_space<vmem>>, vector<1x32xf32>
    %217 = vector.broadcast %216 : vector<1x32xf32> to vector<32x32xf32>
    %218 = arith.mulf %215, %217 : vector<32x32xf32>
    %c1144 = arith.constant 1144 : index
    %c0_103 = arith.constant 0 : index
    %219 = vector.load %arg2[%c1144, %c0_103] : memref<1328x128xf32, #tpu.memory_space<vmem>>, vector<1x32xf32>
    %220 = vector.broadcast %219 : vector<1x32xf32> to vector<32x32xf32>
    %221 = arith.addf %218, %220 : vector<32x32xf32>
    %c1152 = arith.constant 1152 : index
    %c0_104 = arith.constant 0 : index
    %222 = vector.load %arg2[%c1152, %c0_104] : memref<1328x128xf32, #tpu.memory_space<vmem>>, vector<32x128xf32>
    %cst_105 = arith.constant dense<0.000000e+00> : vector<32x128xf32>
    %223 = tpu.matmul %221, %222, %cst_105 {dimension_numbers = #tpu.dot_dimension_numbers<[1], [0], [0], [1], [0, 0, 1, 1], [], []>} : vector<32x32xf32>, vector<32x128xf32>, vector<32x128xf32> -> vector<32x128xf32>
    %c1184 = arith.constant 1184 : index
    %c0_106 = arith.constant 0 : index
    %224 = vector.load %arg2[%c1184, %c0_106] : memref<1328x128xf32, #tpu.memory_space<vmem>>, vector<1x128xf32>
    %225 = vector.broadcast %224 : vector<1x128xf32> to vector<32x128xf32>
    %226 = arith.addf %223, %225 : vector<32x128xf32>
    %227 = arith.mulf %226, %226 : vector<32x128xf32>
    %228 = arith.mulf %226, %227 : vector<32x128xf32>
    %cst_107 = arith.constant 4.471500e-02 : f32
    %229 = vector.broadcast %cst_107 : f32 to vector<32x128xf32>
    %230 = arith.mulf %229, %228 : vector<32x128xf32>
    %231 = arith.addf %226, %230 : vector<32x128xf32>
    %cst_108 = arith.constant 0.797884583 : f32
    %232 = vector.broadcast %cst_108 : f32 to vector<32x128xf32>
    %233 = arith.mulf %232, %231 : vector<32x128xf32>
    %234 = math.tanh %233 : vector<32x128xf32>
    %cst_109 = arith.constant 1.000000e+00 : f32
    %235 = vector.broadcast %cst_109 : f32 to vector<32x128xf32>
    %236 = arith.addf %235, %234 : vector<32x128xf32>
    %cst_110 = arith.constant 5.000000e-01 : f32
    %237 = vector.broadcast %cst_110 : f32 to vector<32x128xf32>
    %238 = arith.mulf %237, %236 : vector<32x128xf32>
    %239 = arith.mulf %226, %238 : vector<32x128xf32>
    %c1192 = arith.constant 1192 : index
    %c0_111 = arith.constant 0 : index
    %240 = vector.load %arg2[%c1192, %c0_111] : memref<1328x128xf32, #tpu.memory_space<vmem>>, vector<128x32xf32>
    %cst_112 = arith.constant dense<0.000000e+00> : vector<32x32xf32>
    %241 = tpu.matmul %239, %240, %cst_112 {dimension_numbers = #tpu.dot_dimension_numbers<[1], [0], [0], [1], [0, 0, 1, 1], [], []>} : vector<32x128xf32>, vector<128x32xf32>, vector<32x32xf32> -> vector<32x32xf32>
    %c1320 = arith.constant 1320 : index
    %c0_113 = arith.constant 0 : index
    %242 = vector.load %arg2[%c1320, %c0_113] : memref<1328x128xf32, #tpu.memory_space<vmem>>, vector<1x32xf32>
    %243 = vector.broadcast %242 : vector<1x32xf32> to vector<32x32xf32>
    %244 = arith.addf %241, %243 : vector<32x32xf32>
    %245 = arith.addf %197, %244 : vector<32x32xf32>
    %cst_114 = arith.constant dense<0.000000e+00> : vector<32xf32>
    %246 = vector.multi_reduction <add>, %245, %cst_114 [1] : vector<32x32xf32> to vector<32xf32>
    %247 = vector.shape_cast %246 : vector<32xf32> to vector<32x1xf32>
    %cst_115 = arith.constant 3.200000e+01 : f32
    %248 = vector.broadcast %cst_115 : f32 to vector<32x1xf32>
    %249 = arith.divf %247, %248 : vector<32x1xf32>
    %250 = vector.broadcast %249 : vector<32x1xf32> to vector<32x32xf32>
    %251 = arith.subf %245, %250 : vector<32x32xf32>
    %252 = arith.mulf %251, %251 : vector<32x32xf32>
    %cst_116 = arith.constant dense<0.000000e+00> : vector<32xf32>
    %253 = vector.multi_reduction <add>, %252, %cst_116 [1] : vector<32x32xf32> to vector<32xf32>
    %254 = vector.shape_cast %253 : vector<32xf32> to vector<32x1xf32>
    %cst_117 = arith.constant 3.200000e+01 : f32
    %255 = vector.broadcast %cst_117 : f32 to vector<32x1xf32>
    %256 = arith.divf %254, %255 : vector<32x1xf32>
    %257 = vector.broadcast %249 : vector<32x1xf32> to vector<32x32xf32>
    %258 = arith.subf %245, %257 : vector<32x32xf32>
    %cst_118 = arith.constant 9.99999974E-6 : f32
    %259 = vector.broadcast %cst_118 : f32 to vector<32x1xf32>
    %260 = arith.addf %256, %259 : vector<32x1xf32>
    %261 = math.rsqrt %260 : vector<32x1xf32>
    %262 = vector.broadcast %261 : vector<32x1xf32> to vector<32x32xf32>
    %263 = arith.mulf %258, %262 : vector<32x32xf32>
    %c568 = arith.constant 568 : index
    %c0_119 = arith.constant 0 : index
    %264 = vector.load %arg2[%c568, %c0_119] : memref<1328x128xf32, #tpu.memory_space<vmem>>, vector<1x32xf32>
    %265 = vector.broadcast %264 : vector<1x32xf32> to vector<32x32xf32>
    %266 = arith.mulf %263, %265 : vector<32x32xf32>
    %c576 = arith.constant 576 : index
    %c0_120 = arith.constant 0 : index
    %267 = vector.load %arg2[%c576, %c0_120] : memref<1328x128xf32, #tpu.memory_space<vmem>>, vector<1x32xf32>
    %268 = vector.broadcast %267 : vector<1x32xf32> to vector<32x32xf32>
    %269 = arith.addf %266, %268 : vector<32x32xf32>
    %c584 = arith.constant 584 : index
    %c0_121 = arith.constant 0 : index
    %270 = vector.load %arg2[%c584, %c0_121] : memref<1328x128xf32, #tpu.memory_space<vmem>>, vector<1x32xf32>
    %271 = vector.broadcast %270 : vector<1x32xf32> to vector<32x32xf32>
    %272 = arith.mulf %269, %271 : vector<32x32xf32>
    %cst_122 = arith.constant dense<0.000000e+00> : vector<32xf32>
    %273 = vector.multi_reduction <add>, %272, %cst_122 [1] : vector<32x32xf32> to vector<32xf32>
    %274 = vector.shape_cast %273 : vector<32xf32> to vector<32x1xf32>
    %c512 = arith.constant 512 : index
    %c0_123 = arith.constant 0 : index
    %275 = vector.load %arg2[%c512, %c0_123] : memref<1328x128xf32, #tpu.memory_space<vmem>>, vector<32x8xf32>
    %276 = vector.broadcast %274 : vector<32x1xf32> to vector<32x8xf32>
    %277 = arith.mulf %276, %275 : vector<32x8xf32>
    %c544 = arith.constant 544 : index
    %c0_124 = arith.constant 0 : index
    %278 = vector.load %arg2[%c544, %c0_124] : memref<1328x128xf32, #tpu.memory_space<vmem>>, vector<2x32xf32>
    %cst_125 = arith.constant dense<0.000000e+00> : vector<2x8xf32>
    %279 = tpu.matmul %278, %277, %cst_125 {dimension_numbers = #tpu.dot_dimension_numbers<[1], [0], [0], [1], [0, 0, 1, 1], [], []>} : vector<2x32xf32>, vector<32x8xf32>, vector<2x8xf32> -> vector<2x8xf32>
    %c552 = arith.constant 552 : index
    %c0_126 = arith.constant 0 : index
    %280 = vector.load %arg2[%c552, %c0_126] : memref<1328x128xf32, #tpu.memory_space<vmem>>, vector<2x32xf32>
    %cst_127 = arith.constant dense<0.000000e+00> : vector<2x8xf32>
    %281 = tpu.matmul %280, %277, %cst_127 {dimension_numbers = #tpu.dot_dimension_numbers<[1], [0], [0], [1], [0, 0, 1, 1], [], []>} : vector<2x32xf32>, vector<32x8xf32>, vector<2x8xf32> -> vector<2x8xf32>
    %c0_128 = arith.constant 0 : index
    %c0_129 = arith.constant 0 : index
    %282 = vector.load %arg1[%c0_128, %c0_129] : memref<4x8xi32, #tpu.memory_space<vmem>>, vector<2x8xi32>
    %c2 = arith.constant 2 : index
    %c0_130 = arith.constant 0 : index
    %283 = vector.load %arg1[%c2, %c0_130] : memref<4x8xi32, #tpu.memory_space<vmem>>, vector<2x8xi32>
    %284 = tpu.iota {dimensions = array<i32: 1>} : vector<2x8xi32>
    %c63_i32 = arith.constant 63 : i32
    %285 = vector.broadcast %c63_i32 : i32 to vector<2x8xi32>
    %286 = arith.cmpi eq, %282, %285 : vector<2x8xi32>
    %c8_i32 = arith.constant 8 : i32
    %287 = vector.broadcast %c8_i32 : i32 to vector<2x8xi32>
    %288 = arith.select %286, %284, %287 : vector<2x8xi1>, vector<2x8xi32>
    %cst_131 = arith.constant dense<2147483647> : vector<2xi32>
    %289 = vector.multi_reduction <minsi>, %288, %cst_131 [1] : vector<2x8xi32> to vector<2xi32>
    %290 = vector.shape_cast %289 : vector<2xi32> to vector<2x1xi32>
    %c63_i32_132 = arith.constant 63 : i32
    %291 = vector.broadcast %c63_i32_132 : i32 to vector<2x8xi32>
    %292 = arith.cmpi eq, %283, %291 : vector<2x8xi32>
    %c8_i32_133 = arith.constant 8 : i32
    %293 = vector.broadcast %c8_i32_133 : i32 to vector<2x8xi32>
    %294 = arith.select %292, %284, %293 : vector<2x8xi1>, vector<2x8xi32>
    %cst_134 = arith.constant dense<2147483647> : vector<2xi32>
    %295 = vector.multi_reduction <minsi>, %294, %cst_134 [1] : vector<2x8xi32> to vector<2xi32>
    %296 = vector.shape_cast %295 : vector<2xi32> to vector<2x1xi32>
    %297 = arith.maxsi %290, %296 : vector<2x1xi32>
    %298 = arith.cmpi ne, %282, %283 : vector<2x8xi32>
    %c8_i32_135 = arith.constant 8 : i32
    %299 = vector.broadcast %c8_i32_135 : i32 to vector<2x8xi32>
    %300 = arith.select %298, %284, %299 : vector<2x8xi1>, vector<2x8xi32>
    %cst_136 = arith.constant dense<2147483647> : vector<2xi32>
    %301 = vector.multi_reduction <minsi>, %300, %cst_136 [1] : vector<2x8xi32> to vector<2xi32>
    %302 = vector.shape_cast %301 : vector<2xi32> to vector<2x1xi32>
    %303 = vector.broadcast %302 : vector<2x1xi32> to vector<2x8xi32>
    %304 = arith.cmpi sge, %284, %303 : vector<2x8xi32>
    %305 = vector.broadcast %297 : vector<2x1xi32> to vector<2x8xi32>
    %306 = arith.cmpi slt, %284, %305 : vector<2x8xi32>
    %307 = arith.andi %304, %306 : vector<2x8xi1>
    %308 = arith.extui %307 : vector<2x8xi1> to vector<2x8xi32>
    %309 = arith.sitofp %308 : vector<2x8xi32> to vector<2x8xf32>
    %310 = arith.subf %279, %281 : vector<2x8xf32>
    %cst_137 = arith.constant 0.000000e+00 : f32
    %311 = vector.broadcast %cst_137 : f32 to vector<2x8xf32>
    %312 = arith.subf %311, %310 : vector<2x8xf32>
    %cst_138 = arith.constant 0.000000e+00 : f32
    %313 = vector.broadcast %cst_138 : f32 to vector<2x8xf32>
    %314 = arith.maximumf %312, %313 : vector<2x8xf32>
    %315 = math.absf %310 : vector<2x8xf32>
    %cst_139 = arith.constant 0.000000e+00 : f32
    %316 = vector.broadcast %cst_139 : f32 to vector<2x8xf32>
    %317 = arith.subf %316, %315 : vector<2x8xf32>
    %318 = math.exp %317 : vector<2x8xf32>
    %cst_140 = arith.constant 1.000000e+00 : f32
    %319 = vector.broadcast %cst_140 : f32 to vector<2x8xf32>
    %320 = arith.addf %319, %318 : vector<2x8xf32>
    %cst_141 = arith.constant 1.000000e+00 : f32
    %321 = vector.broadcast %cst_141 : f32 to vector<2x8xf32>
    %322 = arith.cmpf oeq, %320, %321 : vector<2x8xf32>
    %323 = math.log %320 : vector<2x8xf32>
    %cst_142 = arith.constant 1.000000e+00 : f32
    %324 = vector.broadcast %cst_142 : f32 to vector<2x8xf32>
    %325 = arith.subf %320, %324 : vector<2x8xf32>
    %326 = arith.divf %318, %325 : vector<2x8xf32>
    %327 = arith.mulf %323, %326 : vector<2x8xf32>
    %328 = arith.select %322, %318, %327 : vector<2x8xi1>, vector<2x8xf32>
    %329 = arith.addf %314, %328 : vector<2x8xf32>
    %cst_143 = arith.constant dense<0.000000e+00> : vector<2xf32>
    %330 = vector.multi_reduction <add>, %309, %cst_143 [1] : vector<2x8xf32> to vector<2xf32>
    %331 = vector.shape_cast %330 : vector<2xf32> to vector<2x1xf32>
    %332 = arith.mulf %329, %309 : vector<2x8xf32>
    %cst_144 = arith.constant dense<0.000000e+00> : vector<2xf32>
    %333 = vector.multi_reduction <add>, %332, %cst_144 [1] : vector<2x8xf32> to vector<2xf32>
    %334 = vector.shape_cast %333 : vector<2xf32> to vector<2x1xf32>
    %cst_145 = arith.constant 1.000000e+00 : f32
    %335 = vector.broadcast %cst_145 : f32 to vector<2x1xf32>
    %336 = arith.maximumf %331, %335 : vector<2x1xf32>
    %337 = arith.divf %334, %336 : vector<2x1xf32>
    %cst_146 = arith.constant dense<0.000000e+00> : vector<1xf32>
    %338 = vector.multi_reduction <add>, %337, %cst_146 [0] : vector<2x1xf32> to vector<1xf32>
    %339 = vector.shape_cast %338 : vector<1xf32> to vector<1x1xf32>
    %cst_147 = arith.constant 5.000000e-01 : f32
    %340 = vector.broadcast %cst_147 : f32 to vector<1x1xf32>
    %341 = arith.mulf %339, %340 : vector<1x1xf32>
    %c1_i32 = arith.constant 1 : i32
    %342 = vector.broadcast %c1_i32 : i32 to vector<2x1xi32>
    %343 = arith.subi %297, %342 : vector<2x1xi32>
    %344 = vector.broadcast %343 : vector<2x1xi32> to vector<2x8xi32>
    %345 = arith.cmpi eq, %284, %344 : vector<2x8xi32>
    %346 = arith.extui %345 : vector<2x8xi1> to vector<2x8xi32>
    %347 = arith.sitofp %346 : vector<2x8xi32> to vector<2x8xf32>
    %348 = arith.mulf %279, %347 : vector<2x8xf32>
    %cst_148 = arith.constant dense<0.000000e+00> : vector<2xf32>
    %349 = vector.multi_reduction <add>, %348, %cst_148 [1] : vector<2x8xf32> to vector<2xf32>
    %350 = vector.shape_cast %349 : vector<2xf32> to vector<2x1xf32>
    %351 = arith.mulf %281, %347 : vector<2x8xf32>
    %cst_149 = arith.constant dense<0.000000e+00> : vector<2xf32>
    %352 = vector.multi_reduction <add>, %351, %cst_149 [1] : vector<2x8xf32> to vector<2xf32>
    %353 = vector.shape_cast %352 : vector<2xf32> to vector<2x1xf32>
    %354 = tpu.iota {dimensions = array<i32: 1>} : vector<2x128xi32>
    %c0_i32 = arith.constant 0 : i32
    %355 = vector.broadcast %c0_i32 : i32 to vector<2x128xi32>
    %356 = arith.cmpi eq, %354, %355 : vector<2x128xi32>
    %cst_150 = arith.constant 0.000000e+00 : f32
    %357 = vector.shape_cast %350 : vector<2x1xf32> to vector<2x1xf32>
    %358 = vector.broadcast %357 : vector<2x1xf32> to vector<2x128xf32>
    %359 = vector.broadcast %cst_150 : f32 to vector<2x128xf32>
    %360 = arith.select %356, %358, %359 : vector<2x128xi1>, vector<2x128xf32>
    %c1_i32_151 = arith.constant 1 : i32
    %361 = vector.broadcast %c1_i32_151 : i32 to vector<2x128xi32>
    %362 = arith.cmpi eq, %354, %361 : vector<2x128xi32>
    %cst_152 = arith.constant 0.000000e+00 : f32
    %363 = vector.shape_cast %353 : vector<2x1xf32> to vector<2x1xf32>
    %364 = vector.broadcast %363 : vector<2x1xf32> to vector<2x128xf32>
    %365 = vector.broadcast %cst_152 : f32 to vector<2x128xf32>
    %366 = arith.select %362, %364, %365 : vector<2x128xi1>, vector<2x128xf32>
    %367 = arith.addf %360, %366 : vector<2x128xf32>
    %c2_i32 = arith.constant 2 : i32
    %368 = vector.broadcast %c2_i32 : i32 to vector<2x128xi32>
    %369 = arith.cmpi eq, %354, %368 : vector<2x128xi32>
    %cst_153 = arith.constant 0.000000e+00 : f32
    %370 = vector.shape_cast %341 : vector<1x1xf32> to vector<1x1xf32>
    %371 = vector.broadcast %370 : vector<1x1xf32> to vector<2x128xf32>
    %372 = vector.broadcast %cst_153 : f32 to vector<2x128xf32>
    %373 = arith.select %369, %371, %372 : vector<2x128xi1>, vector<2x128xf32>
    %374 = arith.addf %367, %373 : vector<2x128xf32>
    %c560 = arith.constant 560 : index
    %c0_154 = arith.constant 0 : index
    %375 = vector.load %arg2[%c560, %c0_154] : memref<1328x128xf32, #tpu.memory_space<vmem>>, vector<8x2xf32>
    %cst_155 = arith.constant dense<0.000000e+00> : vector<8x128xf32>
    %376 = tpu.matmul %375, %374, %cst_155 {dimension_numbers = #tpu.dot_dimension_numbers<[1], [0], [0], [1], [0, 0, 1, 1], [], []>} : vector<8x2xf32>, vector<2x128xf32>, vector<8x128xf32> -> vector<8x128xf32>
    %c0_156 = arith.constant 0 : index
    %c0_157 = arith.constant 0 : index
    %377 = vector.load %arg3[%c0_156, %c0_157] : memref<8x128xf32, #tpu.memory_space<vmem>>, vector<8x128xf32>
    tpu.vector_store %arg3[%c0_156, %c0_157], %376 {strides = array<i32>} : memref<8x128xf32, #tpu.memory_space<vmem>>, vector<8x128xf32>,
    return
  }
}

</mosaic_0001>

<llo_original>
// kernel: reward_model_forward.1
$region0: #{reward_model_forward.1}
  #allocation0 [shape = 'u32[]', space=smem, size = 0x4, offset = 0x4, fixed_abs, tag = 'smem constant byte address 0x4 - core index']
  #allocation1 [shape = 'u32[144,128]{1,0:T(1,128)}', space=vmem, size = 0x12000, scoped, tag = 'internal scratch']
  %s0 = inlined_call_operand.vmem [shape: s32[32,1], index: 0, kind: input, shape index: {}]
  %s1 = inlined_call_operand.vmem [shape: s32[4,8], index: 1, kind: input, shape index: {}]
  %s2 = inlined_call_operand.hbm [shape: f32[1328,128], index: 2, kind: input, shape index: {}]
  %s3 = inlined_call_operand.vmem [shape: f32[8,128], index: 3, kind: output, shape index: {}]
  %s4 = sld [smem:[#allocation0]]
  $region26: #{reward_model_forward.1} parent=0
    _
  %s6 = ssub.s32 1, %s4
  %s7 = scalar_select 0, %s6, %s4
  $region1: #{reward_model_forward.1} parent=0
    #allocation2 [shape = 'u8[679936]{0}', space=vmem, size = 0xa6000, scoped, tag = 'input window, operand 2, single buffered']
    #allocation3 [shape = 's32[1]{0}', space=sflag, size = 0x4, scoped, tag = 'scoped memory for reward_model_forward.1']
    %8 = vsyncpa [#allocation3], 0
    // Predicated region
    $region2: #{reward_model_forward.1} parent=1 // pred_check
      _
    $region3: #{reward_model_forward.1} parent=1 // pred_check_branch
      %10 = sbr.rel (0) target = $region5
    $region4: #{reward_model_forward.1} parent=1 // pred_region
      _
    $region5: #{reward_model_forward.1} parent=1 // pred_fallthru
      _
    // Predicated region
    $region6: #{reward_model_forward.1} parent=1 // pred_check
      _
    $region7: #{reward_model_forward.1} parent=1 // pred_check_branch
      %12 = sbr.rel (0) target = $region9
    $region8: #{reward_model_forward.1} parent=1 // pred_region
      _
    $region9: #{reward_model_forward.1} parent=1 // pred_fallthru
      _
    // Predicated region
    $region10: #{reward_model_forward.1} parent=1 // pred_check
      _
    $region11: #{reward_model_forward.1} parent=1 // pred_check_branch
      %14 = sbr.rel (0) target = $region13
    $region12: #{reward_model_forward.1} parent=1 // pred_region
      %s16 = ssub.s32 21248, 21248
      %17 = vsyncadd [#allocation3], %s16
      %s18 = sshll.u32 [#allocation2], 4
      %s19 = int_to_ptr.vmem [resolvable:$true] %s18
      %24 = dma.hbm_to_vmem [thread:$0]  %s2, 21248, %s19, [#allocation3], 128, 128, 8
    $region13: #{reward_model_forward.1} parent=1 // pred_fallthru
      _
    // Predicated region
    $region14: #{reward_model_forward.1} parent=1 // pred_check
      _
    $region15: #{reward_model_forward.1} parent=1 // pred_check_branch
      %26 = sbr.rel (0) target = $region17
    $region16: #{reward_model_forward.1} parent=1 // pred_region
      %27 = dma.done [#allocation3], 21248
    $region17: #{reward_model_forward.1} parent=1 // pred_fallthru
      _
    %v28 = vld [vmem:[%s0] sm:$0xff]
    %v29 = vld [vmem:[%s0 + $0x8] sm:$0xff]
    %v30 = vld [vmem:[%s0 + $0x10] sm:$0xff]
    %v31 = vld [vmem:[%s0 + $0x18] sm:$0xff]
    %v32 = vlaneseq
    %v33 = vand.u32 %v32, 127
    %34 = vset.pattern.permute.xlu0 0
    %35 = vperm.xlu0 %34, %v28
    %v36 = vpop.permute.xlu0 %35
    %37 = vset.pattern.permute.xlu0 0
    %38 = vperm.xlu0 %37, %v29
    %v39 = vpop.permute.xlu0 %38
    %40 = vset.pattern.permute.xlu0 0
    %41 = vperm.xlu0 %40, %v30
    %v42 = vpop.permute.xlu0 %41
    %43 = vset.pattern.permute.xlu0 0
    %44 = vperm.xlu0 %43, %v31
    %v45 = vpop.permute.xlu0 %44
    %vm46 = vcmp.eq.s32.totalorder %v36, %v33
    %vm47 = vcmp.eq.s32.totalorder %v39, %v33
    %vm48 = vcmp.eq.s32.totalorder %v42, %v33
    %vm49 = vcmp.eq.s32.totalorder %v45, %v33
    %v50 = vsel %vm46, 1, 0
    %v51 = vsel %vm47, 1, 0
    %v52 = vsel %vm48, 1, 0
    %v53 = vsel %vm49, 1, 0
    %v54 = vcvt.s32.f32 %v50
    %v55 = vcvt.s32.f32 %v51
    %v56 = vcvt.s32.f32 %v52
    %v57 = vcvt.s32.f32 %v53
    %v58 = vld [vmem:[#allocation2] sm:$0xff]
    %v59 = vld [vmem:[#allocation2 + $0x8] sm:$0xff]
    %v60 = vld [vmem:[#allocation2 + $0x10] sm:$0xff]
    %v61 = vld [vmem:[#allocation2 + $0x18] sm:$0xff]
    %v62 = vld [vmem:[#allocation2 + $0x20] sm:$0xff]
    %v63 = vld [vmem:[#allocation2 + $0x28] sm:$0xff]
    %v64 = vld [vmem:[#allocation2 + $0x30] sm:$0xff]
    %v65 = vld [vmem:[#allocation2 + $0x38] sm:$0xff]
    %v66 = vld [vmem:[#allocation2 + $0x40] sm:$0xff]
    %v67 = vld [vmem:[#allocation2 + $0x48] sm:$0xff]
    %v68 = vld [vmem:[#allocation2 + $0x50] sm:$0xff]
    %v69 = vld [vmem:[#allocation2 + $0x58] sm:$0xff]
    %vm70 = vcmask 523264
    %v72 = vsel %vm70, %v54, 0
    %v75 = vsel %vm70, %v55, 0
    %v78 = vsel %vm70, %v56, 0
    %v81 = vsel %vm70, %v57, 0
    %83 = vmatprep.subr.mxu0 0.0
    %84 = vmatpush1.msra.mxu0 %v58
    %85 = vmatprep.subr.mxu0 0.0
    %86 = vmatpush1.msra.mxu0 %v59
    %87 = vmatprep.subr.mxu0 0.0
    %88 = vmatpush1.msra.mxu0 %v60
    %89 = vmatprep.subr.mxu0 0.0
    %90 = vmatpush1.msra.mxu0 %v61
    %91 = vmatprep.subr.mxu0 0.0
    %92 = vmatpush1.msra.mxu0 %v62
    %93 = vmatprep.subr.mxu0 0.0
    %94 = vmatpush1.msra.mxu0 %v63
    %95 = vmatprep.subr.mxu0 0.0
    %96 = vmatpush1.msra.mxu0 %v64
    %97 = vmatprep.subr.mxu0 0.0
    %98 = vmatpush1.msra.mxu0 %v65
    %99 = vmatprep.subr.mxu0 0.0
    %100 = vmatpush1.msra.mxu0 0.0
    %101 = vmatprep.subr.mxu0 0.0
    %102 = vmatpush1.msra.mxu0 0.0
    %103 = vmatprep.subr.mxu0 0.0
    %104 = vmatpush1.msra.mxu0 0.0
    %105 = vmatprep.subr.mxu0 0.0
    %106 = vmatpush1.msra.mxu0 0.0
    %107 = vmatprep.subr.mxu0 0.0
    %108 = vmatpush1.msra.mxu0 0.0
    %109 = vmatprep.subr.mxu0 0.0
    %110 = vmatpush1.msra.mxu0 0.0
    %111 = vmatprep.subr.mxu0 0.0
    %112 = vmatpush1.msra.mxu0 0.0
    %113 = vmatprep.subr.mxu0 0.0
    %114 = vmatpush1.msra.mxu0 0.0
    %115 = vmatprep.subr.mxu0 0.0
    %116 = vmatpush1.msra.mxu0 0.0
    %117 = vmatprep.subr.mxu0 0.0
    %118 = vmatpush1.msra.mxu0 0.0
    %119 = vmatprep.subr.mxu0 0.0
    %120 = vmatpush1.msra.mxu0 0.0
    %121 = vmatprep.subr.mxu0 0.0
    %122 = vmatpush1.msra.mxu0 0.0
    %123 = vmatprep.subr.mxu0 0.0
    %124 = vmatpush1.msra.mxu0 0.0
    %125 = vmatprep.subr.mxu0 0.0
    %126 = vmatpush1.msra.mxu0 0.0
    %127 = vmatprep.subr.mxu0 0.0
    %128 = vmatpush1.msra.mxu0 0.0
    %129 = vmatprep.subr.mxu0 0.0
    %130 = vmatpush1.msra.mxu0 0.0
    %131 = vmatprep.subr.mxu0 0.0
    %132 = vmatpush1.msra.mxu0 0.0
    %133 = vmatprep.subr.mxu0 0.0
    %134 = vmatpush1.msra.mxu0 0.0
    %135 = vmatprep.subr.mxu0 0.0
    %136 = vmatpush1.msra.mxu0 0.0
    %137 = vmatprep.subr.mxu0 0.0
    %138 = vmatpush1.msra.mxu0 0.0
    %139 = vmatprep.subr.mxu0 0.0
    %140 = vmatpush1.msra.mxu0 0.0
    %141 = vmatprep.subr.mxu0 0.0
    %142 = vmatpush1.msra.mxu0 0.0
    %143 = vmatprep.subr.mxu0 0.0
    %144 = vmatpush1.msra.mxu0 0.0
    %145 = vmatprep.subr.mxu0 0.0
    %146 = vmatpush1.msra.mxu0 0.0
    %147 = vmatprep.mubr.f32.mxu0 0.0
    %148 = vmatmul.mubr.f32.gmra.mrb[0].mxu0 %v72
    %v149 = vpop.f32.mrb[0].mxu0
    %v150 = vadd.f32 %v66, %v149
    %v151 = vpop.f32.mrb[0].mxu0
    %152 = vmatprep.mubr.f32.mxu0 0.0
    %153 = vmatmul.mubr.f32.gmra.mrb[0].mxu0 %v75
    %v154 = vpop.f32.mrb[0].mxu0
    %v155 = vadd.f32 %v67, %v154
    %v156 = vpop.f32.mrb[0].mxu0
    %157 = vmatprep.mubr.f32.mxu0 0.0
    %158 = vmatmul.mubr.f32.gmra.mrb[0].mxu0 %v78
    %v159 = vpop.f32.mrb[0].mxu0
    %v160 = vadd.f32 %v68, %v159
    %v161 = vpop.f32.mrb[0].mxu0
    %162 = vmatprep.mubr.f32.mxu0 0.0
    %163 = vmatmul.mubr.f32.gmra.mrb[0].mxu0 %v81
    %v164 = vpop.f32.mrb[0].mxu0
    %v165 = vadd.f32 %v69, %v164
    %v166 = vpop.f32.mrb[0].mxu0
    %167 = vdwg.mxu0
    %vm168 = vcmask 261120
    %v169 = vsel %vm168, %v150, 0.0
    %170 = vadd.xlane.f32.xlu0 %v169
    %v171 = vpop.xlane.xlu0 %170
    %v172 = vsel %vm168, %v155, 0.0
    %173 = vadd.xlane.f32.xlu0 %v172
    %v174 = vpop.xlane.xlu0 %173
    %v175 = vsel %vm168, %v160, 0.0
    %176 = vadd.xlane.f32.xlu0 %v175
    %v177 = vpop.xlane.xlu0 %176
    %v178 = vsel %vm168, %v165, 0.0
    %179 = vadd.xlane.f32.xlu0 %v178
    %v180 = vpop.xlane.xlu0 %179
    %v181 = vrcp.pop 32.0
    %v182 = vmul.f32 %v171, %v181
    %v183 = vmul.f32 %v174, %v181
    %v184 = vmul.f32 %v177, %v181
    %v185 = vmul.f32 %v180, %v181
    %v186 = vsub.f32 %v150, %v182
    %v187 = vsub.f32 %v155, %v183
    %v188 = vsub.f32 %v160, %v184
    %v189 = vsub.f32 %v165, %v185
    %v190 = vmul.f32 %v186, %v186
    %v191 = vmul.f32 %v187, %v187
    %v192 = vmul.f32 %v188, %v188
    %v193 = vmul.f32 %v189, %v189
    %v194 = vsel %vm168, %v190, 0.0
    %195 = vadd.xlane.f32.xlu0 %v194
    %v196 = vpop.xlane.xlu0 %195
    %v197 = vsel %vm168, %v191, 0.0
    %198 = vadd.xlane.f32.xlu0 %v197
    %v199 = vpop.xlane.xlu0 %198
    %v200 = vsel %vm168, %v192, 0.0
    %201 = vadd.xlane.f32.xlu0 %v200
    %v202 = vpop.xlane.xlu0 %201
    %v203 = vsel %vm168, %v193, 0.0
    %204 = vadd.xlane.f32.xlu0 %v203
    %v205 = vpop.xlane.xlu0 %204
    %v206 = vmul.f32 %v196, %v181
    %v207 = vmul.f32 %v199, %v181
    %v208 = vmul.f32 %v202, %v181
    %v209 = vmul.f32 %v205, %v181
    %v210 = vadd.f32 %v206, 1e-05
    %v211 = vadd.f32 %v207, 1e-05
    %v212 = vadd.f32 %v208, 1e-05
    %v213 = vadd.f32 %v209, 1e-05
    %v214 = vrsqrt.pop %v210
    %v215 = vrsqrt.pop %v211
    %v216 = vrsqrt.pop %v212
    %v217 = vrsqrt.pop %v213
    %v218 = vmul.f32 %v186, %v214
    %v219 = vmul.f32 %v187, %v215
    %v220 = vmul.f32 %v188, %v216
    %v221 = vmul.f32 %v189, %v217
    %v222 = vld [vmem:[#allocation2 + $0x250] sm:$0x1]
    %v223 = vlaneseq
    %v224 = vshrl.u32 %v223, 7
    %v225 = vsub.s32 0, %v224
    %v226 = vrot.slane %v222, %v225
    %v227 = vmul.f32 %v218, %v226
    %v228 = vmul.f32 %v219, %v226
    %v229 = vmul.f32 %v220, %v226
    %v230 = vmul.f32 %v221, %v226
    %v231 = vld [vmem:[#allocation2 + $0x258] sm:$0x1]
    %v232 = vlaneseq
    %v233 = vshrl.u32 %v232, 7
    %v234 = vsub.s32 0, %v233
    %v235 = vrot.slane %v231, %v234
    %v236 = vadd.f32 %v227, %v235
    %v237 = vadd.f32 %v228, %v235
    %v238 = vadd.f32 %v229, %v235
    %v239 = vadd.f32 %v230, %v235
    %v240 = vld [vmem:[#allocation2 + $0xe0] sm:$0xff]
    %v241 = vld [vmem:[#allocation2 + $0xe8] sm:$0xff]
    %v242 = vld [vmem:[#allocation2 + $0xf0] sm:$0xff]
    %v243 = vld [vmem:[#allocation2 + $0xf8] sm:$0xff]
    %v244 = vld [vmem:[#allocation2 + $0x100] sm:$0xff]
    %v245 = vld [vmem:[#allocation2 + $0x108] sm:$0xff]
    %v246 = vld [vmem:[#allocation2 + $0x110] sm:$0xff]
    %v247 = vld [vmem:[#allocation2 + $0x118] sm:$0xff]
    %v248 = vld [vmem:[#allocation2 + $0x120] sm:$0xff]
    %v249 = vld [vmem:[#allocation2 + $0x128] sm:$0xff]
    %v250 = vld [vmem:[#allocation2 + $0x130] sm:$0xff]
    %v251 = vld [vmem:[#allocation2 + $0x138] sm:$0xff]
    %v252 = vld [vmem:[#allocation2 + $0x140] sm:$0xff]
    %v253 = vld [vmem:[#allocation2 + $0x148] sm:$0xff]
    %v254 = vld [vmem:[#allocation2 + $0x150] sm:$0xff]
    %v255 = vld [vmem:[#allocation2 + $0x158] sm:$0xff]
    %v257 = vsel %vm168, %v240, 0
    %v260 = vsel %vm168, %v241, 0
    %v263 = vsel %vm168, %v242, 0
    %v266 = vsel %vm168, %v243, 0
    %v269 = vsel %vm168, %v244, 0
    %v272 = vsel %vm168, %v245, 0
    %v275 = vsel %vm168, %v246, 0
    %v278 = vsel %vm168, %v247, 0
    %v281 = vsel %vm168, %v248, 0
    %v284 = vsel %vm168, %v249, 0
    %v287 = vsel %vm168, %v250, 0
    %v290 = vsel %vm168, %v251, 0
    %v293 = vsel %vm168, %v252, 0
    %v296 = vsel %vm168, %v253, 0
    %v299 = vsel %vm168, %v254, 0
    %v302 = vsel %vm168, %v255, 0
    %304 = vmatprep.subr.mxu0 0.0
    %305 = vmatpush1.msra.mxu0 %v236
    %306 = vmatprep.subr.mxu0 0.0
    %307 = vmatpush1.msra.mxu0 %v237
    %308 = vmatprep.subr.mxu0 0.0
    %309 = vmatpush1.msra.mxu0 %v238
    %310 = vmatprep.subr.mxu0 0.0
    %311 = vmatpush1.msra.mxu0 %v239
    %312 = vmatprep.subr.mxu0 0.0
    %313 = vmatpush1.msra.mxu0 0.0
    %314 = vmatprep.subr.mxu0 0.0
    %315 = vmatpush1.msra.mxu0 0.0
    %316 = vmatprep.subr.mxu0 0.0
    %317 = vmatpush1.msra.mxu0 0.0
    %318 = vmatprep.subr.mxu0 0.0
    %319 = vmatpush1.msra.mxu0 0.0
    %320 = vmatprep.subr.mxu0 0.0
    %321 = vmatpush1.msra.mxu0 0.0
    %322 = vmatprep.subr.mxu0 0.0
    %323 = vmatpush1.msra.mxu0 0.0
    %324 = vmatprep.subr.mxu0 0.0
    %325 = vmatpush1.msra.mxu0 0.0
    %326 = vmatprep.subr.mxu0 0.0
    %327 = vmatpush1.msra.mxu0 0.0
    %328 = vmatprep.subr.mxu0 0.0
    %329 = vmatpush1.msra.mxu0 0.0
    %330 = vmatprep.subr.mxu0 0.0
    %331 = vmatpush1.msra.mxu0 0.0
    %332 = vmatprep.subr.mxu0 0.0
    %333 = vmatpush1.msra.mxu0 0.0
    %334 = vmatprep.subr.mxu0 0.0
    %335 = vmatpush1.msra.mxu0 0.0
    %336 = vmatprep.subr.mxu0 0.0
    %337 = vmatpush1.msra.mxu0 0.0
    %338 = vmatprep.subr.mxu0 0.0
    %339 = vmatpush1.msra.mxu0 0.0
    %340 = vmatprep.subr.mxu0 0.0
    %341 = vmatpush1.msra.mxu0 0.0
    %342 = vmatprep.subr.mxu0 0.0
    %343 = vmatpush1.msra.mxu0 0.0
    %344 = vmatprep.subr.mxu0 0.0
    %345 = vmatpush1.msra.mxu0 0.0
    %346 = vmatprep.subr.mxu0 0.0
    %347 = vmatpush1.msra.mxu0 0.0
    %348 = vmatprep.subr.mxu0 0.0
    %349 = vmatpush1.msra.mxu0 0.0
    %350 = vmatprep.subr.mxu0 0.0
    %351 = vmatpush1.msra.mxu0 0.0
    %352 = vmatprep.subr.mxu0 0.0
    %353 = vmatpush1.msra.mxu0 0.0
    %354 = vmatprep.subr.mxu0 0.0
    %355 = vmatpush1.msra.mxu0 0.0
    %356 = vmatprep.subr.mxu0 0.0
    %357 = vmatpush1.msra.mxu0 0.0
    %358 = vmatprep.subr.mxu0 0.0
    %359 = vmatpush1.msra.mxu0 0.0
    %360 = vmatprep.subr.mxu0 0.0
    %361 = vmatpush1.msra.mxu0 0.0
    %362 = vmatprep.subr.mxu0 0.0
    %363 = vmatpush1.msra.mxu0 0.0
    %364 = vmatprep.subr.mxu0 0.0
    %365 = vmatpush1.msra.mxu0 0.0
    %366 = vmatprep.subr.mxu0 0.0
    %367 = vmatpush1.msra.mxu0 0.0
    %368 = vmatprep.mubr.f32.mxu0 0.0
    %369 = vmatmul.mubr.f32.gmra.mrb[0].mxu0 %v257
    %v370 = vpop.f32.mrb[0].mxu0
    %v371 = vadd.f32 0.0, %v370
    %v372 = vpop.f32.mrb[0].mxu0
    %373 = vmatprep.mubr.f32.mxu0 0.0
    %374 = vmatmul.mubr.f32.gmra.mrb[0].mxu0 %v260
    %v375 = vpop.f32.mrb[0].mxu0
    %v376 = vadd.f32 0.0, %v375
    %v377 = vpop.f32.mrb[0].mxu0
    %378 = vmatprep.mubr.f32.mxu0 0.0
    %379 = vmatmul.mubr.f32.gmra.mrb[0].mxu0 %v263
    %v380 = vpop.f32.mrb[0].mxu0
    %v381 = vadd.f32 0.0, %v380
    %v382 = vpop.f32.mrb[0].mxu0
    %383 = vmatprep.mubr.f32.mxu0 0.0
    %384 = vmatmul.mubr.f32.gmra.mrb[0].mxu0 %v266
    %v385 = vpop.f32.mrb[0].mxu0
    %v386 = vadd.f32 0.0, %v385
    %v387 = vpop.f32.mrb[0].mxu0
    %388 = vmatprep.mubr.f32.mxu0 0.0
    %389 = vmatmul.mubr.f32.gmra.mrb[0].mxu0 %v269
    %v390 = vpop.f32.mrb[0].mxu0
    %v391 = vadd.f32 0.0, %v390
    %v392 = vpop.f32.mrb[0].mxu0
    %393 = vmatprep.mubr.f32.mxu0 0.0
    %394 = vmatmul.mubr.f32.gmra.mrb[0].mxu0 %v272
    %v395 = vpop.f32.mrb[0].mxu0
    %v396 = vadd.f32 0.0, %v395
    %v397 = vpop.f32.mrb[0].mxu0
    %398 = vmatprep.mubr.f32.mxu0 0.0
    %399 = vmatmul.mubr.f32.gmra.mrb[0].mxu0 %v275
    %v400 = vpop.f32.mrb[0].mxu0
    %v401 = vadd.f32 0.0, %v400
    %v402 = vpop.f32.mrb[0].mxu0
    %403 = vmatprep.mubr.f32.mxu0 0.0
    %404 = vmatmul.mubr.f32.gmra.mrb[0].mxu0 %v278
    %v405 = vpop.f32.mrb[0].mxu0
    %v406 = vadd.f32 0.0, %v405
    %v407 = vpop.f32.mrb[0].mxu0
    %408 = vmatprep.mubr.f32.mxu0 0.0
    %409 = vmatmul.mubr.f32.gmra.mrb[0].mxu0 %v281
    %v410 = vpop.f32.mrb[0].mxu0
    %v411 = vadd.f32 0.0, %v410
    %v412 = vpop.f32.mrb[0].mxu0
    %413 = vmatprep.mubr.f32.mxu0 0.0
    %414 = vmatmul.mubr.f32.gmra.mrb[0].mxu0 %v284
    %v415 = vpop.f32.mrb[0].mxu0
    %v416 = vadd.f32 0.0, %v415
    %v417 = vpop.f32.mrb[0].mxu0
    %418 = vmatprep.mubr.f32.mxu0 0.0
    %419 = vmatmul.mubr.f32.gmra.mrb[0].mxu0 %v287
    %v420 = vpop.f32.mrb[0].mxu0
    %v421 = vadd.f32 0.0, %v420
    %v422 = vpop.f32.mrb[0].mxu0
    %423 = vmatprep.mubr.f32.mxu0 0.0
    %424 = vmatmul.mubr.f32.gmra.mrb[0].mxu0 %v290
    %v425 = vpop.f32.mrb[0].mxu0
    %v426 = vadd.f32 0.0, %v425
    %v427 = vpop.f32.mrb[0].mxu0
    %428 = vmatprep.mubr.f32.mxu0 0.0
    %429 = vmatmul.mubr.f32.gmra.mrb[0].mxu0 %v293
    %v430 = vpop.f32.mrb[0].mxu0
    %v431 = vadd.f32 0.0, %v430
    %v432 = vpop.f32.mrb[0].mxu0
    %433 = vmatprep.mubr.f32.mxu0 0.0
    %434 = vmatmul.mubr.f32.gmra.mrb[0].mxu0 %v296
    %v435 = vpop.f32.mrb[0].mxu0
    %v436 = vadd.f32 0.0, %v435
    %v437 = vpop.f32.mrb[0].mxu0
    %438 = vmatprep.mubr.f32.mxu0 0.0
    %439 = vmatmul.mubr.f32.gmra.mrb[0].mxu0 %v299
    %v440 = vpop.f32.mrb[0].mxu0
    %v441 = vadd.f32 0.0, %v440
    %v442 = vpop.f32.mrb[0].mxu0
    %443 = vmatprep.mubr.f32.mxu0 0.0
    %444 = vmatmul.mubr.f32.gmra.mrb[0].mxu0 %v302
    %v445 = vpop.f32.mrb[0].mxu0
    %v446 = vadd.f32 0.0, %v445
    %v447 = vpop.f32.mrb[0].mxu0
    %448 = vdwg.mxu0
    %v449 = vld [vmem:[#allocation2 + $0x260] sm:$0xff]
    %v450 = vld [vmem:[#allocation2 + $0x268] sm:$0xff]
    %v451 = vld [vmem:[#allocation2 + $0x270] sm:$0xff]
    %v452 = vld [vmem:[#allocation2 + $0x278] sm:$0xff]
    %v453 = vld [vmem:[#allocation2 + $0x280] sm:$0x1]
    %v454 = vlaneseq
    %v455 = vshrl.u32 %v454, 7
    %v456 = vsub.s32 0, %v455
    %v457 = vrot.slane %v453, %v456
    %v459 = vsel %vm168, %v371, 0
    %v462 = vsel %vm168, %v376, 0
    %v465 = vsel %vm168, %v381, 0
    %v468 = vsel %vm168, %v386, 0
    %v471 = vsel %vm168, %v391, 0
    %v474 = vsel %vm168, %v396, 0
    %v477 = vsel %vm168, %v401, 0
    %v480 = vsel %vm168, %v406, 0
    %v483 = vsel %vm168, %v411, 0
    %v486 = vsel %vm168, %v416, 0
    %v489 = vsel %vm168, %v421, 0
    %v492 = vsel %vm168, %v426, 0
    %v495 = vsel %vm168, %v431, 0
    %v498 = vsel %vm168, %v436, 0
    %v501 = vsel %vm168, %v441, 0
    %v504 = vsel %vm168, %v446, 0
    %506 = vmatprep.subr.mxu0 0.0
    %507 = vmatpush1.msra.mxu0 %v449
    %508 = vmatprep.subr.mxu0 0.0
    %509 = vmatpush1.msra.mxu0 %v450
    %510 = vmatprep.subr.mxu0 0.0
    %511 = vmatpush1.msra.mxu0 %v451
    %512 = vmatprep.subr.mxu0 0.0
    %513 = vmatpush1.msra.mxu0 %v452
    %514 = vmatprep.subr.mxu0 0.0
    %515 = vmatpush1.msra.mxu0 0.0
    %516 = vmatprep.subr.mxu0 0.0
    %517 = vmatpush1.msra.mxu0 0.0
    %518 = vmatprep.subr.mxu0 0.0
    %519 = vmatpush1.msra.mxu0 0.0
    %520 = vmatprep.subr.mxu0 0.0
    %521 = vmatpush1.msra.mxu0 0.0
    %522 = vmatprep.subr.mxu0 0.0
    %523 = vmatpush1.msra.mxu0 0.0
    %524 = vmatprep.subr.mxu0 0.0
    %525 = vmatpush1.msra.mxu0 0.0
    %526 = vmatprep.subr.mxu0 0.0
    %527 = vmatpush1.msra.mxu0 0.0
    %528 = vmatprep.subr.mxu0 0.0
    %529 = vmatpush1.msra.mxu0 0.0
    %530 = vmatprep.subr.mxu0 0.0
    %531 = vmatpush1.msra.mxu0 0.0
    %532 = vmatprep.subr.mxu0 0.0
    %533 = vmatpush1.msra.mxu0 0.0
    %534 = vmatprep.subr.mxu0 0.0
    %535 = vmatpush1.msra.mxu0 0.0
    %536 = vmatprep.subr.mxu0 0.0
    %537 = vmatpush1.msra.mxu0 0.0
    %538 = vmatprep.subr.mxu0 0.0
    %539 = vmatpush1.msra.mxu0 0.0
    %540 = vmatprep.subr.mxu0 0.0
    %541 = vmatpush1.msra.mxu0 0.0
    %542 = vmatprep.subr.mxu0 0.0
    %543 = vmatpush1.msra.mxu0 0.0
    %544 = vmatprep.subr.mxu0 0.0
    %545 = vmatpush1.msra.mxu0 0.0
    %546 = vmatprep.subr.mxu0 0.0
    %547 = vmatpush1.msra.mxu0 0.0
    %548 = vmatprep.subr.mxu0 0.0
    %549 = vmatpush1.msra.mxu0 0.0
    %550 = vmatprep.subr.mxu0 0.0
    %551 = vmatpush1.msra.mxu0 0.0
    %552 = vmatprep.subr.mxu0 0.0
    %553 = vmatpush1.msra.mxu0 0.0
    %554 = vmatprep.subr.mxu0 0.0
    %555 = vmatpush1.msra.mxu0 0.0
    %556 = vmatprep.subr.mxu0 0.0
    %557 = vmatpush1.msra.mxu0 0.0
    %558 = vmatprep.subr.mxu0 0.0
    %559 = vmatpush1.msra.mxu0 0.0
    %560 = vmatprep.subr.mxu0 0.0
    %561 = vmatpush1.msra.mxu0 0.0
    %562 = vmatprep.subr.mxu0 0.0
    %563 = vmatpush1.msra.mxu0 0.0
    %564 = vmatprep.subr.mxu0 0.0
    %565 = vmatpush1.msra.mxu0 0.0
    %566 = vmatprep.subr.mxu0 0.0
    %567 = vmatpush1.msra.mxu0 0.0
    %568 = vmatprep.subr.mxu0 0.0
    %569 = vmatpush1.msra.mxu0 0.0
    %570 = vmatprep.mubr.f32.mxu0 0.0
    %571 = vmatmul.mubr.f32.gmra.mrb[0].mxu0 %v459
    %v572 = vpop.f32.mrb[0].mxu0
    %v573 = vadd.f32 %v457, %v572
    %v574 = vpop.f32.mrb[0].mxu0
    %575 = vmatprep.mubr.f32.mxu0 0.0
    %576 = vmatmul.mubr.f32.gmra.mrb[0].mxu0 %v462
    %v577 = vpop.f32.mrb[0].mxu0
    %v578 = vadd.f32 %v457, %v577
    %v579 = vpop.f32.mrb[0].mxu0
    %580 = vmatprep.mubr.f32.mxu0 0.0
    %581 = vmatmul.mubr.f32.gmra.mrb[0].mxu0 %v465
    %v582 = vpop.f32.mrb[0].mxu0
    %v583 = vadd.f32 %v457, %v582
    %v584 = vpop.f32.mrb[0].mxu0
    %585 = vmatprep.mubr.f32.mxu0 0.0
    %586 = vmatmul.mubr.f32.gmra.mrb[0].mxu0 %v468
    %v587 = vpop.f32.mrb[0].mxu0
    %v588 = vadd.f32 %v457, %v587
    %v589 = vpop.f32.mrb[0].mxu0
    %590 = vmatprep.mubr.f32.mxu0 0.0
    %591 = vmatmul.mubr.f32.gmra.mrb[0].mxu0 %v471
    %v592 = vpop.f32.mrb[0].mxu0
    %v593 = vadd.f32 %v457, %v592
    %v594 = vpop.f32.mrb[0].mxu0
    %595 = vmatprep.mubr.f32.mxu0 0.0
    %596 = vmatmul.mubr.f32.gmra.mrb[0].mxu0 %v474
    %v597 = vpop.f32.mrb[0].mxu0
    %v598 = vadd.f32 %v457, %v597
    %v599 = vpop.f32.mrb[0].mxu0
    %600 = vmatprep.mubr.f32.mxu0 0.0
    %601 = vmatmul.mubr.f32.gmra.mrb[0].mxu0 %v477
    %v602 = vpop.f32.mrb[0].mxu0
    %v603 = vadd.f32 %v457, %v602
    %v604 = vpop.f32.mrb[0].mxu0
    %605 = vmatprep.mubr.f32.mxu0 0.0
    %606 = vmatmul.mubr.f32.gmra.mrb[0].mxu0 %v480
    %v607 = vpop.f32.mrb[0].mxu0
    %v608 = vadd.f32 %v457, %v607
    %v609 = vpop.f32.mrb[0].mxu0
    %610 = vmatprep.mubr.f32.mxu0 0.0
    %611 = vmatmul.mubr.f32.gmra.mrb[0].mxu0 %v483
    %v612 = vpop.f32.mrb[0].mxu0
    %v613 = vadd.f32 %v457, %v612
    %v614 = vpop.f32.mrb[0].mxu0
    %615 = vmatprep.mubr.f32.mxu0 0.0
    %616 = vmatmul.mubr.f32.gmra.mrb[0].mxu0 %v486
    %v617 = vpop.f32.mrb[0].mxu0
    %v618 = vadd.f32 %v457, %v617
    %v619 = vpop.f32.mrb[0].mxu0
    %620 = vmatprep.mubr.f32.mxu0 0.0
    %621 = vmatmul.mubr.f32.gmra.mrb[0].mxu0 %v489
    %v622 = vpop.f32.mrb[0].mxu0
    %v623 = vadd.f32 %v457, %v622
    %v624 = vpop.f32.mrb[0].mxu0
    %625 = vmatprep.mubr.f32.mxu0 0.0
    %626 = vmatmul.mubr.f32.gmra.mrb[0].mxu0 %v492
    %v627 = vpop.f32.mrb[0].mxu0
    %v628 = vadd.f32 %v457, %v627
    %v629 = vpop.f32.mrb[0].mxu0
    %630 = vmatprep.mubr.f32.mxu0 0.0
    %631 = vmatmul.mubr.f32.gmra.mrb[0].mxu0 %v495
    %v632 = vpop.f32.mrb[0].mxu0
    %v633 = vadd.f32 %v457, %v632
    %v634 = vpop.f32.mrb[0].mxu0
    %635 = vmatprep.mubr.f32.mxu0 0.0
    %636 = vmatmul.mubr.f32.gmra.mrb[0].mxu0 %v498
    %v637 = vpop.f32.mrb[0].mxu0
    %v638 = vadd.f32 %v457, %v637
    %v639 = vpop.f32.mrb[0].mxu0
    %640 = vmatprep.mubr.f32.mxu0 0.0
    %641 = vmatmul.mubr.f32.gmra.mrb[0].mxu0 %v501
    %v642 = vpop.f32.mrb[0].mxu0
    %v643 = vadd.f32 %v457, %v642
    %v644 = vpop.f32.mrb[0].mxu0
    %645 = vmatprep.mubr.f32.mxu0 0.0
    %646 = vmatmul.mubr.f32.gmra.mrb[0].mxu0 %v504
    %v647 = vpop.f32.mrb[0].mxu0
    %v648 = vadd.f32 %v457, %v647
    %v649 = vpop.f32.mrb[0].mxu0
    %650 = vdwg.mxu0
    %v651 = vld [vmem:[#allocation2 + $0x160] sm:$0xff]
    %v652 = vld [vmem:[#allocation2 + $0x168] sm:$0xff]
    %v653 = vld [vmem:[#allocation2 + $0x170] sm:$0xff]
    %v654 = vld [vmem:[#allocation2 + $0x178] sm:$0xff]
    %v655 = vld [vmem:[#allocation2 + $0x180] sm:$0xff]
    %v656 = vld [vmem:[#allocation2 + $0x188] sm:$0xff]
    %v657 = vld [vmem:[#allocation2 + $0x190] sm:$0xff]
    %v658 = vld [vmem:[#allocation2 + $0x198] sm:$0xff]
    %v659 = vld [vmem:[#allocation2 + $0x1a0] sm:$0xff]
    %v660 = vld [vmem:[#allocation2 + $0x1a8] sm:$0xff]
    %v661 = vld [vmem:[#allocation2 + $0x1b0] sm:$0xff]
    %v662 = vld [vmem:[#allocation2 + $0x1b8] sm:$0xff]
    %v663 = vld [vmem:[#allocation2 + $0x1c0] sm:$0xff]
    %v664 = vld [vmem:[#allocation2 + $0x1c8] sm:$0xff]
    %v665 = vld [vmem:[#allocation2 + $0x1d0] sm:$0xff]
    %v666 = vld [vmem:[#allocation2 + $0x1d8] sm:$0xff]
    %v667 = vmul.f32 %v573, %v651
    %v668 = vmul.f32 %v578, %v652
    %v669 = vmul.f32 %v583, %v653
    %v670 = vmul.f32 %v588, %v654
    %v671 = vmul.f32 %v593, %v655
    %v672 = vmul.f32 %v598, %v656
    %v673 = vmul.f32 %v603, %v657
    %v674 = vmul.f32 %v608, %v658
    %v675 = vmul.f32 %v613, %v659
    %v676 = vmul.f32 %v618, %v660
    %v677 = vmul.f32 %v623, %v661
    %v678 = vmul.f32 %v628, %v662
    %v679 = vmul.f32 %v633, %v663
    %v680 = vmul.f32 %v638, %v664
    %v681 = vmul.f32 %v643, %v665
    %v682 = vmul.f32 %v648, %v666
    %v683 = vld [vmem:[#allocation2 + $0x288] sm:$0xff]
    %v684 = vld [vmem:[#allocation2 + $0x290] sm:$0xff]
    %v685 = vld [vmem:[#allocation2 + $0x298] sm:$0xff]
    %v686 = vld [vmem:[#allocation2 + $0x2a0] sm:$0xff]
    %v687 = vld [vmem:[#allocation2 + $0x2a8] sm:$0x1]
    %v688 = vlaneseq
    %v689 = vshrl.u32 %v688, 7
    %v690 = vsub.s32 0, %v689
    %v691 = vrot.slane %v687, %v690
    %692 = vmatprep.subr.mxu0 0.0
    %693 = vmatpush1.msra.mxu0 %v683
    %694 = vmatprep.subr.mxu0 0.0
    %695 = vmatpush1.msra.mxu0 %v684
    %696 = vmatprep.subr.mxu0 0.0
    %697 = vmatpush1.msra.mxu0 %v685
    %698 = vmatprep.subr.mxu0 0.0
    %699 = vmatpush1.msra.mxu0 %v686
    %700 = vmatprep.subr.mxu0 0.0
    %701 = vmatpush1.msra.mxu0 0.0
    %702 = vmatprep.subr.mxu0 0.0
    %703 = vmatpush1.msra.mxu0 0.0
    %704 = vmatprep.subr.mxu0 0.0
    %705 = vmatpush1.msra.mxu0 0.0
    %706 = vmatprep.subr.mxu0 0.0
    %707 = vmatpush1.msra.mxu0 0.0
    %708 = vmatprep.subr.mxu0 0.0
    %709 = vmatpush1.msra.mxu0 0.0
    %710 = vmatprep.subr.mxu0 0.0
    %711 = vmatpush1.msra.mxu0 0.0
    %712 = vmatprep.subr.mxu0 0.0
    %713 = vmatpush1.msra.mxu0 0.0
    %714 = vmatprep.subr.mxu0 0.0
    %715 = vmatpush1.msra.mxu0 0.0
    %716 = vmatprep.subr.mxu0 0.0
    %717 = vmatpush1.msra.mxu0 0.0
    %718 = vmatprep.subr.mxu0 0.0
    %719 = vmatpush1.msra.mxu0 0.0
    %720 = vmatprep.subr.mxu0 0.0
    %721 = vmatpush1.msra.mxu0 0.0
    %722 = vmatprep.subr.mxu0 0.0
    %723 = vmatpush1.msra.mxu0 0.0
    %724 = vmatprep.subr.mxu0 0.0
    %725 = vmatpush1.msra.mxu0 0.0
    %726 = vmatprep.subr.mxu0 0.0
    %727 = vmatpush1.msra.mxu0 0.0
    %728 = vmatprep.subr.mxu0 0.0
    %729 = vmatpush1.msra.mxu0 0.0
    %730 = vmatprep.subr.mxu0 0.0
    %731 = vmatpush1.msra.mxu0 0.0
    %732 = vmatprep.subr.mxu0 0.0
    %733 = vmatpush1.msra.mxu0 0.0
    %734 = vmatprep.subr.mxu0 0.0
    %735 = vmatpush1.msra.mxu0 0.0
    %736 = vmatprep.subr.mxu0 0.0
    %737 = vmatpush1.msra.mxu0 0.0
    %738 = vmatprep.subr.mxu0 0.0
    %739 = vmatpush1.msra.mxu0 0.0
    %740 = vmatprep.subr.mxu0 0.0
    %741 = vmatpush1.msra.mxu0 0.0
    %742 = vmatprep.subr.mxu0 0.0
    %743 = vmatpush1.msra.mxu0 0.0
    %744 = vmatprep.subr.mxu0 0.0
    %745 = vmatpush1.msra.mxu0 0.0
    %746 = vmatprep.subr.mxu0 0.0
    %747 = vmatpush1.msra.mxu0 0.0
    %748 = vmatprep.subr.mxu0 0.0
    %749 = vmatpush1.msra.mxu0 0.0
    %750 = vmatprep.subr.mxu0 0.0
    %751 = vmatpush1.msra.mxu0 0.0
    %752 = vmatprep.subr.mxu0 0.0
    %753 = vmatpush1.msra.mxu0 0.0
    %754 = vmatprep.subr.mxu0 0.0
    %755 = vmatpush1.msra.mxu0 0.0
    %756 = vmatprep.mubr.f32.mxu0 0.0
    %757 = vmatmul.mubr.f32.gmra.mrb[0].mxu0 %v459
    %v758 = vpop.f32.mrb[0].mxu0
    %v759 = vadd.f32 %v691, %v758
    %v760 = vpop.f32.mrb[0].mxu0
    %761 = vmatprep.mubr.f32.mxu0 0.0
    %762 = vmatmul.mubr.f32.gmra.mrb[0].mxu0 %v462
    %v763 = vpop.f32.mrb[0].mxu0
    %v764 = vadd.f32 %v691, %v763
    %v765 = vpop.f32.mrb[0].mxu0
    %766 = vmatprep.mubr.f32.mxu0 0.0
    %767 = vmatmul.mubr.f32.gmra.mrb[0].mxu0 %v465
    %v768 = vpop.f32.mrb[0].mxu0
    %v769 = vadd.f32 %v691, %v768
    %v770 = vpop.f32.mrb[0].mxu0
    %771 = vmatprep.mubr.f32.mxu0 0.0
    %772 = vmatmul.mubr.f32.gmra.mrb[0].mxu0 %v468
    %v773 = vpop.f32.mrb[0].mxu0
    %v774 = vadd.f32 %v691, %v773
    %v775 = vpop.f32.mrb[0].mxu0
    %776 = vmatprep.mubr.f32.mxu0 0.0
    %777 = vmatmul.mubr.f32.gmra.mrb[0].mxu0 %v471
    %v778 = vpop.f32.mrb[0].mxu0
    %v779 = vadd.f32 %v691, %v778
    %v780 = vpop.f32.mrb[0].mxu0
    %781 = vmatprep.mubr.f32.mxu0 0.0
    %782 = vmatmul.mubr.f32.gmra.mrb[0].mxu0 %v474
    %v783 = vpop.f32.mrb[0].mxu0
    %v784 = vadd.f32 %v691, %v783
    %v785 = vpop.f32.mrb[0].mxu0
    %786 = vmatprep.mubr.f32.mxu0 0.0
    %787 = vmatmul.mubr.f32.gmra.mrb[0].mxu0 %v477
    %v788 = vpop.f32.mrb[0].mxu0
    %v789 = vadd.f32 %v691, %v788
    %v790 = vpop.f32.mrb[0].mxu0
    %791 = vmatprep.mubr.f32.mxu0 0.0
    %792 = vmatmul.mubr.f32.gmra.mrb[0].mxu0 %v480
    %v793 = vpop.f32.mrb[0].mxu0
    %v794 = vadd.f32 %v691, %v793
    %v795 = vpop.f32.mrb[0].mxu0
    %796 = vmatprep.mubr.f32.mxu0 0.0
    %797 = vmatmul.mubr.f32.gmra.mrb[0].mxu0 %v483
    %v798 = vpop.f32.mrb[0].mxu0
    %v799 = vadd.f32 %v691, %v798
    %v800 = vpop.f32.mrb[0].mxu0
    %801 = vmatprep.mubr.f32.mxu0 0.0
    %802 = vmatmul.mubr.f32.gmra.mrb[0].mxu0 %v486
    %v803 = vpop.f32.mrb[0].mxu0
    %v804 = vadd.f32 %v691, %v803
    %v805 = vpop.f32.mrb[0].mxu0
    %806 = vmatprep.mubr.f32.mxu0 0.0
    %807 = vmatmul.mubr.f32.gmra.mrb[0].mxu0 %v489
    %v808 = vpop.f32.mrb[0].mxu0
    %v809 = vadd.f32 %v691, %v808
    %v810 = vpop.f32.mrb[0].mxu0
    %811 = vmatprep.mubr.f32.mxu0 0.0
    %812 = vmatmul.mubr.f32.gmra.mrb[0].mxu0 %v492
    %v813 = vpop.f32.mrb[0].mxu0
    %v814 = vadd.f32 %v691, %v813
    %v815 = vpop.f32.mrb[0].mxu0
    %816 = vmatprep.mubr.f32.mxu0 0.0
    %817 = vmatmul.mubr.f32.gmra.mrb[0].mxu0 %v495
    %v818 = vpop.f32.mrb[0].mxu0
    %v819 = vadd.f32 %v691, %v818
    %v820 = vpop.f32.mrb[0].mxu0
    %821 = vmatprep.mubr.f32.mxu0 0.0
    %822 = vmatmul.mubr.f32.gmra.mrb[0].mxu0 %v498
    %v823 = vpop.f32.mrb[0].mxu0
    %v824 = vadd.f32 %v691, %v823
    %v825 = vpop.f32.mrb[0].mxu0
    %826 = vmatprep.mubr.f32.mxu0 0.0
    %827 = vmatmul.mubr.f32.gmra.mrb[0].mxu0 %v501
    %v828 = vpop.f32.mrb[0].mxu0
    %v829 = vadd.f32 %v691, %v828
    %v830 = vpop.f32.mrb[0].mxu0
    %831 = vmatprep.mubr.f32.mxu0 0.0
    %832 = vmatmul.mubr.f32.gmra.mrb[0].mxu0 %v504
    %v833 = vpop.f32.mrb[0].mxu0
    %v834 = vadd.f32 %v691, %v833
    %v835 = vpop.f32.mrb[0].mxu0
    %836 = vdwg.mxu0
    %v837 = vmul.f32 %v759, %v651
    %v838 = vmul.f32 %v764, %v652
    %v839 = vmul.f32 %v769, %v653
    %v840 = vmul.f32 %v774, %v654
    %v841 = vmul.f32 %v779, %v655
    %v842 = vmul.f32 %v784, %v656
    %v843 = vmul.f32 %v789, %v657
    %v844 = vmul.f32 %v794, %v658
    %v845 = vmul.f32 %v799, %v659
    %v846 = vmul.f32 %v804, %v660
    %v847 = vmul.f32 %v809, %v661
    %v848 = vmul.f32 %v814, %v662
    %v849 = vmul.f32 %v819, %v663
    %v850 = vmul.f32 %v824, %v664
    %v851 = vmul.f32 %v829, %v665
    %v852 = vmul.f32 %v834, %v666
    %v853 = vld [vmem:[#allocation2 + $0x60] sm:$0xff]
    %v854 = vld [vmem:[#allocation2 + $0x68] sm:$0xff]
    %v855 = vld [vmem:[#allocation2 + $0x70] sm:$0xff]
    %v856 = vld [vmem:[#allocation2 + $0x78] sm:$0xff]
    %v857 = vld [vmem:[#allocation2 + $0x80] sm:$0xff]
    %v858 = vld [vmem:[#allocation2 + $0x88] sm:$0xff]
    %v859 = vld [vmem:[#allocation2 + $0x90] sm:$0xff]
    %v860 = vld [vmem:[#allocation2 + $0x98] sm:$0xff]
    %v861 = vld [vmem:[#allocation2 + $0xa0] sm:$0xff]
    %v862 = vld [vmem:[#allocation2 + $0xa8] sm:$0xff]
    %v863 = vld [vmem:[#allocation2 + $0xb0] sm:$0xff]
    %v864 = vld [vmem:[#allocation2 + $0xb8] sm:$0xff]
    %v865 = vld [vmem:[#allocation2 + $0xc0] sm:$0xff]
    %v866 = vld [vmem:[#allocation2 + $0xc8] sm:$0xff]
    %v867 = vld [vmem:[#allocation2 + $0xd0] sm:$0xff]
    %v868 = vld [vmem:[#allocation2 + $0xd8] sm:$0xff]
    %v870 = vsel %vm168, %v667, 0
    %v873 = vsel %vm168, %v668, 0
    %v876 = vsel %vm168, %v669, 0
    %v879 = vsel %vm168, %v670, 0
    %v882 = vsel %vm168, %v671, 0
    %v885 = vsel %vm168, %v672, 0
    %v888 = vsel %vm168, %v673, 0
    %v891 = vsel %vm168, %v674, 0
    %v894 = vsel %vm168, %v675, 0
    %v897 = vsel %vm168, %v676, 0
    %v900 = vsel %vm168, %v677, 0
    %v903 = vsel %vm168, %v678, 0
    %v906 = vsel %vm168, %v679, 0
    %v909 = vsel %vm168, %v680, 0
    %v912 = vsel %vm168, %v681, 0
    %v915 = vsel %vm168, %v682, 0
    %v918 = vsel %vm168, %v837, 0
    %v921 = vsel %vm168, %v838, 0
    %v924 = vsel %vm168, %v839, 0
    %v927 = vsel %vm168, %v840, 0
    %v930 = vsel %vm168, %v841, 0
    %v933 = vsel %vm168, %v842, 0
    %v936 = vsel %vm168, %v843, 0
    %v939 = vsel %vm168, %v844, 0
    %v942 = vsel %vm168, %v845, 0
    %v945 = vsel %vm168, %v846, 0
    %v948 = vsel %vm168, %v847, 0
    %v951 = vsel %vm168, %v848, 0
    %v954 = vsel %vm168, %v849, 0
    %v957 = vsel %vm168, %v850, 0
    %v960 = vsel %vm168, %v851, 0
    %v963 = vsel %vm168, %v852, 0
    %965 = vmatprep.subr.mxu0 0.0
    %966 = vmatpush1.xpose.msra.mxu0 %v918
    %967 = vmatprep.subr.mxu0 0.0
    %968 = vmatpush1.xpose.msra.mxu0 %v921
    %969 = vmatprep.subr.mxu0 0.0
    %970 = vmatpush1.xpose.msra.mxu0 %v924
    %971 = vmatprep.subr.mxu0 0.0
    %972 = vmatpush1.xpose.msra.mxu0 %v927
    %973 = vmatprep.subr.mxu0 0.0
    %974 = vmatpush1.xpose.msra.mxu0 %v930
    %975 = vmatprep.subr.mxu0 0.0
    %976 = vmatpush1.xpose.msra.mxu0 %v933
    %977 = vmatprep.subr.mxu0 0.0
    %978 = vmatpush1.xpose.msra.mxu0 %v936
    %979 = vmatprep.subr.mxu0 0.0
    %980 = vmatpush1.xpose.msra.mxu0 %v939
    %981 = vmatprep.subr.mxu0 0.0
    %982 = vmatpush1.xpose.msra.mxu0 %v942
    %983 = vmatprep.subr.mxu0 0.0
    %984 = vmatpush1.xpose.msra.mxu0 %v945
    %985 = vmatprep.subr.mxu0 0.0
    %986 = vmatpush1.xpose.msra.mxu0 %v948
    %987 = vmatprep.subr.mxu0 0.0
    %988 = vmatpush1.xpose.msra.mxu0 %v951
    %989 = vmatprep.subr.mxu0 0.0
    %990 = vmatpush1.xpose.msra.mxu0 %v954
    %991 = vmatprep.subr.mxu0 0.0
    %992 = vmatpush1.xpose.msra.mxu0 %v957
    %993 = vmatprep.subr.mxu0 0.0
    %994 = vmatpush1.xpose.msra.mxu0 %v960
    %995 = vmatprep.subr.mxu0 0.0
    %996 = vmatpush1.xpose.msra.mxu0 %v963
    %997 = vmatprep.subr.mxu0 0.0
    %998 = vmatpush1.xpose.msra.mxu0 0.0
    %999 = vmatprep.subr.mxu0 0.0
    %1000 = vmatpush1.xpose.msra.mxu0 0.0
    %1001 = vmatprep.subr.mxu0 0.0
    %1002 = vmatpush1.xpose.msra.mxu0 0.0
    %1003 = vmatprep.subr.mxu0 0.0
    %1004 = vmatpush1.xpose.msra.mxu0 0.0
    %1005 = vmatprep.subr.mxu0 0.0
    %1006 = vmatpush1.xpose.msra.mxu0 0.0
    %1007 = vmatprep.subr.mxu0 0.0
    %1008 = vmatpush1.xpose.msra.mxu0 0.0
    %1009 = vmatprep.subr.mxu0 0.0
    %1010 = vmatpush1.xpose.msra.mxu0 0.0
    %1011 = vmatprep.subr.mxu0 0.0
    %1012 = vmatpush1.xpose.msra.mxu0 0.0
    %1013 = vmatprep.subr.mxu0 0.0
    %1014 = vmatpush1.xpose.msra.mxu0 0.0
    %1015 = vmatprep.subr.mxu0 0.0
    %1016 = vmatpush1.xpose.msra.mxu0 0.0
    %1017 = vmatprep.subr.mxu0 0.0
    %1018 = vmatpush1.xpose.msra.mxu0 0.0
    %1019 = vmatprep.subr.mxu0 0.0
    %1020 = vmatpush1.xpose.msra.mxu0 0.0
    %1021 = vmatprep.subr.mxu0 0.0
    %1022 = vmatpush1.xpose.msra.mxu0 0.0
    %1023 = vmatprep.subr.mxu0 0.0
    %1024 = vmatpush1.xpose.msra.mxu0 0.0
    %1025 = vmatprep.subr.mxu0 0.0
    %1026 = vmatpush1.xpose.msra.mxu0 0.0
    %1027 = vmatprep.subr.mxu0 0.0
    %1028 = vmatpush1.xpose.msra.mxu0 0.0
    %1029 = vmatprep.mubr.f32.mxu0 0.0
    %1030 = vmatmul.mubr.f32.gmra.mrb[0].mxu0 %v870
    %v1031 = vpop.f32.mrb[0].mxu0
    %v1032 = vadd.f32 %v853, %v1031
    %v1033 = vpop.f32.mrb[0].mxu0
    %1034 = vmatprep.mubr.f32.mxu0 0.0
    %1035 = vmatmul.mubr.f32.gmra.mrb[0].mxu0 %v873
    %v1036 = vpop.f32.mrb[0].mxu0
    %v1037 = vadd.f32 %v854, %v1036
    %v1038 = vpop.f32.mrb[0].mxu0
    %1039 = vmatprep.mubr.f32.mxu0 0.0
    %1040 = vmatmul.mubr.f32.gmra.mrb[0].mxu0 %v876
    %v1041 = vpop.f32.mrb[0].mxu0
    %v1042 = vadd.f32 %v855, %v1041
    %v1043 = vpop.f32.mrb[0].mxu0
    %1044 = vmatprep.mubr.f32.mxu0 0.0
    %1045 = vmatmul.mubr.f32.gmra.mrb[0].mxu0 %v879
    %v1046 = vpop.f32.mrb[0].mxu0
    %v1047 = vadd.f32 %v856, %v1046
    %v1048 = vpop.f32.mrb[0].mxu0
    %1049 = vmatprep.mubr.f32.mxu0 0.0
    %1050 = vmatmul.mubr.f32.gmra.mrb[0].mxu0 %v882
    %v1051 = vpop.f32.mrb[0].mxu0
    %v1052 = vadd.f32 %v857, %v1051
    %v1053 = vpop.f32.mrb[0].mxu0
    %1054 = vmatprep.mubr.f32.mxu0 0.0
    %1055 = vmatmul.mubr.f32.gmra.mrb[0].mxu0 %v885
    %v1056 = vpop.f32.mrb[0].mxu0
    %v1057 = vadd.f32 %v858, %v1056
    %v1058 = vpop.f32.mrb[0].mxu0
    %1059 = vmatprep.mubr.f32.mxu0 0.0
    %1060 = vmatmul.mubr.f32.gmra.mrb[0].mxu0 %v888
    %v1061 = vpop.f32.mrb[0].mxu0
    %v1062 = vadd.f32 %v859, %v1061
    %v1063 = vpop.f32.mrb[0].mxu0
    %1064 = vmatprep.mubr.f32.mxu0 0.0
    %1065 = vmatmul.mubr.f32.gmra.mrb[0].mxu0 %v891
    %v1066 = vpop.f32.mrb[0].mxu0
    %v1067 = vadd.f32 %v860, %v1066
    %v1068 = vpop.f32.mrb[0].mxu0
    %1069 = vmatprep.mubr.f32.mxu0 0.0
    %1070 = vmatmul.mubr.f32.gmra.mrb[0].mxu0 %v894
    %v1071 = vpop.f32.mrb[0].mxu0
    %v1072 = vadd.f32 %v861, %v1071
    %v1073 = vpop.f32.mrb[0].mxu0
    %1074 = vmatprep.mubr.f32.mxu0 0.0
    %1075 = vmatmul.mubr.f32.gmra.mrb[0].mxu0 %v897
    %v1076 = vpop.f32.mrb[0].mxu0
    %v1077 = vadd.f32 %v862, %v1076
    %v1078 = vpop.f32.mrb[0].mxu0
    %1079 = vmatprep.mubr.f32.mxu0 0.0
    %1080 = vmatmul.mubr.f32.gmra.mrb[0].mxu0 %v900
    %v1081 = vpop.f32.mrb[0].mxu0
    %v1082 = vadd.f32 %v863, %v1081
    %v1083 = vpop.f32.mrb[0].mxu0
    %1084 = vmatprep.mubr.f32.mxu0 0.0
    %1085 = vmatmul.mubr.f32.gmra.mrb[0].mxu0 %v903
    %v1086 = vpop.f32.mrb[0].mxu0
    %v1087 = vadd.f32 %v864, %v1086
    %v1088 = vpop.f32.mrb[0].mxu0
    %1089 = vmatprep.mubr.f32.mxu0 0.0
    %1090 = vmatmul.mubr.f32.gmra.mrb[0].mxu0 %v906
    %v1091 = vpop.f32.mrb[0].mxu0
    %v1092 = vadd.f32 %v865, %v1091
    %v1093 = vpop.f32.mrb[0].mxu0
    %1094 = vmatprep.mubr.f32.mxu0 0.0
    %1095 = vmatmul.mubr.f32.gmra.mrb[0].mxu0 %v909
    %v1096 = vpop.f32.mrb[0].mxu0
    %v1097 = vadd.f32 %v866, %v1096
    %v1098 = vpop.f32.mrb[0].mxu0
    %1099 = vmatprep.mubr.f32.mxu0 0.0
    %1100 = vmatmul.mubr.f32.gmra.mrb[0].mxu0 %v912
    %v1101 = vpop.f32.mrb[0].mxu0
    %v1102 = vadd.f32 %v867, %v1101
    %v1103 = vpop.f32.mrb[0].mxu0
    %1104 = vmatprep.mubr.f32.mxu0 0.0
    %1105 = vmatmul.mubr.f32.gmra.mrb[0].mxu0 %v915
    %v1106 = vpop.f32.mrb[0].mxu0
    %v1107 = vadd.f32 %v868, %v1106
    %v1108 = vpop.f32.mrb[0].mxu0
    %1109 = vdwg.mxu0
    %1110 = vmax.xlane.f32.xlu0 %v1032
    %v1111 = vpop.xlane.xlu0 %1110
    %1112 = vmax.xlane.f32.xlu0 %v1037
    %v1113 = vpop.xlane.xlu0 %1112
    %1114 = vmax.xlane.f32.xlu0 %v1042
    %v1115 = vpop.xlane.xlu0 %1114
    %1116 = vmax.xlane.f32.xlu0 %v1047
    %v1117 = vpop.xlane.xlu0 %1116
    %1118 = vmax.xlane.f32.xlu0 %v1052
    %v1119 = vpop.xlane.xlu0 %1118
    %1120 = vmax.xlane.f32.xlu0 %v1057
    %v1121 = vpop.xlane.xlu0 %1120
    %1122 = vmax.xlane.f32.xlu0 %v1062
    %v1123 = vpop.xlane.xlu0 %1122
    %1124 = vmax.xlane.f32.xlu0 %v1067
    %v1125 = vpop.xlane.xlu0 %1124
    %1126 = vmax.xlane.f32.xlu0 %v1072
    %v1127 = vpop.xlane.xlu0 %1126
    %1128 = vmax.xlane.f32.xlu0 %v1077
    %v1129 = vpop.xlane.xlu0 %1128
    %1130 = vmax.xlane.f32.xlu0 %v1082
    %v1131 = vpop.xlane.xlu0 %1130
    %1132 = vmax.xlane.f32.xlu0 %v1087
    %v1133 = vpop.xlane.xlu0 %1132
    %1134 = vmax.xlane.f32.xlu0 %v1092
    %v1135 = vpop.xlane.xlu0 %1134
    %1136 = vmax.xlane.f32.xlu0 %v1097
    %v1137 = vpop.xlane.xlu0 %1136
    %1138 = vmax.xlane.f32.xlu0 %v1102
    %v1139 = vpop.xlane.xlu0 %1138
    %1140 = vmax.xlane.f32.xlu0 %v1107
    %v1141 = vpop.xlane.xlu0 %1140
    %v1142 = vsub.f32 %v1032, %v1111
    %v1143 = vsub.f32 %v1037, %v1113
    %v1144 = vsub.f32 %v1042, %v1115
    %v1145 = vsub.f32 %v1047, %v1117
    %v1146 = vsub.f32 %v1052, %v1119
    %v1147 = vsub.f32 %v1057, %v1121
    %v1148 = vsub.f32 %v1062, %v1123
    %v1149 = vsub.f32 %v1067, %v1125
    %v1150 = vsub.f32 %v1072, %v1127
    %v1151 = vsub.f32 %v1077, %v1129
    %v1152 = vsub.f32 %v1082, %v1131
    %v1153 = vsub.f32 %v1087, %v1133
    %v1154 = vsub.f32 %v1092, %v1135
    %v1155 = vsub.f32 %v1097, %v1137
    %v1156 = vsub.f32 %v1102, %v1139
    %v1157 = vsub.f32 %v1107, %v1141
    %v1158 = vmul.f32 %v1142, 1.442695
    %v1159 = vpow.pop %v1158
    %v1160 = vmul.f32 %v1143, 1.442695
    %v1161 = vpow.pop %v1160
    %v1162 = vmul.f32 %v1144, 1.442695
    %v1163 = vpow.pop %v1162
    %v1164 = vmul.f32 %v1145, 1.442695
    %v1165 = vpow.pop %v1164
    %v1166 = vmul.f32 %v1146, 1.442695
    %v1167 = vpow.pop %v1166
    %v1168 = vmul.f32 %v1147, 1.442695
    %v1169 = vpow.pop %v1168
    %v1170 = vmul.f32 %v1148, 1.442695
    %v1171 = vpow.pop %v1170
    %v1172 = vmul.f32 %v1149, 1.442695
    %v1173 = vpow.pop %v1172
    %v1174 = vmul.f32 %v1150, 1.442695
    %v1175 = vpow.pop %v1174
    %v1176 = vmul.f32 %v1151, 1.442695
    %v1177 = vpow.pop %v1176
    %v1178 = vmul.f32 %v1152, 1.442695
    %v1179 = vpow.pop %v1178
    %v1180 = vmul.f32 %v1153, 1.442695
    %v1181 = vpow.pop %v1180
    %v1182 = vmul.f32 %v1154, 1.442695
    %v1183 = vpow.pop %v1182
    %v1184 = vmul.f32 %v1155, 1.442695
    %v1185 = vpow.pop %v1184
    %v1186 = vmul.f32 %v1156, 1.442695
    %v1187 = vpow.pop %v1186
    %v1188 = vmul.f32 %v1157, 1.442695
    %v1189 = vpow.pop %v1188
    %1190 = vadd.xlane.f32.xlu0 %v1159
    %v1191 = vpop.xlane.xlu0 %1190
    %1192 = vadd.xlane.f32.xlu0 %v1161
    %v1193 = vpop.xlane.xlu0 %1192
    %1194 = vadd.xlane.f32.xlu0 %v1163
    %v1195 = vpop.xlane.xlu0 %1194
    %1196 = vadd.xlane.f32.xlu0 %v1165
    %v1197 = vpop.xlane.xlu0 %1196
    %1198 = vadd.xlane.f32.xlu0 %v1167
    %v1199 = vpop.xlane.xlu0 %1198
    %1200 = vadd.xlane.f32.xlu0 %v1169
    %v1201 = vpop.xlane.xlu0 %1200
    %1202 = vadd.xlane.f32.xlu0 %v1171
    %v1203 = vpop.xlane.xlu0 %1202
    %1204 = vadd.xlane.f32.xlu0 %v1173
    %v1205 = vpop.xlane.xlu0 %1204
    %1206 = vadd.xlane.f32.xlu0 %v1175
    %v1207 = vpop.xlane.xlu0 %1206
    %1208 = vadd.xlane.f32.xlu0 %v1177
    %v1209 = vpop.xlane.xlu0 %1208
    %1210 = vadd.xlane.f32.xlu0 %v1179
    %v1211 = vpop.xlane.xlu0 %1210
    %1212 = vadd.xlane.f32.xlu0 %v1181
    %v1213 = vpop.xlane.xlu0 %1212
    %1214 = vadd.xlane.f32.xlu0 %v1183
    %v1215 = vpop.xlane.xlu0 %1214
    %1216 = vadd.xlane.f32.xlu0 %v1185
    %v1217 = vpop.xlane.xlu0 %1216
    %1218 = vadd.xlane.f32.xlu0 %v1187
    %v1219 = vpop.xlane.xlu0 %1218
    %1220 = vadd.xlane.f32.xlu0 %v1189
    %v1221 = vpop.xlane.xlu0 %1220
    %v1222 = vrcp.pop %v1191
    %v1223 = vmul.f32 %v1159, %v1222
    %v1224 = vrcp.pop %v1193
    %v1225 = vmul.f32 %v1161, %v1224
    %v1226 = vrcp.pop %v1195
    %v1227 = vmul.f32 %v1163, %v1226
    %v1228 = vrcp.pop %v1197
    %v1229 = vmul.f32 %v1165, %v1228
    %v1230 = vrcp.pop %v1199
    %v1231 = vmul.f32 %v1167, %v1230
    %v1232 = vrcp.pop %v1201
    %v1233 = vmul.f32 %v1169, %v1232
    %v1234 = vrcp.pop %v1203
    %v1235 = vmul.f32 %v1171, %v1234
    %v1236 = vrcp.pop %v1205
    %v1237 = vmul.f32 %v1173, %v1236
    %v1238 = vrcp.pop %v1207
    %v1239 = vmul.f32 %v1175, %v1238
    %v1240 = vrcp.pop %v1209
    %v1241 = vmul.f32 %v1177, %v1240
    %v1242 = vrcp.pop %v1211
    %v1243 = vmul.f32 %v1179, %v1242
    %v1244 = vrcp.pop %v1213
    %v1245 = vmul.f32 %v1181, %v1244
    %v1246 = vrcp.pop %v1215
    %v1247 = vmul.f32 %v1183, %v1246
    %v1248 = vrcp.pop %v1217
    %v1249 = vmul.f32 %v1185, %v1248
    %v1250 = vrcp.pop %v1219
    %v1251 = vmul.f32 %v1187, %v1250
    %v1252 = vrcp.pop %v1221
    %v1253 = vmul.f32 %v1189, %v1252
    %v1254 = vld [vmem:[#allocation2 + $0x2b0] sm:$0xff]
    %v1255 = vld [vmem:[#allocation2 + $0x2b8] sm:$0xff]
    %v1256 = vld [vmem:[#allocation2 + $0x2c0] sm:$0xff]
    %v1257 = vld [vmem:[#allocation2 + $0x2c8] sm:$0xff]
    %v1258 = vld [vmem:[#allocation2 + $0x2d0] sm:$0x1]
    %v1259 = vlaneseq
    %v1260 = vshrl.u32 %v1259, 7
    %v1261 = vsub.s32 0, %v1260
    %v1262 = vrot.slane %v1258, %v1261
    %1263 = vmatprep.subr.mxu0 0.0
    %1264 = vmatpush1.msra.mxu0 %v1254
    %1265 = vmatprep.subr.mxu0 0.0
    %1266 = vmatpush1.msra.mxu0 %v1255
    %1267 = vmatprep.subr.mxu0 0.0
    %1268 = vmatpush1.msra.mxu0 %v1256
    %1269 = vmatprep.subr.mxu0 0.0
    %1270 = vmatpush1.msra.mxu0 %v1257
    %1271 = vmatprep.subr.mxu0 0.0
    %1272 = vmatpush1.msra.mxu0 0.0
    %1273 = vmatprep.subr.mxu0 0.0
    %1274 = vmatpush1.msra.mxu0 0.0
    %1275 = vmatprep.subr.mxu0 0.0
    %1276 = vmatpush1.msra.mxu0 0.0
    %1277 = vmatprep.subr.mxu0 0.0
    %1278 = vmatpush1.msra.mxu0 0.0
    %1279 = vmatprep.subr.mxu0 0.0
    %1280 = vmatpush1.msra.mxu0 0.0
    %1281 = vmatprep.subr.mxu0 0.0
    %1282 = vmatpush1.msra.mxu0 0.0
    %1283 = vmatprep.subr.mxu0 0.0
    %1284 = vmatpush1.msra.mxu0 0.0
    %1285 = vmatprep.subr.mxu0 0.0
    %1286 = vmatpush1.msra.mxu0 0.0
    %1287 = vmatprep.subr.mxu0 0.0
    %1288 = vmatpush1.msra.mxu0 0.0
    %1289 = vmatprep.subr.mxu0 0.0
    %1290 = vmatpush1.msra.mxu0 0.0
    %1291 = vmatprep.subr.mxu0 0.0
    %1292 = vmatpush1.msra.mxu0 0.0
    %1293 = vmatprep.subr.mxu0 0.0
    %1294 = vmatpush1.msra.mxu0 0.0
    %1295 = vmatprep.subr.mxu0 0.0
    %1296 = vmatpush1.msra.mxu0 0.0
    %1297 = vmatprep.subr.mxu0 0.0
    %1298 = vmatpush1.msra.mxu0 0.0
    %1299 = vmatprep.subr.mxu0 0.0
    %1300 = vmatpush1.msra.mxu0 0.0
    %1301 = vmatprep.subr.mxu0 0.0
    %1302 = vmatpush1.msra.mxu0 0.0
    %1303 = vmatprep.subr.mxu0 0.0
    %1304 = vmatpush1.msra.mxu0 0.0
    %1305 = vmatprep.subr.mxu0 0.0
    %1306 = vmatpush1.msra.mxu0 0.0
    %1307 = vmatprep.subr.mxu0 0.0
    %1308 = vmatpush1.msra.mxu0 0.0
    %1309 = vmatprep.subr.mxu0 0.0
    %1310 = vmatpush1.msra.mxu0 0.0
    %1311 = vmatprep.subr.mxu0 0.0
    %1312 = vmatpush1.msra.mxu0 0.0
    %1313 = vmatprep.subr.mxu0 0.0
    %1314 = vmatpush1.msra.mxu0 0.0
    %1315 = vmatprep.subr.mxu0 0.0
    %1316 = vmatpush1.msra.mxu0 0.0
    %1317 = vmatprep.subr.mxu0 0.0
    %1318 = vmatpush1.msra.mxu0 0.0
    %1319 = vmatprep.subr.mxu0 0.0
    %1320 = vmatpush1.msra.mxu0 0.0
    %1321 = vmatprep.subr.mxu0 0.0
    %1322 = vmatpush1.msra.mxu0 0.0
    %1323 = vmatprep.subr.mxu0 0.0
    %1324 = vmatpush1.msra.mxu0 0.0
    %1325 = vmatprep.subr.mxu0 0.0
    %1326 = vmatpush1.msra.mxu0 0.0
    %1327 = vmatprep.mubr.f32.mxu0 0.0
    %1328 = vmatmul.mubr.f32.gmra.mrb[0].mxu0 %v459
    %v1329 = vpop.f32.mrb[0].mxu0
    %v1330 = vadd.f32 %v1262, %v1329
    %v1331 = vpop.f32.mrb[0].mxu0
    %1332 = vmatprep.mubr.f32.mxu0 0.0
    %1333 = vmatmul.mubr.f32.gmra.mrb[0].mxu0 %v462
    %v1334 = vpop.f32.mrb[0].mxu0
    %v1335 = vadd.f32 %v1262, %v1334
    %v1336 = vpop.f32.mrb[0].mxu0
    %1337 = vmatprep.mubr.f32.mxu0 0.0
    %1338 = vmatmul.mubr.f32.gmra.mrb[0].mxu0 %v465
    %v1339 = vpop.f32.mrb[0].mxu0
    %v1340 = vadd.f32 %v1262, %v1339
    %v1341 = vpop.f32.mrb[0].mxu0
    %1342 = vmatprep.mubr.f32.mxu0 0.0
    %1343 = vmatmul.mubr.f32.gmra.mrb[0].mxu0 %v468
    %v1344 = vpop.f32.mrb[0].mxu0
    %v1345 = vadd.f32 %v1262, %v1344
    %v1346 = vpop.f32.mrb[0].mxu0
    %1347 = vmatprep.mubr.f32.mxu0 0.0
    %1348 = vmatmul.mubr.f32.gmra.mrb[0].mxu0 %v471
    %v1349 = vpop.f32.mrb[0].mxu0
    %v1350 = vadd.f32 %v1262, %v1349
    %v1351 = vpop.f32.mrb[0].mxu0
    %1352 = vmatprep.mubr.f32.mxu0 0.0
    %1353 = vmatmul.mubr.f32.gmra.mrb[0].mxu0 %v474
    %v1354 = vpop.f32.mrb[0].mxu0
    %v1355 = vadd.f32 %v1262, %v1354
    %v1356 = vpop.f32.mrb[0].mxu0
    %1357 = vmatprep.mubr.f32.mxu0 0.0
    %1358 = vmatmul.mubr.f32.gmra.mrb[0].mxu0 %v477
    %v1359 = vpop.f32.mrb[0].mxu0
    %v1360 = vadd.f32 %v1262, %v1359
    %v1361 = vpop.f32.mrb[0].mxu0
    %1362 = vmatprep.mubr.f32.mxu0 0.0
    %1363 = vmatmul.mubr.f32.gmra.mrb[0].mxu0 %v480
    %v1364 = vpop.f32.mrb[0].mxu0
    %v1365 = vadd.f32 %v1262, %v1364
    %v1366 = vpop.f32.mrb[0].mxu0
    %1367 = vmatprep.mubr.f32.mxu0 0.0
    %1368 = vmatmul.mubr.f32.gmra.mrb[0].mxu0 %v483
    %v1369 = vpop.f32.mrb[0].mxu0
    %v1370 = vadd.f32 %v1262, %v1369
    %v1371 = vpop.f32.mrb[0].mxu0
    %1372 = vmatprep.mubr.f32.mxu0 0.0
    %1373 = vmatmul.mubr.f32.gmra.mrb[0].mxu0 %v486
    %v1374 = vpop.f32.mrb[0].mxu0
    %v1375 = vadd.f32 %v1262, %v1374
    %v1376 = vpop.f32.mrb[0].mxu0
    %1377 = vmatprep.mubr.f32.mxu0 0.0
    %1378 = vmatmul.mubr.f32.gmra.mrb[0].mxu0 %v489
    %v1379 = vpop.f32.mrb[0].mxu0
    %v1380 = vadd.f32 %v1262, %v1379
    %v1381 = vpop.f32.mrb[0].mxu0
    %1382 = vmatprep.mubr.f32.mxu0 0.0
    %1383 = vmatmul.mubr.f32.gmra.mrb[0].mxu0 %v492
    %v1384 = vpop.f32.mrb[0].mxu0
    %v1385 = vadd.f32 %v1262, %v1384
    %v1386 = vpop.f32.mrb[0].mxu0
    %1387 = vmatprep.mubr.f32.mxu0 0.0
    %1388 = vmatmul.mubr.f32.gmra.mrb[0].mxu0 %v495
    %v1389 = vpop.f32.mrb[0].mxu0
    %v1390 = vadd.f32 %v1262, %v1389
    %v1391 = vpop.f32.mrb[0].mxu0
    %1392 = vmatprep.mubr.f32.mxu0 0.0
    %1393 = vmatmul.mubr.f32.gmra.mrb[0].mxu0 %v498
    %v1394 = vpop.f32.mrb[0].mxu0
    %v1395 = vadd.f32 %v1262, %v1394
    %v1396 = vpop.f32.mrb[0].mxu0
    %1397 = vmatprep.mubr.f32.mxu0 0.0
    %1398 = vmatmul.mubr.f32.gmra.mrb[0].mxu0 %v501
    %v1399 = vpop.f32.mrb[0].mxu0
    %v1400 = vadd.f32 %v1262, %v1399
    %v1401 = vpop.f32.mrb[0].mxu0
    %1402 = vmatprep.mubr.f32.mxu0 0.0
    %1403 = vmatmul.mubr.f32.gmra.mrb[0].mxu0 %v504
    %v1404 = vpop.f32.mrb[0].mxu0
    %v1405 = vadd.f32 %v1262, %v1404
    %v1406 = vpop.f32.mrb[0].mxu0
    %1407 = vdwg.mxu0
    %v1408 = vmul.f32 %v1330, %v651
    %v1409 = vmul.f32 %v1335, %v652
    %v1410 = vmul.f32 %v1340, %v653
    %v1411 = vmul.f32 %v1345, %v654
    %v1412 = vmul.f32 %v1350, %v655
    %v1413 = vmul.f32 %v1355, %v656
    %v1414 = vmul.f32 %v1360, %v657
    %v1415 = vmul.f32 %v1365, %v658
    %v1416 = vmul.f32 %v1370, %v659
    %v1417 = vmul.f32 %v1375, %v660
    %v1418 = vmul.f32 %v1380, %v661
    %v1419 = vmul.f32 %v1385, %v662
    %v1420 = vmul.f32 %v1390, %v663
    %v1421 = vmul.f32 %v1395, %v664
    %v1422 = vmul.f32 %v1400, %v665
    %v1423 = vmul.f32 %v1405, %v666
    %1424 = vmatprep.subr.mxu0 0.0
    %1425 = vmatpush1.msra.mxu0 %v1408
    %1426 = vmatprep.subr.mxu0 0.0
    %1427 = vmatpush1.msra.mxu0 %v1409
    %1428 = vmatprep.subr.mxu0 0.0
    %1429 = vmatpush1.msra.mxu0 %v1410
    %1430 = vmatprep.subr.mxu0 0.0
    %1431 = vmatpush1.msra.mxu0 %v1411
    %1432 = vmatprep.subr.mxu0 0.0
    %1433 = vmatpush1.msra.mxu0 %v1412
    %1434 = vmatprep.subr.mxu0 0.0
    %1435 = vmatpush1.msra.mxu0 %v1413
    %1436 = vmatprep.subr.mxu0 0.0
    %1437 = vmatpush1.msra.mxu0 %v1414
    %1438 = vmatprep.subr.mxu0 0.0
    %1439 = vmatpush1.msra.mxu0 %v1415
    %1440 = vmatprep.subr.mxu0 0.0
    %1441 = vmatpush1.msra.mxu0 %v1416
    %1442 = vmatprep.subr.mxu0 0.0
    %1443 = vmatpush1.msra.mxu0 %v1417
    %1444 = vmatprep.subr.mxu0 0.0
    %1445 = vmatpush1.msra.mxu0 %v1418
    %1446 = vmatprep.subr.mxu0 0.0
    %1447 = vmatpush1.msra.mxu0 %v1419
    %1448 = vmatprep.subr.mxu0 0.0
    %1449 = vmatpush1.msra.mxu0 %v1420
    %1450 = vmatprep.subr.mxu0 0.0
    %1451 = vmatpush1.msra.mxu0 %v1421
    %1452 = vmatprep.subr.mxu0 0.0
    %1453 = vmatpush1.msra.mxu0 %v1422
    %1454 = vmatprep.subr.mxu0 0.0
    %1455 = vmatpush1.msra.mxu0 %v1423
    %1456 = vmatprep.subr.mxu0 0.0
    %1457 = vmatpush1.msra.mxu0 0.0
    %1458 = vmatprep.subr.mxu0 0.0
    %1459 = vmatpush1.msra.mxu0 0.0
    %1460 = vmatprep.subr.mxu0 0.0
    %1461 = vmatpush1.msra.mxu0 0.0
    %1462 = vmatprep.subr.mxu0 0.0
    %1463 = vmatpush1.msra.mxu0 0.0
    %1464 = vmatprep.subr.mxu0 0.0
    %1465 = vmatpush1.msra.mxu0 0.0
    %1466 = vmatprep.subr.mxu0 0.0
    %1467 = vmatpush1.msra.mxu0 0.0
    %1468 = vmatprep.subr.mxu0 0.0
    %1469 = vmatpush1.msra.mxu0 0.0
    %1470 = vmatprep.subr.mxu0 0.0
    %1471 = vmatpush1.msra.mxu0 0.0
    %1472 = vmatprep.subr.mxu0 0.0
    %1473 = vmatpush1.msra.mxu0 0.0
    %1474 = vmatprep.subr.mxu0 0.0
    %1475 = vmatpush1.msra.mxu0 0.0
    %1476 = vmatprep.subr.mxu0 0.0
    %1477 = vmatpush1.msra.mxu0 0.0
    %1478 = vmatprep.subr.mxu0 0.0
    %1479 = vmatpush1.msra.mxu0 0.0
    %1480 = vmatprep.subr.mxu0 0.0
    %1481 = vmatpush1.msra.mxu0 0.0
    %1482 = vmatprep.subr.mxu0 0.0
    %1483 = vmatpush1.msra.mxu0 0.0
    %1484 = vmatprep.subr.mxu0 0.0
    %1485 = vmatpush1.msra.mxu0 0.0
    %1486 = vmatprep.subr.mxu0 0.0
    %1487 = vmatpush1.msra.mxu0 0.0
    %1488 = vmatprep.mubr.f32.mxu0 0.0
    %1489 = vmatmul.mubr.f32.gmra.mrb[0].mxu0 %v1223
    %v1490 = vpop.f32.mrb[0].mxu0
    %v1491 = vadd.f32 0.0, %v1490
    %v1492 = vpop.f32.mrb[0].mxu0
    %1493 = vmatprep.mubr.f32.mxu0 0.0
    %1494 = vmatmul.mubr.f32.gmra.mrb[0].mxu0 %v1225
    %v1495 = vpop.f32.mrb[0].mxu0
    %v1496 = vadd.f32 0.0, %v1495
    %v1497 = vpop.f32.mrb[0].mxu0
    %1498 = vmatprep.mubr.f32.mxu0 0.0
    %1499 = vmatmul.mubr.f32.gmra.mrb[0].mxu0 %v1227
    %v1500 = vpop.f32.mrb[0].mxu0
    %v1501 = vadd.f32 0.0, %v1500
    %v1502 = vpop.f32.mrb[0].mxu0
    %1503 = vmatprep.mubr.f32.mxu0 0.0
    %1504 = vmatmul.mubr.f32.gmra.mrb[0].mxu0 %v1229
    %v1505 = vpop.f32.mrb[0].mxu0
    %v1506 = vadd.f32 0.0, %v1505
    %v1507 = vpop.f32.mrb[0].mxu0
    %1508 = vmatprep.mubr.f32.mxu0 0.0
    %1509 = vmatmul.mubr.f32.gmra.mrb[0].mxu0 %v1231
    %v1510 = vpop.f32.mrb[0].mxu0
    %v1511 = vadd.f32 0.0, %v1510
    %v1512 = vpop.f32.mrb[0].mxu0
    %1513 = vmatprep.mubr.f32.mxu0 0.0
    %1514 = vmatmul.mubr.f32.gmra.mrb[0].mxu0 %v1233
    %v1515 = vpop.f32.mrb[0].mxu0
    %v1516 = vadd.f32 0.0, %v1515
    %v1517 = vpop.f32.mrb[0].mxu0
    %1518 = vmatprep.mubr.f32.mxu0 0.0
    %1519 = vmatmul.mubr.f32.gmra.mrb[0].mxu0 %v1235
    %v1520 = vpop.f32.mrb[0].mxu0
    %v1521 = vadd.f32 0.0, %v1520
    %v1522 = vpop.f32.mrb[0].mxu0
    %1523 = vmatprep.mubr.f32.mxu0 0.0
    %1524 = vmatmul.mubr.f32.gmra.mrb[0].mxu0 %v1237
    %v1525 = vpop.f32.mrb[0].mxu0
    %v1526 = vadd.f32 0.0, %v1525
    %v1527 = vpop.f32.mrb[0].mxu0
    %1528 = vmatprep.mubr.f32.mxu0 0.0
    %1529 = vmatmul.mubr.f32.gmra.mrb[0].mxu0 %v1239
    %v1530 = vpop.f32.mrb[0].mxu0
    %v1531 = vadd.f32 0.0, %v1530
    %v1532 = vpop.f32.mrb[0].mxu0
    %1533 = vmatprep.mubr.f32.mxu0 0.0
    %1534 = vmatmul.mubr.f32.gmra.mrb[0].mxu0 %v1241
    %v1535 = vpop.f32.mrb[0].mxu0
    %v1536 = vadd.f32 0.0, %v1535
    %v1537 = vpop.f32.mrb[0].mxu0
    %1538 = vmatprep.mubr.f32.mxu0 0.0
    %1539 = vmatmul.mubr.f32.gmra.mrb[0].mxu0 %v1243
    %v1540 = vpop.f32.mrb[0].mxu0
    %v1541 = vadd.f32 0.0, %v1540
    %v1542 = vpop.f32.mrb[0].mxu0
    %1543 = vmatprep.mubr.f32.mxu0 0.0
    %1544 = vmatmul.mubr.f32.gmra.mrb[0].mxu0 %v1245
    %v1545 = vpop.f32.mrb[0].mxu0
    %v1546 = vadd.f32 0.0, %v1545
    %v1547 = vpop.f32.mrb[0].mxu0
    %1548 = vmatprep.mubr.f32.mxu0 0.0
    %1549 = vmatmul.mubr.f32.gmra.mrb[0].mxu0 %v1247
    %v1550 = vpop.f32.mrb[0].mxu0
    %v1551 = vadd.f32 0.0, %v1550
    %v1552 = vpop.f32.mrb[0].mxu0
    %1553 = vmatprep.mubr.f32.mxu0 0.0
    %1554 = vmatmul.mubr.f32.gmra.mrb[0].mxu0 %v1249
    %v1555 = vpop.f32.mrb[0].mxu0
    %v1556 = vadd.f32 0.0, %v1555
    %v1557 = vpop.f32.mrb[0].mxu0
    %1558 = vmatprep.mubr.f32.mxu0 0.0
    %1559 = vmatmul.mubr.f32.gmra.mrb[0].mxu0 %v1251
    %v1560 = vpop.f32.mrb[0].mxu0
    %v1561 = vadd.f32 0.0, %v1560
    %v1562 = vpop.f32.mrb[0].mxu0
    %1563 = vmatprep.mubr.f32.mxu0 0.0
    %1564 = vmatmul.mubr.f32.gmra.mrb[0].mxu0 %v1253
    %v1565 = vpop.f32.mrb[0].mxu0
    %v1566 = vadd.f32 0.0, %v1565
    %v1567 = vpop.f32.mrb[0].mxu0
    %1568 = vdwg.mxu0
    %v1569 = vld [vmem:[#allocation2 + $0x1e0] sm:$0xff]
    %v1570 = vld [vmem:[#allocation2 + $0x1e8] sm:$0xff]
    %v1571 = vld [vmem:[#allocation2 + $0x1f0] sm:$0xff]
    %v1572 = vld [vmem:[#allocation2 + $0x1f8] sm:$0xff]
    %1573 = vmatprep.subr.mxu0 0.0
    %1574 = vmatpush1.msra.mxu0 %v1491
    %1575 = vmatprep.subr.mxu0 0.0
    %1576 = vmatpush1.msra.mxu0 %v1496
    %1577 = vmatprep.subr.mxu0 0.0
    %1578 = vmatpush1.msra.mxu0 %v1501
    %1579 = vmatprep.subr.mxu0 0.0
    %1580 = vmatpush1.msra.mxu0 %v1506
    %1581 = vmatprep.subr.mxu0 0.0
    %1582 = vmatpush1.msra.mxu0 %v1511
    %1583 = vmatprep.subr.mxu0 0.0
    %1584 = vmatpush1.msra.mxu0 %v1516
    %1585 = vmatprep.subr.mxu0 0.0
    %1586 = vmatpush1.msra.mxu0 %v1521
    %1587 = vmatprep.subr.mxu0 0.0
    %1588 = vmatpush1.msra.mxu0 %v1526
    %1589 = vmatprep.subr.mxu0 0.0
    %1590 = vmatpush1.msra.mxu0 %v1531
    %1591 = vmatprep.subr.mxu0 0.0
    %1592 = vmatpush1.msra.mxu0 %v1536
    %1593 = vmatprep.subr.mxu0 0.0
    %1594 = vmatpush1.msra.mxu0 %v1541
    %1595 = vmatprep.subr.mxu0 0.0
    %1596 = vmatpush1.msra.mxu0 %v1546
    %1597 = vmatprep.subr.mxu0 0.0
    %1598 = vmatpush1.msra.mxu0 %v1551
    %1599 = vmatprep.subr.mxu0 0.0
    %1600 = vmatpush1.msra.mxu0 %v1556
    %1601 = vmatprep.subr.mxu0 0.0
    %1602 = vmatpush1.msra.mxu0 %v1561
    %1603 = vmatprep.subr.mxu0 0.0
    %1604 = vmatpush1.msra.mxu0 %v1566
    %1605 = vmatprep.subr.mxu0 0.0
    %1606 = vmatpush1.msra.mxu0 0.0
    %1607 = vmatprep.subr.mxu0 0.0
    %1608 = vmatpush1.msra.mxu0 0.0
    %1609 = vmatprep.subr.mxu0 0.0
    %1610 = vmatpush1.msra.mxu0 0.0
    %1611 = vmatprep.subr.mxu0 0.0
    %1612 = vmatpush1.msra.mxu0 0.0
    %1613 = vmatprep.subr.mxu0 0.0
    %1614 = vmatpush1.msra.mxu0 0.0
    %1615 = vmatprep.subr.mxu0 0.0
    %1616 = vmatpush1.msra.mxu0 0.0
    %1617 = vmatprep.subr.mxu0 0.0
    %1618 = vmatpush1.msra.mxu0 0.0
    %1619 = vmatprep.subr.mxu0 0.0
    %1620 = vmatpush1.msra.mxu0 0.0
    %1621 = vmatprep.subr.mxu0 0.0
    %1622 = vmatpush1.msra.mxu0 0.0
    %1623 = vmatprep.subr.mxu0 0.0
    %1624 = vmatpush1.msra.mxu0 0.0
    %1625 = vmatprep.subr.mxu0 0.0
    %1626 = vmatpush1.msra.mxu0 0.0
    %1627 = vmatprep.subr.mxu0 0.0
    %1628 = vmatpush1.msra.mxu0 0.0
    %1629 = vmatprep.subr.mxu0 0.0
    %1630 = vmatpush1.msra.mxu0 0.0
    %1631 = vmatprep.subr.mxu0 0.0
    %1632 = vmatpush1.msra.mxu0 0.0
    %1633 = vmatprep.subr.mxu0 0.0
    %1634 = vmatpush1.msra.mxu0 0.0
    %1635 = vmatprep.subr.mxu0 0.0
    %1636 = vmatpush1.msra.mxu0 0.0
    %1637 = vmatprep.mubr.f32.mxu0 0.0
    %1638 = vmatmul.mubr.f32.gmra.mrb[0].mxu0 %v1569
    %v1639 = vpop.f32.mrb[0].mxu0
    %v1640 = vadd.f32 0.0, %v1639
    %v1641 = vpop.f32.mrb[0].mxu0
    %1642 = vmatprep.mubr.f32.mxu0 0.0
    %1643 = vmatmul.mubr.f32.gmra.mrb[0].mxu0 %v1570
    %v1644 = vpop.f32.mrb[0].mxu0
    %v1645 = vadd.f32 0.0, %v1644
    %v1646 = vpop.f32.mrb[0].mxu0
    %1647 = vmatprep.mubr.f32.mxu0 0.0
    %1648 = vmatmul.mubr.f32.gmra.mrb[0].mxu0 %v1571
    %v1649 = vpop.f32.mrb[0].mxu0
    %v1650 = vadd.f32 0.0, %v1649
    %v1651 = vpop.f32.mrb[0].mxu0
    %1652 = vmatprep.mubr.f32.mxu0 0.0
    %1653 = vmatmul.mubr.f32.gmra.mrb[0].mxu0 %v1572
    %v1654 = vpop.f32.mrb[0].mxu0
    %v1655 = vadd.f32 0.0, %v1654
    %v1656 = vpop.f32.mrb[0].mxu0
    %1657 = vdwg.mxu0
    %v1658 = vld [vmem:[#allocation2 + $0x2d8] sm:$0xff]
    %v1659 = vld [vmem:[#allocation2 + $0x2e0] sm:$0xff]
    %v1660 = vld [vmem:[#allocation2 + $0x2e8] sm:$0xff]
    %v1661 = vld [vmem:[#allocation2 + $0x2f0] sm:$0xff]
    %v1662 = vld [vmem:[#allocation2 + $0x2f8] sm:$0x1]
    %v1663 = vlaneseq
    %v1664 = vshrl.u32 %v1663, 7
    %v1665 = vsub.s32 0, %v1664
    %v1666 = vrot.slane %v1662, %v1665
    %v1668 = vsel %vm168, %v1640, 0
    %v1671 = vsel %vm168, %v1645, 0
    %v1674 = vsel %vm168, %v1650, 0
    %v1677 = vsel %vm168, %v1655, 0
    %1679 = vmatprep.subr.mxu0 0.0
    %1680 = vmatpush1.msra.mxu0 %v1658
    %1681 = vmatprep.subr.mxu0 0.0
    %1682 = vmatpush1.msra.mxu0 %v1659
    %1683 = vmatprep.subr.mxu0 0.0
    %1684 = vmatpush1.msra.mxu0 %v1660
    %1685 = vmatprep.subr.mxu0 0.0
    %1686 = vmatpush1.msra.mxu0 %v1661
    %1687 = vmatprep.subr.mxu0 0.0
    %1688 = vmatpush1.msra.mxu0 0.0
    %1689 = vmatprep.subr.mxu0 0.0
    %1690 = vmatpush1.msra.mxu0 0.0
    %1691 = vmatprep.subr.mxu0 0.0
    %1692 = vmatpush1.msra.mxu0 0.0
    %1693 = vmatprep.subr.mxu0 0.0
    %1694 = vmatpush1.msra.mxu0 0.0
    %1695 = vmatprep.subr.mxu0 0.0
    %1696 = vmatpush1.msra.mxu0 0.0
    %1697 = vmatprep.subr.mxu0 0.0
    %1698 = vmatpush1.msra.mxu0 0.0
    %1699 = vmatprep.subr.mxu0 0.0
    %1700 = vmatpush1.msra.mxu0 0.0
    %1701 = vmatprep.subr.mxu0 0.0
    %1702 = vmatpush1.msra.mxu0 0.0
    %1703 = vmatprep.subr.mxu0 0.0
    %1704 = vmatpush1.msra.mxu0 0.0
    %1705 = vmatprep.subr.mxu0 0.0
    %1706 = vmatpush1.msra.mxu0 0.0
    %1707 = vmatprep.subr.mxu0 0.0
    %1708 = vmatpush1.msra.mxu0 0.0
    %1709 = vmatprep.subr.mxu0 0.0
    %1710 = vmatpush1.msra.mxu0 0.0
    %1711 = vmatprep.subr.mxu0 0.0
    %1712 = vmatpush1.msra.mxu0 0.0
    %1713 = vmatprep.subr.mxu0 0.0
    %1714 = vmatpush1.msra.mxu0 0.0
    %1715 = vmatprep.subr.mxu0 0.0
    %1716 = vmatpush1.msra.mxu0 0.0
    %1717 = vmatprep.subr.mxu0 0.0
    %1718 = vmatpush1.msra.mxu0 0.0
    %1719 = vmatprep.subr.mxu0 0.0
    %1720 = vmatpush1.msra.mxu0 0.0
    %1721 = vmatprep.subr.mxu0 0.0
    %1722 = vmatpush1.msra.mxu0 0.0
    %1723 = vmatprep.subr.mxu0 0.0
    %1724 = vmatpush1.msra.mxu0 0.0
    %1725 = vmatprep.subr.mxu0 0.0
    %1726 = vmatpush1.msra.mxu0 0.0
    %1727 = vmatprep.subr.mxu0 0.0
    %1728 = vmatpush1.msra.mxu0 0.0
    %1729 = vmatprep.subr.mxu0 0.0
    %1730 = vmatpush1.msra.mxu0 0.0
    %1731 = vmatprep.subr.mxu0 0.0
    %1732 = vmatpush1.msra.mxu0 0.0
    %1733 = vmatprep.subr.mxu0 0.0
    %1734 = vmatpush1.msra.mxu0 0.0
    %1735 = vmatprep.subr.mxu0 0.0
    %1736 = vmatpush1.msra.mxu0 0.0
    %1737 = vmatprep.subr.mxu0 0.0
    %1738 = vmatpush1.msra.mxu0 0.0
    %1739 = vmatprep.subr.mxu0 0.0
    %1740 = vmatpush1.msra.mxu0 0.0
    %1741 = vmatprep.subr.mxu0 0.0
    %1742 = vmatpush1.msra.mxu0 0.0
    %1743 = vmatprep.mubr.f32.mxu0 0.0
    %1744 = vmatmul.mubr.f32.gmra.mrb[0].mxu0 %v1668
    %v1745 = vpop.f32.mrb[0].mxu0
    %v1746 = vadd.f32 %v1666, %v1745
    %v1747 = vpop.f32.mrb[0].mxu0
    %1748 = vmatprep.mubr.f32.mxu0 0.0
    %1749 = vmatmul.mubr.f32.gmra.mrb[0].mxu0 %v1671
    %v1750 = vpop.f32.mrb[0].mxu0
    %v1751 = vadd.f32 %v1666, %v1750
    %v1752 = vpop.f32.mrb[0].mxu0
    %1753 = vmatprep.mubr.f32.mxu0 0.0
    %1754 = vmatmul.mubr.f32.gmra.mrb[0].mxu0 %v1674
    %v1755 = vpop.f32.mrb[0].mxu0
    %v1756 = vadd.f32 %v1666, %v1755
    %v1757 = vpop.f32.mrb[0].mxu0
    %1758 = vmatprep.mubr.f32.mxu0 0.0
    %1759 = vmatmul.mubr.f32.gmra.mrb[0].mxu0 %v1677
    %v1760 = vpop.f32.mrb[0].mxu0
    %v1761 = vadd.f32 %v1666, %v1760
    %v1762 = vpop.f32.mrb[0].mxu0
    %1763 = vdwg.mxu0
    %v1764 = vadd.f32 %v150, %v1746
    %v1765 = vadd.f32 %v155, %v1751
    %v1766 = vadd.f32 %v160, %v1756
    %v1767 = vadd.f32 %v165, %v1761
    %v1768 = vsel %vm168, %v1764, 0.0
    %1769 = vadd.xlane.f32.xlu0 %v1768
    %v1770 = vpop.xlane.xlu0 %1769
    %v1771 = vsel %vm168, %v1765, 0.0
    %1772 = vadd.xlane.f32.xlu0 %v1771
    %v1773 = vpop.xlane.xlu0 %1772
    %v1774 = vsel %vm168, %v1766, 0.0
    %1775 = vadd.xlane.f32.xlu0 %v1774
    %v1776 = vpop.xlane.xlu0 %1775
    %v1777 = vsel %vm168, %v1767, 0.0
    %1778 = vadd.xlane.f32.xlu0 %v1777
    %v1779 = vpop.xlane.xlu0 %1778
    %v1780 = vmul.f32 %v1770, %v181
    %v1781 = vmul.f32 %v1773, %v181
    %v1782 = vmul.f32 %v1776, %v181
    %v1783 = vmul.f32 %v1779, %v181
    %v1784 = vsub.f32 %v1764, %v1780
    %v1785 = vsub.f32 %v1765, %v1781
    %v1786 = vsub.f32 %v1766, %v1782
    %v1787 = vsub.f32 %v1767, %v1783
    %v1788 = vmul.f32 %v1784, %v1784
    %v1789 = vmul.f32 %v1785, %v1785
    %v1790 = vmul.f32 %v1786, %v1786
    %v1791 = vmul.f32 %v1787, %v1787
    %v1792 = vsel %vm168, %v1788, 0.0
    %1793 = vadd.xlane.f32.xlu0 %v1792
    %v1794 = vpop.xlane.xlu0 %1793
    %v1795 = vsel %vm168, %v1789, 0.0
    %1796 = vadd.xlane.f32.xlu0 %v1795
    %v1797 = vpop.xlane.xlu0 %1796
    %v1798 = vsel %vm168, %v1790, 0.0
    %1799 = vadd.xlane.f32.xlu0 %v1798
    %v1800 = vpop.xlane.xlu0 %1799
    %v1801 = vsel %vm168, %v1791, 0.0
    %1802 = vadd.xlane.f32.xlu0 %v1801
    %v1803 = vpop.xlane.xlu0 %1802
    %v1804 = vmul.f32 %v1794, %v181
    %v1805 = vmul.f32 %v1797, %v181
    %v1806 = vmul.f32 %v1800, %v181
    %v1807 = vmul.f32 %v1803, %v181
    %v1808 = vadd.f32 %v1804, 1e-05
    %v1809 = vadd.f32 %v1805, 1e-05
    %v1810 = vadd.f32 %v1806, 1e-05
    %v1811 = vadd.f32 %v1807, 1e-05
    %v1812 = vrsqrt.pop %v1808
    %v1813 = vrsqrt.pop %v1809
    %v1814 = vrsqrt.pop %v1810
    %v1815 = vrsqrt.pop %v1811
    %v1816 = vmul.f32 %v1784, %v1812
    %v1817 = vmul.f32 %v1785, %v1813
    %v1818 = vmul.f32 %v1786, %v1814
    %v1819 = vmul.f32 %v1787, %v1815
    %v1820 = vld [vmem:[#allocation2 + $0x300] sm:$0x1]
    %v1821 = vlaneseq
    %v1822 = vshrl.u32 %v1821, 7
    %v1823 = vsub.s32 0, %v1822
    %v1824 = vrot.slane %v1820, %v1823
    %v1825 = vmul.f32 %v1816, %v1824
    %v1826 = vmul.f32 %v1817, %v1824
    %v1827 = vmul.f32 %v1818, %v1824
    %v1828 = vmul.f32 %v1819, %v1824
    %v1829 = vld [vmem:[#allocation2 + $0x308] sm:$0x1]
    %v1830 = vlaneseq
    %v1831 = vshrl.u32 %v1830, 7
    %v1832 = vsub.s32 0, %v1831
    %v1833 = vrot.slane %v1829, %v1832
    %v1834 = vadd.f32 %v1825, %v1833
    %v1835 = vadd.f32 %v1826, %v1833
    %v1836 = vadd.f32 %v1827, %v1833
    %v1837 = vadd.f32 %v1828, %v1833
    %v1838 = vld [vmem:[#allocation2 + $0x310] sm:$0xff]
    %v1839 = vld [vmem:[#allocation2 + $0x318] sm:$0xff]
    %v1840 = vld [vmem:[#allocation2 + $0x320] sm:$0xff]
    %v1841 = vld [vmem:[#allocation2 + $0x328] sm:$0xff]
    %v1842 = vld [vmem:[#allocation2 + $0x330] sm:$0x1]
    %v1843 = vlaneseq
    %v1844 = vshrl.u32 %v1843, 7
    %v1845 = vsub.s32 0, %v1844
    %v1846 = vrot.slane %v1842, %v1845
    %v1848 = vsel %vm168, %v1834, 0
    %v1851 = vsel %vm168, %v1835, 0
    %v1854 = vsel %vm168, %v1836, 0
    %v1857 = vsel %vm168, %v1837, 0
    %1859 = vmatprep.subr.mxu0 0.0
    %1860 = vmatpush1.msra.mxu0 %v1838
    %1861 = vmatprep.subr.mxu0 0.0
    %1862 = vmatpush1.msra.mxu0 %v1839
    %1863 = vmatprep.subr.mxu0 0.0
    %1864 = vmatpush1.msra.mxu0 %v1840
    %1865 = vmatprep.subr.mxu0 0.0
    %1866 = vmatpush1.msra.mxu0 %v1841
    %1867 = vmatprep.subr.mxu0 0.0
    %1868 = vmatpush1.msra.mxu0 0.0
    %1869 = vmatprep.subr.mxu0 0.0
    %1870 = vmatpush1.msra.mxu0 0.0
    %1871 = vmatprep.subr.mxu0 0.0
    %1872 = vmatpush1.msra.mxu0 0.0
    %1873 = vmatprep.subr.mxu0 0.0
    %1874 = vmatpush1.msra.mxu0 0.0
    %1875 = vmatprep.subr.mxu0 0.0
    %1876 = vmatpush1.msra.mxu0 0.0
    %1877 = vmatprep.subr.mxu0 0.0
    %1878 = vmatpush1.msra.mxu0 0.0
    %1879 = vmatprep.subr.mxu0 0.0
    %1880 = vmatpush1.msra.mxu0 0.0
    %1881 = vmatprep.subr.mxu0 0.0
    %1882 = vmatpush1.msra.mxu0 0.0
    %1883 = vmatprep.subr.mxu0 0.0
    %1884 = vmatpush1.msra.mxu0 0.0
    %1885 = vmatprep.subr.mxu0 0.0
    %1886 = vmatpush1.msra.mxu0 0.0
    %1887 = vmatprep.subr.mxu0 0.0
    %1888 = vmatpush1.msra.mxu0 0.0
    %1889 = vmatprep.subr.mxu0 0.0
    %1890 = vmatpush1.msra.mxu0 0.0
    %1891 = vmatprep.subr.mxu0 0.0
    %1892 = vmatpush1.msra.mxu0 0.0
    %1893 = vmatprep.subr.mxu0 0.0
    %1894 = vmatpush1.msra.mxu0 0.0
    %1895 = vmatprep.subr.mxu0 0.0
    %1896 = vmatpush1.msra.mxu0 0.0
    %1897 = vmatprep.subr.mxu0 0.0
    %1898 = vmatpush1.msra.mxu0 0.0
    %1899 = vmatprep.subr.mxu0 0.0
    %1900 = vmatpush1.msra.mxu0 0.0
    %1901 = vmatprep.subr.mxu0 0.0
    %1902 = vmatpush1.msra.mxu0 0.0
    %1903 = vmatprep.subr.mxu0 0.0
    %1904 = vmatpush1.msra.mxu0 0.0
    %1905 = vmatprep.subr.mxu0 0.0
    %1906 = vmatpush1.msra.mxu0 0.0
    %1907 = vmatprep.subr.mxu0 0.0
    %1908 = vmatpush1.msra.mxu0 0.0
    %1909 = vmatprep.subr.mxu0 0.0
    %1910 = vmatpush1.msra.mxu0 0.0
    %1911 = vmatprep.subr.mxu0 0.0
    %1912 = vmatpush1.msra.mxu0 0.0
    %1913 = vmatprep.subr.mxu0 0.0
    %1914 = vmatpush1.msra.mxu0 0.0
    %1915 = vmatprep.subr.mxu0 0.0
    %1916 = vmatpush1.msra.mxu0 0.0
    %1917 = vmatprep.subr.mxu0 0.0
    %1918 = vmatpush1.msra.mxu0 0.0
    %1919 = vmatprep.subr.mxu0 0.0
    %1920 = vmatpush1.msra.mxu0 0.0
    %1921 = vmatprep.subr.mxu0 0.0
    %1922 = vmatpush1.msra.mxu0 0.0
    %1923 = vmatprep.mubr.f32.mxu0 0.0
    %1924 = vmatmul.mubr.f32.gmra.mrb[0].mxu0 %v1848
    %v1925 = vpop.f32.mrb[0].mxu0
    %v1926 = vadd.f32 %v1846, %v1925
    %v1927 = vpop.f32.mrb[0].mxu0
    %1928 = vmatprep.mubr.f32.mxu0 0.0
    %1929 = vmatmul.mubr.f32.gmra.mrb[0].mxu0 %v1851
    %v1930 = vpop.f32.mrb[0].mxu0
    %v1931 = vadd.f32 %v1846, %v1930
    %v1932 = vpop.f32.mrb[0].mxu0
    %1933 = vmatprep.mubr.f32.mxu0 0.0
    %1934 = vmatmul.mubr.f32.gmra.mrb[0].mxu0 %v1854
    %v1935 = vpop.f32.mrb[0].mxu0
    %v1936 = vadd.f32 %v1846, %v1935
    %v1937 = vpop.f32.mrb[0].mxu0
    %1938 = vmatprep.mubr.f32.mxu0 0.0
    %1939 = vmatmul.mubr.f32.gmra.mrb[0].mxu0 %v1857
    %v1940 = vpop.f32.mrb[0].mxu0
    %v1941 = vadd.f32 %v1846, %v1940
    %v1942 = vpop.f32.mrb[0].mxu0
    %1943 = vdwg.mxu0
    %v1944 = vmul.f32 %v1926, %v1926
    %v1945 = vmul.f32 %v1931, %v1931
    %v1946 = vmul.f32 %v1936, %v1936
    %v1947 = vmul.f32 %v1941, %v1941
    %v1948 = vmul.f32 %v1926, %v1944
    %v1949 = vmul.f32 %v1931, %v1945
    %v1950 = vmul.f32 %v1936, %v1946
    %v1951 = vmul.f32 %v1941, %v1947
    %v1952 = vmul.f32 %v1948, 0.044715
    %v1953 = vmul.f32 %v1949, 0.044715
    %v1954 = vmul.f32 %v1950, 0.044715
    %v1955 = vmul.f32 %v1951, 0.044715
    %v1956 = vadd.f32 %v1926, %v1952
    %v1957 = vadd.f32 %v1931, %v1953
    %v1958 = vadd.f32 %v1936, %v1954
    %v1959 = vadd.f32 %v1941, %v1955
    %v1960 = vmul.f32 %v1956, 0.7978846
    %v1961 = vmul.f32 %v1957, 0.7978846
    %v1962 = vmul.f32 %v1958, 0.7978846
    %v1963 = vmul.f32 %v1959, 0.7978846
    %v1964 = vtanh.pop %v1960
    %v1965 = vtanh.pop %v1961
    %v1966 = vtanh.pop %v1962
    %v1967 = vtanh.pop %v1963
    %v1968 = vadd.f32 %v1964, 1.0
    %v1969 = vadd.f32 %v1965, 1.0
    %v1970 = vadd.f32 %v1966, 1.0
    %v1971 = vadd.f32 %v1967, 1.0
    %v1972 = vmul.f32 %v1968, 0.5
    %v1973 = vmul.f32 %v1969, 0.5
    %v1974 = vmul.f32 %v1970, 0.5
    %v1975 = vmul.f32 %v1971, 0.5
    %v1976 = vmul.f32 %v1926, %v1972
    %v1977 = vmul.f32 %v1931, %v1973
    %v1978 = vmul.f32 %v1936, %v1974
    %v1979 = vmul.f32 %v1941, %v1975
    %v1980 = vld [vmem:[#allocation2 + $0x338] sm:$0xff]
    %v1981 = vld [vmem:[#allocation2 + $0x340] sm:$0xff]
    %v1982 = vld [vmem:[#allocation2 + $0x348] sm:$0xff]
    %v1983 = vld [vmem:[#allocation2 + $0x350] sm:$0xff]
    %v1984 = vld [vmem:[#allocation2 + $0x358] sm:$0xff]
    %v1985 = vld [vmem:[#allocation2 + $0x360] sm:$0xff]
    %v1986 = vld [vmem:[#allocation2 + $0x368] sm:$0xff]
    %v1987 = vld [vmem:[#allocation2 + $0x370] sm:$0xff]
    %v1988 = vld [vmem:[#allocation2 + $0x378] sm:$0xff]
    %v1989 = vld [vmem:[#allocation2 + $0x380] sm:$0xff]
    %v1990 = vld [vmem:[#allocation2 + $0x388] sm:$0xff]
    %v1991 = vld [vmem:[#allocation2 + $0x390] sm:$0xff]
    %v1992 = vld [vmem:[#allocation2 + $0x398] sm:$0xff]
    %v1993 = vld [vmem:[#allocation2 + $0x3a0] sm:$0xff]
    %v1994 = vld [vmem:[#allocation2 + $0x3a8] sm:$0xff]
    %v1995 = vld [vmem:[#allocation2 + $0x3b0] sm:$0xff]
    %v1996 = vld [vmem:[#allocation2 + $0x3b8] sm:$0x1]
    %v1997 = vlaneseq
    %v1998 = vshrl.u32 %v1997, 7
    %v1999 = vsub.s32 0, %v1998
    %v2000 = vrot.slane %v1996, %v1999
    %2001 = vmatprep.subr.mxu0 0.0
    %2002 = vmatpush1.msra.mxu0 %v1980
    %2003 = vmatprep.subr.mxu0 0.0
    %2004 = vmatpush1.msra.mxu0 %v1981
    %2005 = vmatprep.subr.mxu0 0.0
    %2006 = vmatpush1.msra.mxu0 %v1982
    %2007 = vmatprep.subr.mxu0 0.0
    %2008 = vmatpush1.msra.mxu0 %v1983
    %2009 = vmatprep.subr.mxu0 0.0
    %2010 = vmatpush1.msra.mxu0 %v1984
    %2011 = vmatprep.subr.mxu0 0.0
    %2012 = vmatpush1.msra.mxu0 %v1985
    %2013 = vmatprep.subr.mxu0 0.0
    %2014 = vmatpush1.msra.mxu0 %v1986
    %2015 = vmatprep.subr.mxu0 0.0
    %2016 = vmatpush1.msra.mxu0 %v1987
    %2017 = vmatprep.subr.mxu0 0.0
    %2018 = vmatpush1.msra.mxu0 %v1988
    %2019 = vmatprep.subr.mxu0 0.0
    %2020 = vmatpush1.msra.mxu0 %v1989
    %2021 = vmatprep.subr.mxu0 0.0
    %2022 = vmatpush1.msra.mxu0 %v1990
    %2023 = vmatprep.subr.mxu0 0.0
    %2024 = vmatpush1.msra.mxu0 %v1991
    %2025 = vmatprep.subr.mxu0 0.0
    %2026 = vmatpush1.msra.mxu0 %v1992
    %2027 = vmatprep.subr.mxu0 0.0
    %2028 = vmatpush1.msra.mxu0 %v1993
    %2029 = vmatprep.subr.mxu0 0.0
    %2030 = vmatpush1.msra.mxu0 %v1994
    %2031 = vmatprep.subr.mxu0 0.0
    %2032 = vmatpush1.msra.mxu0 %v1995
    %2033 = vmatprep.subr.mxu0 0.0
    %2034 = vmatpush1.msra.mxu0 0.0
    %2035 = vmatprep.subr.mxu0 0.0
    %2036 = vmatpush1.msra.mxu0 0.0
    %2037 = vmatprep.subr.mxu0 0.0
    %2038 = vmatpush1.msra.mxu0 0.0
    %2039 = vmatprep.subr.mxu0 0.0
    %2040 = vmatpush1.msra.mxu0 0.0
    %2041 = vmatprep.subr.mxu0 0.0
    %2042 = vmatpush1.msra.mxu0 0.0
    %2043 = vmatprep.subr.mxu0 0.0
    %2044 = vmatpush1.msra.mxu0 0.0
    %2045 = vmatprep.subr.mxu0 0.0
    %2046 = vmatpush1.msra.mxu0 0.0
    %2047 = vmatprep.subr.mxu0 0.0
    %2048 = vmatpush1.msra.mxu0 0.0
    %2049 = vmatprep.subr.mxu0 0.0
    %2050 = vmatpush1.msra.mxu0 0.0
    %2051 = vmatprep.subr.mxu0 0.0
    %2052 = vmatpush1.msra.mxu0 0.0
    %2053 = vmatprep.subr.mxu0 0.0
    %2054 = vmatpush1.msra.mxu0 0.0
    %2055 = vmatprep.subr.mxu0 0.0
    %2056 = vmatpush1.msra.mxu0 0.0
    %2057 = vmatprep.subr.mxu0 0.0
    %2058 = vmatpush1.msra.mxu0 0.0
    %2059 = vmatprep.subr.mxu0 0.0
    %2060 = vmatpush1.msra.mxu0 0.0
    %2061 = vmatprep.subr.mxu0 0.0
    %2062 = vmatpush1.msra.mxu0 0.0
    %2063 = vmatprep.subr.mxu0 0.0
    %2064 = vmatpush1.msra.mxu0 0.0
    %2065 = vmatprep.mubr.f32.mxu0 0.0
    %2066 = vmatmul.mubr.f32.gmra.mrb[0].mxu0 %v1976
    %v2067 = vpop.f32.mrb[0].mxu0
    %v2068 = vadd.f32 %v2000, %v2067
    %v2069 = vpop.f32.mrb[0].mxu0
    %2070 = vmatprep.mubr.f32.mxu0 0.0
    %2071 = vmatmul.mubr.f32.gmra.mrb[0].mxu0 %v1977
    %v2072 = vpop.f32.mrb[0].mxu0
    %v2073 = vadd.f32 %v2000, %v2072
    %v2074 = vpop.f32.mrb[0].mxu0
    %2075 = vmatprep.mubr.f32.mxu0 0.0
    %2076 = vmatmul.mubr.f32.gmra.mrb[0].mxu0 %v1978
    %v2077 = vpop.f32.mrb[0].mxu0
    %v2078 = vadd.f32 %v2000, %v2077
    %v2079 = vpop.f32.mrb[0].mxu0
    %2080 = vmatprep.mubr.f32.mxu0 0.0
    %2081 = vmatmul.mubr.f32.gmra.mrb[0].mxu0 %v1979
    %v2082 = vpop.f32.mrb[0].mxu0
    %v2083 = vadd.f32 %v2000, %v2082
    %v2084 = vpop.f32.mrb[0].mxu0
    %2085 = vdwg.mxu0
    %v2086 = vadd.f32 %v1764, %v2068
    %v2087 = vadd.f32 %v1765, %v2073
    %v2088 = vadd.f32 %v1766, %v2078
    %v2089 = vadd.f32 %v1767, %v2083
    %v2090 = vsel %vm168, %v2086, 0.0
    %2091 = vadd.xlane.f32.xlu0 %v2090
    %v2092 = vpop.xlane.xlu0 %2091
    %v2093 = vsel %vm168, %v2087, 0.0
    %2094 = vadd.xlane.f32.xlu0 %v2093
    %v2095 = vpop.xlane.xlu0 %2094
    %v2096 = vsel %vm168, %v2088, 0.0
    %2097 = vadd.xlane.f32.xlu0 %v2096
    %v2098 = vpop.xlane.xlu0 %2097
    %v2099 = vsel %vm168, %v2089, 0.0
    %2100 = vadd.xlane.f32.xlu0 %v2099
    %v2101 = vpop.xlane.xlu0 %2100
    %v2102 = vmul.f32 %v2092, %v181
    %v2103 = vmul.f32 %v2095, %v181
    %v2104 = vmul.f32 %v2098, %v181
    %v2105 = vmul.f32 %v2101, %v181
    %v2106 = vsub.f32 %v2086, %v2102
    %v2107 = vsub.f32 %v2087, %v2103
    %v2108 = vsub.f32 %v2088, %v2104
    %v2109 = vsub.f32 %v2089, %v2105
    %v2110 = vmul.f32 %v2106, %v2106
    %v2111 = vmul.f32 %v2107, %v2107
    %v2112 = vmul.f32 %v2108, %v2108
    %v2113 = vmul.f32 %v2109, %v2109
    %v2114 = vsel %vm168, %v2110, 0.0
    %2115 = vadd.xlane.f32.xlu0 %v2114
    %v2116 = vpop.xlane.xlu0 %2115
    %v2117 = vsel %vm168, %v2111, 0.0
    %2118 = vadd.xlane.f32.xlu0 %v2117
    %v2119 = vpop.xlane.xlu0 %2118
    %v2120 = vsel %vm168, %v2112, 0.0
    %2121 = vadd.xlane.f32.xlu0 %v2120
    %v2122 = vpop.xlane.xlu0 %2121
    %v2123 = vsel %vm168, %v2113, 0.0
    %2124 = vadd.xlane.f32.xlu0 %v2123
    %v2125 = vpop.xlane.xlu0 %2124
    %v2126 = vmul.f32 %v2116, %v181
    %v2127 = vmul.f32 %v2119, %v181
    %v2128 = vmul.f32 %v2122, %v181
    %v2129 = vmul.f32 %v2125, %v181
    %v2130 = vadd.f32 %v2126, 1e-05
    %v2131 = vadd.f32 %v2127, 1e-05
    %v2132 = vadd.f32 %v2128, 1e-05
    %v2133 = vadd.f32 %v2129, 1e-05
    %v2134 = vrsqrt.pop %v2130
    %v2135 = vrsqrt.pop %v2131
    %v2136 = vrsqrt.pop %v2132
    %v2137 = vrsqrt.pop %v2133
    %v2138 = vmul.f32 %v2106, %v2134
    %v2139 = vmul.f32 %v2107, %v2135
    %v2140 = vmul.f32 %v2108, %v2136
    %v2141 = vmul.f32 %v2109, %v2137
    %v2142 = vld [vmem:[#allocation2 + $0x3c0] sm:$0x1]
    %v2143 = vlaneseq
    %v2144 = vshrl.u32 %v2143, 7
    %v2145 = vsub.s32 0, %v2144
    %v2146 = vrot.slane %v2142, %v2145
    %v2147 = vmul.f32 %v2138, %v2146
    %v2148 = vmul.f32 %v2139, %v2146
    %v2149 = vmul.f32 %v2140, %v2146
    %v2150 = vmul.f32 %v2141, %v2146
    %v2151 = vld [vmem:[#allocation2 + $0x3c8] sm:$0x1]
    %v2152 = vlaneseq
    %v2153 = vshrl.u32 %v2152, 7
    %v2154 = vsub.s32 0, %v2153
    %v2155 = vrot.slane %v2151, %v2154
    %v2156 = vadd.f32 %v2147, %v2155
    %v2157 = vadd.f32 %v2148, %v2155
    %v2158 = vadd.f32 %v2149, %v2155
    %v2159 = vadd.f32 %v2150, %v2155
    %2160 = vmatprep.subr.mxu0 0.0
    %2161 = vmatpush1.msra.mxu0 %v2156
    %2162 = vmatprep.subr.mxu0 0.0
    %2163 = vmatpush1.msra.mxu0 %v2157
    %2164 = vmatprep.subr.mxu0 0.0
    %2165 = vmatpush1.msra.mxu0 %v2158
    %2166 = vmatprep.subr.mxu0 0.0
    %2167 = vmatpush1.msra.mxu0 %v2159
    %2168 = vmatprep.subr.mxu0 0.0
    %2169 = vmatpush1.msra.mxu0 0.0
    %2170 = vmatprep.subr.mxu0 0.0
    %2171 = vmatpush1.msra.mxu0 0.0
    %2172 = vmatprep.subr.mxu0 0.0
    %2173 = vmatpush1.msra.mxu0 0.0
    %2174 = vmatprep.subr.mxu0 0.0
    %2175 = vmatpush1.msra.mxu0 0.0
    %2176 = vmatprep.subr.mxu0 0.0
    %2177 = vmatpush1.msra.mxu0 0.0
    %2178 = vmatprep.subr.mxu0 0.0
    %2179 = vmatpush1.msra.mxu0 0.0
    %2180 = vmatprep.subr.mxu0 0.0
    %2181 = vmatpush1.msra.mxu0 0.0
    %2182 = vmatprep.subr.mxu0 0.0
    %2183 = vmatpush1.msra.mxu0 0.0
    %2184 = vmatprep.subr.mxu0 0.0
    %2185 = vmatpush1.msra.mxu0 0.0
    %2186 = vmatprep.subr.mxu0 0.0
    %2187 = vmatpush1.msra.mxu0 0.0
    %2188 = vmatprep.subr.mxu0 0.0
    %2189 = vmatpush1.msra.mxu0 0.0
    %2190 = vmatprep.subr.mxu0 0.0
    %2191 = vmatpush1.msra.mxu0 0.0
    %2192 = vmatprep.subr.mxu0 0.0
    %2193 = vmatpush1.msra.mxu0 0.0
    %2194 = vmatprep.subr.mxu0 0.0
    %2195 = vmatpush1.msra.mxu0 0.0
    %2196 = vmatprep.subr.mxu0 0.0
    %2197 = vmatpush1.msra.mxu0 0.0
    %2198 = vmatprep.subr.mxu0 0.0
    %2199 = vmatpush1.msra.mxu0 0.0
    %2200 = vmatprep.subr.mxu0 0.0
    %2201 = vmatpush1.msra.mxu0 0.0
    %2202 = vmatprep.subr.mxu0 0.0
    %2203 = vmatpush1.msra.mxu0 0.0
    %2204 = vmatprep.subr.mxu0 0.0
    %2205 = vmatpush1.msra.mxu0 0.0
    %2206 = vmatprep.subr.mxu0 0.0
    %2207 = vmatpush1.msra.mxu0 0.0
    %2208 = vmatprep.subr.mxu0 0.0
    %2209 = vmatpush1.msra.mxu0 0.0
    %2210 = vmatprep.subr.mxu0 0.0
    %2211 = vmatpush1.msra.mxu0 0.0
    %2212 = vmatprep.subr.mxu0 0.0
    %2213 = vmatpush1.msra.mxu0 0.0
    %2214 = vmatprep.subr.mxu0 0.0
    %2215 = vmatpush1.msra.mxu0 0.0
    %2216 = vmatprep.subr.mxu0 0.0
    %2217 = vmatpush1.msra.mxu0 0.0
    %2218 = vmatprep.subr.mxu0 0.0
    %2219 = vmatpush1.msra.mxu0 0.0
    %2220 = vmatprep.subr.mxu0 0.0
    %2221 = vmatpush1.msra.mxu0 0.0
    %2222 = vmatprep.subr.mxu0 0.0
    %2223 = vmatpush1.msra.mxu0 0.0
    %2224 = vmatprep.mubr.f32.mxu0 0.0
    %2225 = vmatmul.mubr.f32.gmra.mrb[0].mxu0 %v257
    %v2226 = vpop.f32.mrb[0].mxu0
    %v2227 = vadd.f32 0.0, %v2226
    %v2228 = vpop.f32.mrb[0].mxu0
    %2229 = vmatprep.mubr.f32.mxu0 0.0
    %2230 = vmatmul.mubr.f32.gmra.mrb[0].mxu0 %v260
    %v2231 = vpop.f32.mrb[0].mxu0
    %v2232 = vadd.f32 0.0, %v2231
    %v2233 = vpop.f32.mrb[0].mxu0
    %2234 = vmatprep.mubr.f32.mxu0 0.0
    %2235 = vmatmul.mubr.f32.gmra.mrb[0].mxu0 %v263
    %v2236 = vpop.f32.mrb[0].mxu0
    %v2237 = vadd.f32 0.0, %v2236
    %v2238 = vpop.f32.mrb[0].mxu0
    %2239 = vmatprep.mubr.f32.mxu0 0.0
    %2240 = vmatmul.mubr.f32.gmra.mrb[0].mxu0 %v266
    %v2241 = vpop.f32.mrb[0].mxu0
    %v2242 = vadd.f32 0.0, %v2241
    %v2243 = vpop.f32.mrb[0].mxu0
    %2244 = vmatprep.mubr.f32.mxu0 0.0
    %2245 = vmatmul.mubr.f32.gmra.mrb[0].mxu0 %v269
    %v2246 = vpop.f32.mrb[0].mxu0
    %v2247 = vadd.f32 0.0, %v2246
    %v2248 = vpop.f32.mrb[0].mxu0
    %2249 = vmatprep.mubr.f32.mxu0 0.0
    %2250 = vmatmul.mubr.f32.gmra.mrb[0].mxu0 %v272
    %v2251 = vpop.f32.mrb[0].mxu0
    %v2252 = vadd.f32 0.0, %v2251
    %v2253 = vpop.f32.mrb[0].mxu0
    %2254 = vmatprep.mubr.f32.mxu0 0.0
    %2255 = vmatmul.mubr.f32.gmra.mrb[0].mxu0 %v275
    %v2256 = vpop.f32.mrb[0].mxu0
    %v2257 = vadd.f32 0.0, %v2256
    %v2258 = vpop.f32.mrb[0].mxu0
    %2259 = vmatprep.mubr.f32.mxu0 0.0
    %2260 = vmatmul.mubr.f32.gmra.mrb[0].mxu0 %v278
    %v2261 = vpop.f32.mrb[0].mxu0
    %v2262 = vadd.f32 0.0, %v2261
    %v2263 = vpop.f32.mrb[0].mxu0
    %2264 = vmatprep.mubr.f32.mxu0 0.0
    %2265 = vmatmul.mubr.f32.gmra.mrb[0].mxu0 %v281
    %v2266 = vpop.f32.mrb[0].mxu0
    %v2267 = vadd.f32 0.0, %v2266
    %v2268 = vpop.f32.mrb[0].mxu0
    %2269 = vmatprep.mubr.f32.mxu0 0.0
    %2270 = vmatmul.mubr.f32.gmra.mrb[0].mxu0 %v284
    %v2271 = vpop.f32.mrb[0].mxu0
    %v2272 = vadd.f32 0.0, %v2271
    %v2273 = vpop.f32.mrb[0].mxu0
    %2274 = vmatprep.mubr.f32.mxu0 0.0
    %2275 = vmatmul.mubr.f32.gmra.mrb[0].mxu0 %v287
    %v2276 = vpop.f32.mrb[0].mxu0
    %v2277 = vadd.f32 0.0, %v2276
    %v2278 = vpop.f32.mrb[0].mxu0
    %2279 = vmatprep.mubr.f32.mxu0 0.0
    %2280 = vmatmul.mubr.f32.gmra.mrb[0].mxu0 %v290
    %v2281 = vpop.f32.mrb[0].mxu0
    %v2282 = vadd.f32 0.0, %v2281
    %v2283 = vpop.f32.mrb[0].mxu0
    %2284 = vmatprep.mubr.f32.mxu0 0.0
    %2285 = vmatmul.mubr.f32.gmra.mrb[0].mxu0 %v293
    %v2286 = vpop.f32.mrb[0].mxu0
    %v2287 = vadd.f32 0.0, %v2286
    %v2288 = vpop.f32.mrb[0].mxu0
    %2289 = vmatprep.mubr.f32.mxu0 0.0
    %2290 = vmatmul.mubr.f32.gmra.mrb[0].mxu0 %v296
    %v2291 = vpop.f32.mrb[0].mxu0
    %v2292 = vadd.f32 0.0, %v2291
    %v2293 = vpop.f32.mrb[0].mxu0
    %2294 = vmatprep.mubr.f32.mxu0 0.0
    %2295 = vmatmul.mubr.f32.gmra.mrb[0].mxu0 %v299
    %v2296 = vpop.f32.mrb[0].mxu0
    %v2297 = vadd.f32 0.0, %v2296
    %v2298 = vpop.f32.mrb[0].mxu0
    %2299 = vmatprep.mubr.f32.mxu0 0.0
    %2300 = vmatmul.mubr.f32.gmra.mrb[0].mxu0 %v302
    %v2301 = vpop.f32.mrb[0].mxu0
    %v2302 = vadd.f32 0.0, %v2301
    %v2303 = vpop.f32.mrb[0].mxu0
    %2304 = vdwg.mxu0
    %v2305 = vld [vmem:[#allocation2 + $0x3d0] sm:$0xff]
    %v2306 = vld [vmem:[#allocation2 + $0x3d8] sm:$0xff]
    %v2307 = vld [vmem:[#allocation2 + $0x3e0] sm:$0xff]
    %v2308 = vld [vmem:[#allocation2 + $0x3e8] sm:$0xff]
    %v2309 = vld [vmem:[#allocation2 + $0x3f0] sm:$0x1]
    %v2310 = vlaneseq
    %v2311 = vshrl.u32 %v2310, 7
    %v2312 = vsub.s32 0, %v2311
    %v2313 = vrot.slane %v2309, %v2312
    %v2315 = vsel %vm168, %v2227, 0
    %v2318 = vsel %vm168, %v2232, 0
    %v2321 = vsel %vm168, %v2237, 0
    %v2324 = vsel %vm168, %v2242, 0
    %v2327 = vsel %vm168, %v2247, 0
    %v2330 = vsel %vm168, %v2252, 0
    %v2333 = vsel %vm168, %v2257, 0
    %v2336 = vsel %vm168, %v2262, 0
    %v2339 = vsel %vm168, %v2267, 0
    %v2342 = vsel %vm168, %v2272, 0
    %v2345 = vsel %vm168, %v2277, 0
    %v2348 = vsel %vm168, %v2282, 0
    %v2351 = vsel %vm168, %v2287, 0
    %v2354 = vsel %vm168, %v2292, 0
    %v2357 = vsel %vm168, %v2297, 0
    %v2360 = vsel %vm168, %v2302, 0
    %2362 = vmatprep.subr.mxu0 0.0
    %2363 = vmatpush1.msra.mxu0 %v2305
    %2364 = vmatprep.subr.mxu0 0.0
    %2365 = vmatpush1.msra.mxu0 %v2306
    %2366 = vmatprep.subr.mxu0 0.0
    %2367 = vmatpush1.msra.mxu0 %v2307
    %2368 = vmatprep.subr.mxu0 0.0
    %2369 = vmatpush1.msra.mxu0 %v2308
    %2370 = vmatprep.subr.mxu0 0.0
    %2371 = vmatpush1.msra.mxu0 0.0
    %2372 = vmatprep.subr.mxu0 0.0
    %2373 = vmatpush1.msra.mxu0 0.0
    %2374 = vmatprep.subr.mxu0 0.0
    %2375 = vmatpush1.msra.mxu0 0.0
    %2376 = vmatprep.subr.mxu0 0.0
    %2377 = vmatpush1.msra.mxu0 0.0
    %2378 = vmatprep.subr.mxu0 0.0
    %2379 = vmatpush1.msra.mxu0 0.0
    %2380 = vmatprep.subr.mxu0 0.0
    %2381 = vmatpush1.msra.mxu0 0.0
    %2382 = vmatprep.subr.mxu0 0.0
    %2383 = vmatpush1.msra.mxu0 0.0
    %2384 = vmatprep.subr.mxu0 0.0
    %2385 = vmatpush1.msra.mxu0 0.0
    %2386 = vmatprep.subr.mxu0 0.0
    %2387 = vmatpush1.msra.mxu0 0.0
    %2388 = vmatprep.subr.mxu0 0.0
    %2389 = vmatpush1.msra.mxu0 0.0
    %2390 = vmatprep.subr.mxu0 0.0
    %2391 = vmatpush1.msra.mxu0 0.0
    %2392 = vmatprep.subr.mxu0 0.0
    %2393 = vmatpush1.msra.mxu0 0.0
    %2394 = vmatprep.subr.mxu0 0.0
    %2395 = vmatpush1.msra.mxu0 0.0
    %2396 = vmatprep.subr.mxu0 0.0
    %2397 = vmatpush1.msra.mxu0 0.0
    %2398 = vmatprep.subr.mxu0 0.0
    %2399 = vmatpush1.msra.mxu0 0.0
    %2400 = vmatprep.subr.mxu0 0.0
    %2401 = vmatpush1.msra.mxu0 0.0
    %2402 = vmatprep.subr.mxu0 0.0
    %2403 = vmatpush1.msra.mxu0 0.0
    %2404 = vmatprep.subr.mxu0 0.0
    %2405 = vmatpush1.msra.mxu0 0.0
    %2406 = vmatprep.subr.mxu0 0.0
    %2407 = vmatpush1.msra.mxu0 0.0
    %2408 = vmatprep.subr.mxu0 0.0
    %2409 = vmatpush1.msra.mxu0 0.0
    %2410 = vmatprep.subr.mxu0 0.0
    %2411 = vmatpush1.msra.mxu0 0.0
    %2412 = vmatprep.subr.mxu0 0.0
    %2413 = vmatpush1.msra.mxu0 0.0
    %2414 = vmatprep.subr.mxu0 0.0
    %2415 = vmatpush1.msra.mxu0 0.0
    %2416 = vmatprep.subr.mxu0 0.0
    %2417 = vmatpush1.msra.mxu0 0.0
    %2418 = vmatprep.subr.mxu0 0.0
    %2419 = vmatpush1.msra.mxu0 0.0
    %2420 = vmatprep.subr.mxu0 0.0
    %2421 = vmatpush1.msra.mxu0 0.0
    %2422 = vmatprep.subr.mxu0 0.0
    %2423 = vmatpush1.msra.mxu0 0.0
    %2424 = vmatprep.subr.mxu0 0.0
    %2425 = vmatpush1.msra.mxu0 0.0
    %2426 = vmatprep.mubr.f32.mxu0 0.0
    %2427 = vmatmul.mubr.f32.gmra.mrb[0].mxu0 %v2315
    %v2428 = vpop.f32.mrb[0].mxu0
    %v2429 = vadd.f32 %v2313, %v2428
    %v2430 = vpop.f32.mrb[0].mxu0
    %2431 = vmatprep.mubr.f32.mxu0 0.0
    %2432 = vmatmul.mubr.f32.gmra.mrb[0].mxu0 %v2318
    %v2433 = vpop.f32.mrb[0].mxu0
    %v2434 = vadd.f32 %v2313, %v2433
    %v2435 = vpop.f32.mrb[0].mxu0
    %2436 = vmatprep.mubr.f32.mxu0 0.0
    %2437 = vmatmul.mubr.f32.gmra.mrb[0].mxu0 %v2321
    %v2438 = vpop.f32.mrb[0].mxu0
    %v2439 = vadd.f32 %v2313, %v2438
    %v2440 = vpop.f32.mrb[0].mxu0
    %2441 = vmatprep.mubr.f32.mxu0 0.0
    %2442 = vmatmul.mubr.f32.gmra.mrb[0].mxu0 %v2324
    %v2443 = vpop.f32.mrb[0].mxu0
    %v2444 = vadd.f32 %v2313, %v2443
    %v2445 = vpop.f32.mrb[0].mxu0
    %2446 = vmatprep.mubr.f32.mxu0 0.0
    %2447 = vmatmul.mubr.f32.gmra.mrb[0].mxu0 %v2327
    %v2448 = vpop.f32.mrb[0].mxu0
    %v2449 = vadd.f32 %v2313, %v2448
    %v2450 = vpop.f32.mrb[0].mxu0
    %2451 = vmatprep.mubr.f32.mxu0 0.0
    %2452 = vmatmul.mubr.f32.gmra.mrb[0].mxu0 %v2330
    %v2453 = vpop.f32.mrb[0].mxu0
    %v2454 = vadd.f32 %v2313, %v2453
    %v2455 = vpop.f32.mrb[0].mxu0
    %2456 = vmatprep.mubr.f32.mxu0 0.0
    %2457 = vmatmul.mubr.f32.gmra.mrb[0].mxu0 %v2333
    %v2458 = vpop.f32.mrb[0].mxu0
    %v2459 = vadd.f32 %v2313, %v2458
    %v2460 = vpop.f32.mrb[0].mxu0
    %2461 = vmatprep.mubr.f32.mxu0 0.0
    %2462 = vmatmul.mubr.f32.gmra.mrb[0].mxu0 %v2336
    %v2463 = vpop.f32.mrb[0].mxu0
    %v2464 = vadd.f32 %v2313, %v2463
    %v2465 = vpop.f32.mrb[0].mxu0
    %2466 = vmatprep.mubr.f32.mxu0 0.0
    %2467 = vmatmul.mubr.f32.gmra.mrb[0].mxu0 %v2339
    %v2468 = vpop.f32.mrb[0].mxu0
    %v2469 = vadd.f32 %v2313, %v2468
    %v2470 = vpop.f32.mrb[0].mxu0
    %2471 = vmatprep.mubr.f32.mxu0 0.0
    %2472 = vmatmul.mubr.f32.gmra.mrb[0].mxu0 %v2342
    %v2473 = vpop.f32.mrb[0].mxu0
    %v2474 = vadd.f32 %v2313, %v2473
    %v2475 = vpop.f32.mrb[0].mxu0
    %2476 = vmatprep.mubr.f32.mxu0 0.0
    %2477 = vmatmul.mubr.f32.gmra.mrb[0].mxu0 %v2345
    %v2478 = vpop.f32.mrb[0].mxu0
    %v2479 = vadd.f32 %v2313, %v2478
    %v2480 = vpop.f32.mrb[0].mxu0
    %2481 = vmatprep.mubr.f32.mxu0 0.0
    %2482 = vmatmul.mubr.f32.gmra.mrb[0].mxu0 %v2348
    %v2483 = vpop.f32.mrb[0].mxu0
    %v2484 = vadd.f32 %v2313, %v2483
    %v2485 = vpop.f32.mrb[0].mxu0
    %2486 = vmatprep.mubr.f32.mxu0 0.0
    %2487 = vmatmul.mubr.f32.gmra.mrb[0].mxu0 %v2351
    %v2488 = vpop.f32.mrb[0].mxu0
    %v2489 = vadd.f32 %v2313, %v2488
    %v2490 = vpop.f32.mrb[0].mxu0
    %2491 = vmatprep.mubr.f32.mxu0 0.0
    %2492 = vmatmul.mubr.f32.gmra.mrb[0].mxu0 %v2354
    %v2493 = vpop.f32.mrb[0].mxu0
    %v2494 = vadd.f32 %v2313, %v2493
    %v2495 = vpop.f32.mrb[0].mxu0
    %2496 = vmatprep.mubr.f32.mxu0 0.0
    %2497 = vmatmul.mubr.f32.gmra.mrb[0].mxu0 %v2357
    %v2498 = vpop.f32.mrb[0].mxu0
    %v2499 = vadd.f32 %v2313, %v2498
    %v2500 = vpop.f32.mrb[0].mxu0
    %2501 = vmatprep.mubr.f32.mxu0 0.0
    %2502 = vmatmul.mubr.f32.gmra.mrb[0].mxu0 %v2360
    %v2503 = vpop.f32.mrb[0].mxu0
    %v2504 = vadd.f32 %v2313, %v2503
    %v2505 = vpop.f32.mrb[0].mxu0
    %2506 = vdwg.mxu0
    %v2507 = vmul.f32 %v2429, %v651
    %v2508 = vmul.f32 %v2434, %v652
    %v2509 = vmul.f32 %v2439, %v653
    %v2510 = vmul.f32 %v2444, %v654
    %v2511 = vmul.f32 %v2449, %v655
    %v2512 = vmul.f32 %v2454, %v656
    %v2513 = vmul.f32 %v2459, %v657
    %v2514 = vmul.f32 %v2464, %v658
    %v2515 = vmul.f32 %v2469, %v659
    %v2516 = vmul.f32 %v2474, %v660
    %v2517 = vmul.f32 %v2479, %v661
    %v2518 = vmul.f32 %v2484, %v662
    %v2519 = vmul.f32 %v2489, %v663
    %v2520 = vmul.f32 %v2494, %v664
    %v2521 = vmul.f32 %v2499, %v665
    %v2522 = vmul.f32 %v2504, %v666
    %v2523 = vld [vmem:[#allocation2 + $0x3f8] sm:$0xff]
    %v2524 = vld [vmem:[#allocation2 + $0x400] sm:$0xff]
    %v2525 = vld [vmem:[#allocation2 + $0x408] sm:$0xff]
    %v2526 = vld [vmem:[#allocation2 + $0x410] sm:$0xff]
    %v2527 = vld [vmem:[#allocation2 + $0x418] sm:$0x1]
    %v2528 = vlaneseq
    %v2529 = vshrl.u32 %v2528, 7
    %v2530 = vsub.s32 0, %v2529
    %v2531 = vrot.slane %v2527, %v2530
    %2532 = vmatprep.subr.mxu0 0.0
    %2533 = vmatpush1.msra.mxu0 %v2523
    %2534 = vmatprep.subr.mxu0 0.0
    %2535 = vmatpush1.msra.mxu0 %v2524
    %2536 = vmatprep.subr.mxu0 0.0
    %2537 = vmatpush1.msra.mxu0 %v2525
    %2538 = vmatprep.subr.mxu0 0.0
    %2539 = vmatpush1.msra.mxu0 %v2526
    %2540 = vmatprep.subr.mxu0 0.0
    %2541 = vmatpush1.msra.mxu0 0.0
    %2542 = vmatprep.subr.mxu0 0.0
    %2543 = vmatpush1.msra.mxu0 0.0
    %2544 = vmatprep.subr.mxu0 0.0
    %2545 = vmatpush1.msra.mxu0 0.0
    %2546 = vmatprep.subr.mxu0 0.0
    %2547 = vmatpush1.msra.mxu0 0.0
    %2548 = vmatprep.subr.mxu0 0.0
    %2549 = vmatpush1.msra.mxu0 0.0
    %2550 = vmatprep.subr.mxu0 0.0
    %2551 = vmatpush1.msra.mxu0 0.0
    %2552 = vmatprep.subr.mxu0 0.0
    %2553 = vmatpush1.msra.mxu0 0.0
    %2554 = vmatprep.subr.mxu0 0.0
    %2555 = vmatpush1.msra.mxu0 0.0
    %2556 = vmatprep.subr.mxu0 0.0
    %2557 = vmatpush1.msra.mxu0 0.0
    %2558 = vmatprep.subr.mxu0 0.0
    %2559 = vmatpush1.msra.mxu0 0.0
    %2560 = vmatprep.subr.mxu0 0.0
    %2561 = vmatpush1.msra.mxu0 0.0
    %2562 = vmatprep.subr.mxu0 0.0
    %2563 = vmatpush1.msra.mxu0 0.0
    %2564 = vmatprep.subr.mxu0 0.0
    %2565 = vmatpush1.msra.mxu0 0.0
    %2566 = vmatprep.subr.mxu0 0.0
    %2567 = vmatpush1.msra.mxu0 0.0
    %2568 = vmatprep.subr.mxu0 0.0
    %2569 = vmatpush1.msra.mxu0 0.0
    %2570 = vmatprep.subr.mxu0 0.0
    %2571 = vmatpush1.msra.mxu0 0.0
    %2572 = vmatprep.subr.mxu0 0.0
    %2573 = vmatpush1.msra.mxu0 0.0
    %2574 = vmatprep.subr.mxu0 0.0
    %2575 = vmatpush1.msra.mxu0 0.0
    %2576 = vmatprep.subr.mxu0 0.0
    %2577 = vmatpush1.msra.mxu0 0.0
    %2578 = vmatprep.subr.mxu0 0.0
    %2579 = vmatpush1.msra.mxu0 0.0
    %2580 = vmatprep.subr.mxu0 0.0
    %2581 = vmatpush1.msra.mxu0 0.0
    %2582 = vmatprep.subr.mxu0 0.0
    %2583 = vmatpush1.msra.mxu0 0.0
    %2584 = vmatprep.subr.mxu0 0.0
    %2585 = vmatpush1.msra.mxu0 0.0
    %2586 = vmatprep.subr.mxu0 0.0
    %2587 = vmatpush1.msra.mxu0 0.0
    %2588 = vmatprep.subr.mxu0 0.0
    %2589 = vmatpush1.msra.mxu0 0.0
    %2590 = vmatprep.subr.mxu0 0.0
    %2591 = vmatpush1.msra.mxu0 0.0
    %2592 = vmatprep.subr.mxu0 0.0
    %2593 = vmatpush1.msra.mxu0 0.0
    %2594 = vmatprep.subr.mxu0 0.0
    %2595 = vmatpush1.msra.mxu0 0.0
    %2596 = vmatprep.mubr.f32.mxu0 0.0
    %2597 = vmatmul.mubr.f32.gmra.mrb[0].mxu0 %v2315
    %v2598 = vpop.f32.mrb[0].mxu0
    %v2599 = vadd.f32 %v2531, %v2598
    %v2600 = vpop.f32.mrb[0].mxu0
    %2601 = vmatprep.mubr.f32.mxu0 0.0
    %2602 = vmatmul.mubr.f32.gmra.mrb[0].mxu0 %v2318
    %v2603 = vpop.f32.mrb[0].mxu0
    %v2604 = vadd.f32 %v2531, %v2603
    %v2605 = vpop.f32.mrb[0].mxu0
    %2606 = vmatprep.mubr.f32.mxu0 0.0
    %2607 = vmatmul.mubr.f32.gmra.mrb[0].mxu0 %v2321
    %v2608 = vpop.f32.mrb[0].mxu0
    %v2609 = vadd.f32 %v2531, %v2608
    %v2610 = vpop.f32.mrb[0].mxu0
    %2611 = vmatprep.mubr.f32.mxu0 0.0
    %2612 = vmatmul.mubr.f32.gmra.mrb[0].mxu0 %v2324
    %v2613 = vpop.f32.mrb[0].mxu0
    %v2614 = vadd.f32 %v2531, %v2613
    %v2615 = vpop.f32.mrb[0].mxu0
    %2616 = vmatprep.mubr.f32.mxu0 0.0
    %2617 = vmatmul.mubr.f32.gmra.mrb[0].mxu0 %v2327
    %v2618 = vpop.f32.mrb[0].mxu0
    %v2619 = vadd.f32 %v2531, %v2618
    %v2620 = vpop.f32.mrb[0].mxu0
    %2621 = vmatprep.mubr.f32.mxu0 0.0
    %2622 = vmatmul.mubr.f32.gmra.mrb[0].mxu0 %v2330
    %v2623 = vpop.f32.mrb[0].mxu0
    %v2624 = vadd.f32 %v2531, %v2623
    %v2625 = vpop.f32.mrb[0].mxu0
    %2626 = vmatprep.mubr.f32.mxu0 0.0
    %2627 = vmatmul.mubr.f32.gmra.mrb[0].mxu0 %v2333
    %v2628 = vpop.f32.mrb[0].mxu0
    %v2629 = vadd.f32 %v2531, %v2628
    %v2630 = vpop.f32.mrb[0].mxu0
    %2631 = vmatprep.mubr.f32.mxu0 0.0
    %2632 = vmatmul.mubr.f32.gmra.mrb[0].mxu0 %v2336
    %v2633 = vpop.f32.mrb[0].mxu0
    %v2634 = vadd.f32 %v2531, %v2633
    %v2635 = vpop.f32.mrb[0].mxu0
    %2636 = vmatprep.mubr.f32.mxu0 0.0
    %2637 = vmatmul.mubr.f32.gmra.mrb[0].mxu0 %v2339
    %v2638 = vpop.f32.mrb[0].mxu0
    %v2639 = vadd.f32 %v2531, %v2638
    %v2640 = vpop.f32.mrb[0].mxu0
    %2641 = vmatprep.mubr.f32.mxu0 0.0
    %2642 = vmatmul.mubr.f32.gmra.mrb[0].mxu0 %v2342
    %v2643 = vpop.f32.mrb[0].mxu0
    %v2644 = vadd.f32 %v2531, %v2643
    %v2645 = vpop.f32.mrb[0].mxu0
    %2646 = vmatprep.mubr.f32.mxu0 0.0
    %2647 = vmatmul.mubr.f32.gmra.mrb[0].mxu0 %v2345
    %v2648 = vpop.f32.mrb[0].mxu0
    %v2649 = vadd.f32 %v2531, %v2648
    %v2650 = vpop.f32.mrb[0].mxu0
    %2651 = vmatprep.mubr.f32.mxu0 0.0
    %2652 = vmatmul.mubr.f32.gmra.mrb[0].mxu0 %v2348
    %v2653 = vpop.f32.mrb[0].mxu0
    %v2654 = vadd.f32 %v2531, %v2653
    %v2655 = vpop.f32.mrb[0].mxu0
    %2656 = vmatprep.mubr.f32.mxu0 0.0
    %2657 = vmatmul.mubr.f32.gmra.mrb[0].mxu0 %v2351
    %v2658 = vpop.f32.mrb[0].mxu0
    %v2659 = vadd.f32 %v2531, %v2658
    %v2660 = vpop.f32.mrb[0].mxu0
    %2661 = vmatprep.mubr.f32.mxu0 0.0
    %2662 = vmatmul.mubr.f32.gmra.mrb[0].mxu0 %v2354
    %v2663 = vpop.f32.mrb[0].mxu0
    %v2664 = vadd.f32 %v2531, %v2663
    %v2665 = vpop.f32.mrb[0].mxu0
    %2666 = vmatprep.mubr.f32.mxu0 0.0
    %2667 = vmatmul.mubr.f32.gmra.mrb[0].mxu0 %v2357
    %v2668 = vpop.f32.mrb[0].mxu0
    %v2669 = vadd.f32 %v2531, %v2668
    %v2670 = vpop.f32.mrb[0].mxu0
    %2671 = vmatprep.mubr.f32.mxu0 0.0
    %2672 = vmatmul.mubr.f32.gmra.mrb[0].mxu0 %v2360
    %v2673 = vpop.f32.mrb[0].mxu0
    %v2674 = vadd.f32 %v2531, %v2673
    %v2675 = vpop.f32.mrb[0].mxu0
    %2676 = vdwg.mxu0
    %v2677 = vmul.f32 %v2599, %v651
    %v2678 = vmul.f32 %v2604, %v652
    %v2679 = vmul.f32 %v2609, %v653
    %v2680 = vmul.f32 %v2614, %v654
    %v2681 = vmul.f32 %v2619, %v655
    %v2682 = vmul.f32 %v2624, %v656
    %v2683 = vmul.f32 %v2629, %v657
    %v2684 = vmul.f32 %v2634, %v658
    %v2685 = vmul.f32 %v2639, %v659
    %v2686 = vmul.f32 %v2644, %v660
    %v2687 = vmul.f32 %v2649, %v661
    %v2688 = vmul.f32 %v2654, %v662
    %v2689 = vmul.f32 %v2659, %v663
    %v2690 = vmul.f32 %v2664, %v664
    %v2691 = vmul.f32 %v2669, %v665
    %v2692 = vmul.f32 %v2674, %v666
    %v2694 = vsel %vm168, %v2507, 0
    %v2697 = vsel %vm168, %v2508, 0
    %v2700 = vsel %vm168, %v2509, 0
    %v2703 = vsel %vm168, %v2510, 0
    %v2706 = vsel %vm168, %v2511, 0
    %v2709 = vsel %vm168, %v2512, 0
    %v2712 = vsel %vm168, %v2513, 0
    %v2715 = vsel %vm168, %v2514, 0
    %v2718 = vsel %vm168, %v2515, 0
    %v2721 = vsel %vm168, %v2516, 0
    %v2724 = vsel %vm168, %v2517, 0
    %v2727 = vsel %vm168, %v2518, 0
    %v2730 = vsel %vm168, %v2519, 0
    %v2733 = vsel %vm168, %v2520, 0
    %v2736 = vsel %vm168, %v2521, 0
    %v2739 = vsel %vm168, %v2522, 0
    %v2742 = vsel %vm168, %v2677, 0
    %v2745 = vsel %vm168, %v2678, 0
    %v2748 = vsel %vm168, %v2679, 0
    %v2751 = vsel %vm168, %v2680, 0
    %v2754 = vsel %vm168, %v2681, 0
    %v2757 = vsel %vm168, %v2682, 0
    %v2760 = vsel %vm168, %v2683, 0
    %v2763 = vsel %vm168, %v2684, 0
    %v2766 = vsel %vm168, %v2685, 0
    %v2769 = vsel %vm168, %v2686, 0
    %v2772 = vsel %vm168, %v2687, 0
    %v2775 = vsel %vm168, %v2688, 0
    %v2778 = vsel %vm168, %v2689, 0
    %v2781 = vsel %vm168, %v2690, 0
    %v2784 = vsel %vm168, %v2691, 0
    %v2787 = vsel %vm168, %v2692, 0
    %2789 = vmatprep.subr.mxu0 0.0
    %2790 = vmatpush1.xpose.msra.mxu0 %v2742
    %2791 = vmatprep.subr.mxu0 0.0
    %2792 = vmatpush1.xpose.msra.mxu0 %v2745
    %2793 = vmatprep.subr.mxu0 0.0
    %2794 = vmatpush1.xpose.msra.mxu0 %v2748
    %2795 = vmatprep.subr.mxu0 0.0
    %2796 = vmatpush1.xpose.msra.mxu0 %v2751
    %2797 = vmatprep.subr.mxu0 0.0
    %2798 = vmatpush1.xpose.msra.mxu0 %v2754
    %2799 = vmatprep.subr.mxu0 0.0
    %2800 = vmatpush1.xpose.msra.mxu0 %v2757
    %2801 = vmatprep.subr.mxu0 0.0
    %2802 = vmatpush1.xpose.msra.mxu0 %v2760
    %2803 = vmatprep.subr.mxu0 0.0
    %2804 = vmatpush1.xpose.msra.mxu0 %v2763
    %2805 = vmatprep.subr.mxu0 0.0
    %2806 = vmatpush1.xpose.msra.mxu0 %v2766
    %2807 = vmatprep.subr.mxu0 0.0
    %2808 = vmatpush1.xpose.msra.mxu0 %v2769
    %2809 = vmatprep.subr.mxu0 0.0
    %2810 = vmatpush1.xpose.msra.mxu0 %v2772
    %2811 = vmatprep.subr.mxu0 0.0
    %2812 = vmatpush1.xpose.msra.mxu0 %v2775
    %2813 = vmatprep.subr.mxu0 0.0
    %2814 = vmatpush1.xpose.msra.mxu0 %v2778
    %2815 = vmatprep.subr.mxu0 0.0
    %2816 = vmatpush1.xpose.msra.mxu0 %v2781
    %2817 = vmatprep.subr.mxu0 0.0
    %2818 = vmatpush1.xpose.msra.mxu0 %v2784
    %2819 = vmatprep.subr.mxu0 0.0
    %2820 = vmatpush1.xpose.msra.mxu0 %v2787
    %2821 = vmatprep.subr.mxu0 0.0
    %2822 = vmatpush1.xpose.msra.mxu0 0.0
    %2823 = vmatprep.subr.mxu0 0.0
    %2824 = vmatpush1.xpose.msra.mxu0 0.0
    %2825 = vmatprep.subr.mxu0 0.0
    %2826 = vmatpush1.xpose.msra.mxu0 0.0
    %2827 = vmatprep.subr.mxu0 0.0
    %2828 = vmatpush1.xpose.msra.mxu0 0.0
    %2829 = vmatprep.subr.mxu0 0.0
    %2830 = vmatpush1.xpose.msra.mxu0 0.0
    %2831 = vmatprep.subr.mxu0 0.0
    %2832 = vmatpush1.xpose.msra.mxu0 0.0
    %2833 = vmatprep.subr.mxu0 0.0
    %2834 = vmatpush1.xpose.msra.mxu0 0.0
    %2835 = vmatprep.subr.mxu0 0.0
    %2836 = vmatpush1.xpose.msra.mxu0 0.0
    %2837 = vmatprep.subr.mxu0 0.0
    %2838 = vmatpush1.xpose.msra.mxu0 0.0
    %2839 = vmatprep.subr.mxu0 0.0
    %2840 = vmatpush1.xpose.msra.mxu0 0.0
    %2841 = vmatprep.subr.mxu0 0.0
    %2842 = vmatpush1.xpose.msra.mxu0 0.0
    %2843 = vmatprep.subr.mxu0 0.0
    %2844 = vmatpush1.xpose.msra.mxu0 0.0
    %2845 = vmatprep.subr.mxu0 0.0
    %2846 = vmatpush1.xpose.msra.mxu0 0.0
    %2847 = vmatprep.subr.mxu0 0.0
    %2848 = vmatpush1.xpose.msra.mxu0 0.0
    %2849 = vmatprep.subr.mxu0 0.0
    %2850 = vmatpush1.xpose.msra.mxu0 0.0
    %2851 = vmatprep.subr.mxu0 0.0
    %2852 = vmatpush1.xpose.msra.mxu0 0.0
    %2853 = vmatprep.mubr.f32.mxu0 0.0
    %2854 = vmatmul.mubr.f32.gmra.mrb[0].mxu0 %v2694
    %v2855 = vpop.f32.mrb[0].mxu0
    %v2856 = vadd.f32 %v853, %v2855
    %v2857 = vpop.f32.mrb[0].mxu0
    %2858 = vmatprep.mubr.f32.mxu0 0.0
    %2859 = vmatmul.mubr.f32.gmra.mrb[0].mxu0 %v2697
    %v2860 = vpop.f32.mrb[0].mxu0
    %v2861 = vadd.f32 %v854, %v2860
    %v2862 = vpop.f32.mrb[0].mxu0
    %2863 = vmatprep.mubr.f32.mxu0 0.0
    %2864 = vmatmul.mubr.f32.gmra.mrb[0].mxu0 %v2700
    %v2865 = vpop.f32.mrb[0].mxu0
    %v2866 = vadd.f32 %v855, %v2865
    %v2867 = vpop.f32.mrb[0].mxu0
    %2868 = vmatprep.mubr.f32.mxu0 0.0
    %2869 = vmatmul.mubr.f32.gmra.mrb[0].mxu0 %v2703
    %v2870 = vpop.f32.mrb[0].mxu0
    %v2871 = vadd.f32 %v856, %v2870
    %v2872 = vpop.f32.mrb[0].mxu0
    %2873 = vmatprep.mubr.f32.mxu0 0.0
    %2874 = vmatmul.mubr.f32.gmra.mrb[0].mxu0 %v2706
    %v2875 = vpop.f32.mrb[0].mxu0
    %v2876 = vadd.f32 %v857, %v2875
    %v2877 = vpop.f32.mrb[0].mxu0
    %2878 = vmatprep.mubr.f32.mxu0 0.0
    %2879 = vmatmul.mubr.f32.gmra.mrb[0].mxu0 %v2709
    %v2880 = vpop.f32.mrb[0].mxu0
    %v2881 = vadd.f32 %v858, %v2880
    %v2882 = vpop.f32.mrb[0].mxu0
    %2883 = vmatprep.mubr.f32.mxu0 0.0
    %2884 = vmatmul.mubr.f32.gmra.mrb[0].mxu0 %v2712
    %v2885 = vpop.f32.mrb[0].mxu0
    %v2886 = vadd.f32 %v859, %v2885
    %v2887 = vpop.f32.mrb[0].mxu0
    %2888 = vmatprep.mubr.f32.mxu0 0.0
    %2889 = vmatmul.mubr.f32.gmra.mrb[0].mxu0 %v2715
    %v2890 = vpop.f32.mrb[0].mxu0
    %v2891 = vadd.f32 %v860, %v2890
    %v2892 = vpop.f32.mrb[0].mxu0
    %2893 = vmatprep.mubr.f32.mxu0 0.0
    %2894 = vmatmul.mubr.f32.gmra.mrb[0].mxu0 %v2718
    %v2895 = vpop.f32.mrb[0].mxu0
    %v2896 = vadd.f32 %v861, %v2895
    %v2897 = vpop.f32.mrb[0].mxu0
    %2898 = vmatprep.mubr.f32.mxu0 0.0
    %2899 = vmatmul.mubr.f32.gmra.mrb[0].mxu0 %v2721
    %v2900 = vpop.f32.mrb[0].mxu0
    %v2901 = vadd.f32 %v862, %v2900
    %v2902 = vpop.f32.mrb[0].mxu0
    %2903 = vmatprep.mubr.f32.mxu0 0.0
    %2904 = vmatmul.mubr.f32.gmra.mrb[0].mxu0 %v2724
    %v2905 = vpop.f32.mrb[0].mxu0
    %v2906 = vadd.f32 %v863, %v2905
    %v2907 = vpop.f32.mrb[0].mxu0
    %2908 = vmatprep.mubr.f32.mxu0 0.0
    %2909 = vmatmul.mubr.f32.gmra.mrb[0].mxu0 %v2727
    %v2910 = vpop.f32.mrb[0].mxu0
    %v2911 = vadd.f32 %v864, %v2910
    %v2912 = vpop.f32.mrb[0].mxu0
    %2913 = vmatprep.mubr.f32.mxu0 0.0
    %2914 = vmatmul.mubr.f32.gmra.mrb[0].mxu0 %v2730
    %v2915 = vpop.f32.mrb[0].mxu0
    %v2916 = vadd.f32 %v865, %v2915
    %v2917 = vpop.f32.mrb[0].mxu0
    %2918 = vmatprep.mubr.f32.mxu0 0.0
    %2919 = vmatmul.mubr.f32.gmra.mrb[0].mxu0 %v2733
    %v2920 = vpop.f32.mrb[0].mxu0
    %v2921 = vadd.f32 %v866, %v2920
    %v2922 = vpop.f32.mrb[0].mxu0
    %2923 = vmatprep.mubr.f32.mxu0 0.0
    %2924 = vmatmul.mubr.f32.gmra.mrb[0].mxu0 %v2736
    %v2925 = vpop.f32.mrb[0].mxu0
    %v2926 = vadd.f32 %v867, %v2925
    %v2927 = vpop.f32.mrb[0].mxu0
    %2928 = vmatprep.mubr.f32.mxu0 0.0
    %2929 = vmatmul.mubr.f32.gmra.mrb[0].mxu0 %v2739
    %v2930 = vpop.f32.mrb[0].mxu0
    %v2931 = vadd.f32 %v868, %v2930
    %v2932 = vpop.f32.mrb[0].mxu0
    %2933 = vdwg.mxu0
    %2934 = vmax.xlane.f32.xlu0 %v2856
    %v2935 = vpop.xlane.xlu0 %2934
    %2936 = vmax.xlane.f32.xlu0 %v2861
    %v2937 = vpop.xlane.xlu0 %2936
    %2938 = vmax.xlane.f32.xlu0 %v2866
    %v2939 = vpop.xlane.xlu0 %2938
    %2940 = vmax.xlane.f32.xlu0 %v2871
    %v2941 = vpop.xlane.xlu0 %2940
    %2942 = vmax.xlane.f32.xlu0 %v2876
    %v2943 = vpop.xlane.xlu0 %2942
    %2944 = vmax.xlane.f32.xlu0 %v2881
    %v2945 = vpop.xlane.xlu0 %2944
    %2946 = vmax.xlane.f32.xlu0 %v2886
    %v2947 = vpop.xlane.xlu0 %2946
    %2948 = vmax.xlane.f32.xlu0 %v2891
    %v2949 = vpop.xlane.xlu0 %2948
    %2950 = vmax.xlane.f32.xlu0 %v2896
    %v2951 = vpop.xlane.xlu0 %2950
    %2952 = vmax.xlane.f32.xlu0 %v2901
    %v2953 = vpop.xlane.xlu0 %2952
    %2954 = vmax.xlane.f32.xlu0 %v2906
    %v2955 = vpop.xlane.xlu0 %2954
    %2956 = vmax.xlane.f32.xlu0 %v2911
    %v2957 = vpop.xlane.xlu0 %2956
    %2958 = vmax.xlane.f32.xlu0 %v2916
    %v2959 = vpop.xlane.xlu0 %2958
    %2960 = vmax.xlane.f32.xlu0 %v2921
    %v2961 = vpop.xlane.xlu0 %2960
    %2962 = vmax.xlane.f32.xlu0 %v2926
    %v2963 = vpop.xlane.xlu0 %2962
    %2964 = vmax.xlane.f32.xlu0 %v2931
    %v2965 = vpop.xlane.xlu0 %2964
    %v2966 = vsub.f32 %v2856, %v2935
    %v2967 = vsub.f32 %v2861, %v2937
    %v2968 = vsub.f32 %v2866, %v2939
    %v2969 = vsub.f32 %v2871, %v2941
    %v2970 = vsub.f32 %v2876, %v2943
    %v2971 = vsub.f32 %v2881, %v2945
    %v2972 = vsub.f32 %v2886, %v2947
    %v2973 = vsub.f32 %v2891, %v2949
    %v2974 = vsub.f32 %v2896, %v2951
    %v2975 = vsub.f32 %v2901, %v2953
    %v2976 = vsub.f32 %v2906, %v2955
    %v2977 = vsub.f32 %v2911, %v2957
    %v2978 = vsub.f32 %v2916, %v2959
    %v2979 = vsub.f32 %v2921, %v2961
    %v2980 = vsub.f32 %v2926, %v2963
    %v2981 = vsub.f32 %v2931, %v2965
    %v2982 = vmul.f32 %v2966, 1.442695
    %v2983 = vpow.pop %v2982
    %v2984 = vmul.f32 %v2967, 1.442695
    %v2985 = vpow.pop %v2984
    %v2986 = vmul.f32 %v2968, 1.442695
    %v2987 = vpow.pop %v2986
    %v2988 = vmul.f32 %v2969, 1.442695
    %v2989 = vpow.pop %v2988
    %v2990 = vmul.f32 %v2970, 1.442695
    %v2991 = vpow.pop %v2990
    %v2992 = vmul.f32 %v2971, 1.442695
    %v2993 = vpow.pop %v2992
    %v2994 = vmul.f32 %v2972, 1.442695
    %v2995 = vpow.pop %v2994
    %v2996 = vmul.f32 %v2973, 1.442695
    %v2997 = vpow.pop %v2996
    %v2998 = vmul.f32 %v2974, 1.442695
    %v2999 = vpow.pop %v2998
    %v3000 = vmul.f32 %v2975, 1.442695
    %v3001 = vpow.pop %v3000
    %v3002 = vmul.f32 %v2976, 1.442695
    %v3003 = vpow.pop %v3002
    %v3004 = vmul.f32 %v2977, 1.442695
    %v3005 = vpow.pop %v3004
    %v3006 = vmul.f32 %v2978, 1.442695
    %v3007 = vpow.pop %v3006
    %v3008 = vmul.f32 %v2979, 1.442695
    %v3009 = vpow.pop %v3008
    %v3010 = vmul.f32 %v2980, 1.442695
    %v3011 = vpow.pop %v3010
    %v3012 = vmul.f32 %v2981, 1.442695
    %v3013 = vpow.pop %v3012
    %3014 = vadd.xlane.f32.xlu0 %v2983
    %v3015 = vpop.xlane.xlu0 %3014
    %3016 = vadd.xlane.f32.xlu0 %v2985
    %v3017 = vpop.xlane.xlu0 %3016
    %3018 = vadd.xlane.f32.xlu0 %v2987
    %v3019 = vpop.xlane.xlu0 %3018
    %3020 = vadd.xlane.f32.xlu0 %v2989
    %v3021 = vpop.xlane.xlu0 %3020
    %3022 = vadd.xlane.f32.xlu0 %v2991
    %v3023 = vpop.xlane.xlu0 %3022
    %3024 = vadd.xlane.f32.xlu0 %v2993
    %v3025 = vpop.xlane.xlu0 %3024
    %3026 = vadd.xlane.f32.xlu0 %v2995
    %v3027 = vpop.xlane.xlu0 %3026
    %3028 = vadd.xlane.f32.xlu0 %v2997
    %v3029 = vpop.xlane.xlu0 %3028
    %3030 = vadd.xlane.f32.xlu0 %v2999
    %v3031 = vpop.xlane.xlu0 %3030
    %3032 = vadd.xlane.f32.xlu0 %v3001
    %v3033 = vpop.xlane.xlu0 %3032
    %3034 = vadd.xlane.f32.xlu0 %v3003
    %v3035 = vpop.xlane.xlu0 %3034
    %3036 = vadd.xlane.f32.xlu0 %v3005
    %v3037 = vpop.xlane.xlu0 %3036
    %3038 = vadd.xlane.f32.xlu0 %v3007
    %v3039 = vpop.xlane.xlu0 %3038
    %3040 = vadd.xlane.f32.xlu0 %v3009
    %v3041 = vpop.xlane.xlu0 %3040
    %3042 = vadd.xlane.f32.xlu0 %v3011
    %v3043 = vpop.xlane.xlu0 %3042
    %3044 = vadd.xlane.f32.xlu0 %v3013
    %v3045 = vpop.xlane.xlu0 %3044
    %v3046 = vrcp.pop %v3015
    %v3047 = vmul.f32 %v2983, %v3046
    %v3048 = vrcp.pop %v3017
    %v3049 = vmul.f32 %v2985, %v3048
    %v3050 = vrcp.pop %v3019
    %v3051 = vmul.f32 %v2987, %v3050
    %v3052 = vrcp.pop %v3021
    %v3053 = vmul.f32 %v2989, %v3052
    %v3054 = vrcp.pop %v3023
    %v3055 = vmul.f32 %v2991, %v3054
    %v3056 = vrcp.pop %v3025
    %v3057 = vmul.f32 %v2993, %v3056
    %v3058 = vrcp.pop %v3027
    %v3059 = vmul.f32 %v2995, %v3058
    %v3060 = vrcp.pop %v3029
    %v3061 = vmul.f32 %v2997, %v3060
    %v3062 = vrcp.pop %v3031
    %v3063 = vmul.f32 %v2999, %v3062
    %v3064 = vrcp.pop %v3033
    %v3065 = vmul.f32 %v3001, %v3064
    %v3066 = vrcp.pop %v3035
    %v3067 = vmul.f32 %v3003, %v3066
    %v3068 = vrcp.pop %v3037
    %v3069 = vmul.f32 %v3005, %v3068
    %v3070 = vrcp.pop %v3039
    %v3071 = vmul.f32 %v3007, %v3070
    %v3072 = vrcp.pop %v3041
    %v3073 = vmul.f32 %v3009, %v3072
    %v3074 = vrcp.pop %v3043
    %v3075 = vmul.f32 %v3011, %v3074
    %v3076 = vrcp.pop %v3045
    %v3077 = vmul.f32 %v3013, %v3076
    %v3078 = vld [vmem:[#allocation2 + $0x420] sm:$0xff]
    %v3079 = vld [vmem:[#allocation2 + $0x428] sm:$0xff]
    %v3080 = vld [vmem:[#allocation2 + $0x430] sm:$0xff]
    %v3081 = vld [vmem:[#allocation2 + $0x438] sm:$0xff]
    %v3082 = vld [vmem:[#allocation2 + $0x440] sm:$0x1]
    %v3083 = vlaneseq
    %v3084 = vshrl.u32 %v3083, 7
    %v3085 = vsub.s32 0, %v3084
    %v3086 = vrot.slane %v3082, %v3085
    %3087 = vmatprep.subr.mxu0 0.0
    %3088 = vmatpush1.msra.mxu0 %v3078
    %3089 = vmatprep.subr.mxu0 0.0
    %3090 = vmatpush1.msra.mxu0 %v3079
    %3091 = vmatprep.subr.mxu0 0.0
    %3092 = vmatpush1.msra.mxu0 %v3080
    %3093 = vmatprep.subr.mxu0 0.0
    %3094 = vmatpush1.msra.mxu0 %v3081
    %3095 = vmatprep.subr.mxu0 0.0
    %3096 = vmatpush1.msra.mxu0 0.0
    %3097 = vmatprep.subr.mxu0 0.0
    %3098 = vmatpush1.msra.mxu0 0.0
    %3099 = vmatprep.subr.mxu0 0.0
    %3100 = vmatpush1.msra.mxu0 0.0
    %3101 = vmatprep.subr.mxu0 0.0
    %3102 = vmatpush1.msra.mxu0 0.0
    %3103 = vmatprep.subr.mxu0 0.0
    %3104 = vmatpush1.msra.mxu0 0.0
    %3105 = vmatprep.subr.mxu0 0.0
    %3106 = vmatpush1.msra.mxu0 0.0
    %3107 = vmatprep.subr.mxu0 0.0
    %3108 = vmatpush1.msra.mxu0 0.0
    %3109 = vmatprep.subr.mxu0 0.0
    %3110 = vmatpush1.msra.mxu0 0.0
    %3111 = vmatprep.subr.mxu0 0.0
    %3112 = vmatpush1.msra.mxu0 0.0
    %3113 = vmatprep.subr.mxu0 0.0
    %3114 = vmatpush1.msra.mxu0 0.0
    %3115 = vmatprep.subr.mxu0 0.0
    %3116 = vmatpush1.msra.mxu0 0.0
    %3117 = vmatprep.subr.mxu0 0.0
    %3118 = vmatpush1.msra.mxu0 0.0
    %3119 = vmatprep.subr.mxu0 0.0
    %3120 = vmatpush1.msra.mxu0 0.0
    %3121 = vmatprep.subr.mxu0 0.0
    %3122 = vmatpush1.msra.mxu0 0.0
    %3123 = vmatprep.subr.mxu0 0.0
    %3124 = vmatpush1.msra.mxu0 0.0
    %3125 = vmatprep.subr.mxu0 0.0
    %3126 = vmatpush1.msra.mxu0 0.0
    %3127 = vmatprep.subr.mxu0 0.0
    %3128 = vmatpush1.msra.mxu0 0.0
    %3129 = vmatprep.subr.mxu0 0.0
    %3130 = vmatpush1.msra.mxu0 0.0
    %3131 = vmatprep.subr.mxu0 0.0
    %3132 = vmatpush1.msra.mxu0 0.0
    %3133 = vmatprep.subr.mxu0 0.0
    %3134 = vmatpush1.msra.mxu0 0.0
    %3135 = vmatprep.subr.mxu0 0.0
    %3136 = vmatpush1.msra.mxu0 0.0
    %3137 = vmatprep.subr.mxu0 0.0
    %3138 = vmatpush1.msra.mxu0 0.0
    %3139 = vmatprep.subr.mxu0 0.0
    %3140 = vmatpush1.msra.mxu0 0.0
    %3141 = vmatprep.subr.mxu0 0.0
    %3142 = vmatpush1.msra.mxu0 0.0
    %3143 = vmatprep.subr.mxu0 0.0
    %3144 = vmatpush1.msra.mxu0 0.0
    %3145 = vmatprep.subr.mxu0 0.0
    %3146 = vmatpush1.msra.mxu0 0.0
    %3147 = vmatprep.subr.mxu0 0.0
    %3148 = vmatpush1.msra.mxu0 0.0
    %3149 = vmatprep.subr.mxu0 0.0
    %3150 = vmatpush1.msra.mxu0 0.0
    %3151 = vmatprep.mubr.f32.mxu0 0.0
    %3152 = vmatmul.mubr.f32.gmra.mrb[0].mxu0 %v2315
    %v3153 = vpop.f32.mrb[0].mxu0
    %v3154 = vadd.f32 %v3086, %v3153
    %v3155 = vpop.f32.mrb[0].mxu0
    %3156 = vmatprep.mubr.f32.mxu0 0.0
    %3157 = vmatmul.mubr.f32.gmra.mrb[0].mxu0 %v2318
    %v3158 = vpop.f32.mrb[0].mxu0
    %v3159 = vadd.f32 %v3086, %v3158
    %v3160 = vpop.f32.mrb[0].mxu0
    %3161 = vmatprep.mubr.f32.mxu0 0.0
    %3162 = vmatmul.mubr.f32.gmra.mrb[0].mxu0 %v2321
    %v3163 = vpop.f32.mrb[0].mxu0
    %v3164 = vadd.f32 %v3086, %v3163
    %v3165 = vpop.f32.mrb[0].mxu0
    %3166 = vmatprep.mubr.f32.mxu0 0.0
    %3167 = vmatmul.mubr.f32.gmra.mrb[0].mxu0 %v2324
    %v3168 = vpop.f32.mrb[0].mxu0
    %v3169 = vadd.f32 %v3086, %v3168
    %v3170 = vpop.f32.mrb[0].mxu0
    %3171 = vmatprep.mubr.f32.mxu0 0.0
    %3172 = vmatmul.mubr.f32.gmra.mrb[0].mxu0 %v2327
    %v3173 = vpop.f32.mrb[0].mxu0
    %v3174 = vadd.f32 %v3086, %v3173
    %v3175 = vpop.f32.mrb[0].mxu0
    %3176 = vmatprep.mubr.f32.mxu0 0.0
    %3177 = vmatmul.mubr.f32.gmra.mrb[0].mxu0 %v2330
    %v3178 = vpop.f32.mrb[0].mxu0
    %v3179 = vadd.f32 %v3086, %v3178
    %v3180 = vpop.f32.mrb[0].mxu0
    %3181 = vmatprep.mubr.f32.mxu0 0.0
    %3182 = vmatmul.mubr.f32.gmra.mrb[0].mxu0 %v2333
    %v3183 = vpop.f32.mrb[0].mxu0
    %v3184 = vadd.f32 %v3086, %v3183
    %v3185 = vpop.f32.mrb[0].mxu0
    %3186 = vmatprep.mubr.f32.mxu0 0.0
    %3187 = vmatmul.mubr.f32.gmra.mrb[0].mxu0 %v2336
    %v3188 = vpop.f32.mrb[0].mxu0
    %v3189 = vadd.f32 %v3086, %v3188
    %v3190 = vpop.f32.mrb[0].mxu0
    %3191 = vmatprep.mubr.f32.mxu0 0.0
    %3192 = vmatmul.mubr.f32.gmra.mrb[0].mxu0 %v2339
    %v3193 = vpop.f32.mrb[0].mxu0
    %v3194 = vadd.f32 %v3086, %v3193
    %v3195 = vpop.f32.mrb[0].mxu0
    %3196 = vmatprep.mubr.f32.mxu0 0.0
    %3197 = vmatmul.mubr.f32.gmra.mrb[0].mxu0 %v2342
    %v3198 = vpop.f32.mrb[0].mxu0
    %v3199 = vadd.f32 %v3086, %v3198
    %v3200 = vpop.f32.mrb[0].mxu0
    %3201 = vmatprep.mubr.f32.mxu0 0.0
    %3202 = vmatmul.mubr.f32.gmra.mrb[0].mxu0 %v2345
    %v3203 = vpop.f32.mrb[0].mxu0
    %v3204 = vadd.f32 %v3086, %v3203
    %v3205 = vpop.f32.mrb[0].mxu0
    %3206 = vmatprep.mubr.f32.mxu0 0.0
    %3207 = vmatmul.mubr.f32.gmra.mrb[0].mxu0 %v2348
    %v3208 = vpop.f32.mrb[0].mxu0
    %v3209 = vadd.f32 %v3086, %v3208
    %v3210 = vpop.f32.mrb[0].mxu0
    %3211 = vmatprep.mubr.f32.mxu0 0.0
    %3212 = vmatmul.mubr.f32.gmra.mrb[0].mxu0 %v2351
    %v3213 = vpop.f32.mrb[0].mxu0
    %v3214 = vadd.f32 %v3086, %v3213
    %v3215 = vpop.f32.mrb[0].mxu0
    %3216 = vmatprep.mubr.f32.mxu0 0.0
    %3217 = vmatmul.mubr.f32.gmra.mrb[0].mxu0 %v2354
    %v3218 = vpop.f32.mrb[0].mxu0
    %v3219 = vadd.f32 %v3086, %v3218
    %v3220 = vpop.f32.mrb[0].mxu0
    %3221 = vmatprep.mubr.f32.mxu0 0.0
    %3222 = vmatmul.mubr.f32.gmra.mrb[0].mxu0 %v2357
    %v3223 = vpop.f32.mrb[0].mxu0
    %v3224 = vadd.f32 %v3086, %v3223
    %v3225 = vpop.f32.mrb[0].mxu0
    %3226 = vmatprep.mubr.f32.mxu0 0.0
    %3227 = vmatmul.mubr.f32.gmra.mrb[0].mxu0 %v2360
    %v3228 = vpop.f32.mrb[0].mxu0
    %v3229 = vadd.f32 %v3086, %v3228
    %v3230 = vpop.f32.mrb[0].mxu0
    %3231 = vdwg.mxu0
    %v3232 = vmul.f32 %v3154, %v651
    %v3233 = vmul.f32 %v3159, %v652
    %v3234 = vmul.f32 %v3164, %v653
    %v3235 = vmul.f32 %v3169, %v654
    %v3236 = vmul.f32 %v3174, %v655
    %v3237 = vmul.f32 %v3179, %v656
    %v3238 = vmul.f32 %v3184, %v657
    %v3239 = vmul.f32 %v3189, %v658
    %v3240 = vmul.f32 %v3194, %v659
    %v3241 = vmul.f32 %v3199, %v660
    %v3242 = vmul.f32 %v3204, %v661
    %v3243 = vmul.f32 %v3209, %v662
    %v3244 = vmul.f32 %v3214, %v663
    %v3245 = vmul.f32 %v3219, %v664
    %v3246 = vmul.f32 %v3224, %v665
    %v3247 = vmul.f32 %v3229, %v666
    %3248 = vmatprep.subr.mxu0 0.0
    %3249 = vmatpush1.msra.mxu0 %v3232
    %3250 = vmatprep.subr.mxu0 0.0
    %3251 = vmatpush1.msra.mxu0 %v3233
    %3252 = vmatprep.subr.mxu0 0.0
    %3253 = vmatpush1.msra.mxu0 %v3234
    %3254 = vmatprep.subr.mxu0 0.0
    %3255 = vmatpush1.msra.mxu0 %v3235
    %3256 = vmatprep.subr.mxu0 0.0
    %3257 = vmatpush1.msra.mxu0 %v3236
    %3258 = vmatprep.subr.mxu0 0.0
    %3259 = vmatpush1.msra.mxu0 %v3237
    %3260 = vmatprep.subr.mxu0 0.0
    %3261 = vmatpush1.msra.mxu0 %v3238
    %3262 = vmatprep.subr.mxu0 0.0
    %3263 = vmatpush1.msra.mxu0 %v3239
    %3264 = vmatprep.subr.mxu0 0.0
    %3265 = vmatpush1.msra.mxu0 %v3240
    %3266 = vmatprep.subr.mxu0 0.0
    %3267 = vmatpush1.msra.mxu0 %v3241
    %3268 = vmatprep.subr.mxu0 0.0
    %3269 = vmatpush1.msra.mxu0 %v3242
    %3270 = vmatprep.subr.mxu0 0.0
    %3271 = vmatpush1.msra.mxu0 %v3243
    %3272 = vmatprep.subr.mxu0 0.0
    %3273 = vmatpush1.msra.mxu0 %v3244
    %3274 = vmatprep.subr.mxu0 0.0
    %3275 = vmatpush1.msra.mxu0 %v3245
    %3276 = vmatprep.subr.mxu0 0.0
    %3277 = vmatpush1.msra.mxu0 %v3246
    %3278 = vmatprep.subr.mxu0 0.0
    %3279 = vmatpush1.msra.mxu0 %v3247
    %3280 = vmatprep.subr.mxu0 0.0
    %3281 = vmatpush1.msra.mxu0 0.0
    %3282 = vmatprep.subr.mxu0 0.0
    %3283 = vmatpush1.msra.mxu0 0.0
    %3284 = vmatprep.subr.mxu0 0.0
    %3285 = vmatpush1.msra.mxu0 0.0
    %3286 = vmatprep.subr.mxu0 0.0
    %3287 = vmatpush1.msra.mxu0 0.0
    %3288 = vmatprep.subr.mxu0 0.0
    %3289 = vmatpush1.msra.mxu0 0.0
    %3290 = vmatprep.subr.mxu0 0.0
    %3291 = vmatpush1.msra.mxu0 0.0
    %3292 = vmatprep.subr.mxu0 0.0
    %3293 = vmatpush1.msra.mxu0 0.0
    %3294 = vmatprep.subr.mxu0 0.0
    %3295 = vmatpush1.msra.mxu0 0.0
    %3296 = vmatprep.subr.mxu0 0.0
    %3297 = vmatpush1.msra.mxu0 0.0
    %3298 = vmatprep.subr.mxu0 0.0
    %3299 = vmatpush1.msra.mxu0 0.0
    %3300 = vmatprep.subr.mxu0 0.0
    %3301 = vmatpush1.msra.mxu0 0.0
    %3302 = vmatprep.subr.mxu0 0.0
    %3303 = vmatpush1.msra.mxu0 0.0
    %3304 = vmatprep.subr.mxu0 0.0
    %3305 = vmatpush1.msra.mxu0 0.0
    %3306 = vmatprep.subr.mxu0 0.0
    %3307 = vmatpush1.msra.mxu0 0.0
    %3308 = vmatprep.subr.mxu0 0.0
    %3309 = vmatpush1.msra.mxu0 0.0
    %3310 = vmatprep.subr.mxu0 0.0
    %3311 = vmatpush1.msra.mxu0 0.0
    %3312 = vmatprep.mubr.f32.mxu0 0.0
    %3313 = vmatmul.mubr.f32.gmra.mrb[0].mxu0 %v3047
    %v3314 = vpop.f32.mrb[0].mxu0
    %v3315 = vadd.f32 0.0, %v3314
    %v3316 = vpop.f32.mrb[0].mxu0
    %3317 = vmatprep.mubr.f32.mxu0 0.0
    %3318 = vmatmul.mubr.f32.gmra.mrb[0].mxu0 %v3049
    %v3319 = vpop.f32.mrb[0].mxu0
    %v3320 = vadd.f32 0.0, %v3319
    %v3321 = vpop.f32.mrb[0].mxu0
    %3322 = vmatprep.mubr.f32.mxu0 0.0
    %3323 = vmatmul.mubr.f32.gmra.mrb[0].mxu0 %v3051
    %v3324 = vpop.f32.mrb[0].mxu0
    %v3325 = vadd.f32 0.0, %v3324
    %v3326 = vpop.f32.mrb[0].mxu0
    %3327 = vmatprep.mubr.f32.mxu0 0.0
    %3328 = vmatmul.mubr.f32.gmra.mrb[0].mxu0 %v3053
    %v3329 = vpop.f32.mrb[0].mxu0
    %v3330 = vadd.f32 0.0, %v3329
    %v3331 = vpop.f32.mrb[0].mxu0
    %3332 = vmatprep.mubr.f32.mxu0 0.0
    %3333 = vmatmul.mubr.f32.gmra.mrb[0].mxu0 %v3055
    %v3334 = vpop.f32.mrb[0].mxu0
    %v3335 = vadd.f32 0.0, %v3334
    %v3336 = vpop.f32.mrb[0].mxu0
    %3337 = vmatprep.mubr.f32.mxu0 0.0
    %3338 = vmatmul.mubr.f32.gmra.mrb[0].mxu0 %v3057
    %v3339 = vpop.f32.mrb[0].mxu0
    %v3340 = vadd.f32 0.0, %v3339
    %v3341 = vpop.f32.mrb[0].mxu0
    %3342 = vmatprep.mubr.f32.mxu0 0.0
    %3343 = vmatmul.mubr.f32.gmra.mrb[0].mxu0 %v3059
    %v3344 = vpop.f32.mrb[0].mxu0
    %v3345 = vadd.f32 0.0, %v3344
    %v3346 = vpop.f32.mrb[0].mxu0
    %3347 = vmatprep.mubr.f32.mxu0 0.0
    %3348 = vmatmul.mubr.f32.gmra.mrb[0].mxu0 %v3061
    %v3349 = vpop.f32.mrb[0].mxu0
    %v3350 = vadd.f32 0.0, %v3349
    %v3351 = vpop.f32.mrb[0].mxu0
    %3352 = vmatprep.mubr.f32.mxu0 0.0
    %3353 = vmatmul.mubr.f32.gmra.mrb[0].mxu0 %v3063
    %v3354 = vpop.f32.mrb[0].mxu0
    %v3355 = vadd.f32 0.0, %v3354
    %v3356 = vpop.f32.mrb[0].mxu0
    %3357 = vmatprep.mubr.f32.mxu0 0.0
    %3358 = vmatmul.mubr.f32.gmra.mrb[0].mxu0 %v3065
    %v3359 = vpop.f32.mrb[0].mxu0
    %v3360 = vadd.f32 0.0, %v3359
    %v3361 = vpop.f32.mrb[0].mxu0
    %3362 = vmatprep.mubr.f32.mxu0 0.0
    %3363 = vmatmul.mubr.f32.gmra.mrb[0].mxu0 %v3067
    %v3364 = vpop.f32.mrb[0].mxu0
    %v3365 = vadd.f32 0.0, %v3364
    %v3366 = vpop.f32.mrb[0].mxu0
    %3367 = vmatprep.mubr.f32.mxu0 0.0
    %3368 = vmatmul.mubr.f32.gmra.mrb[0].mxu0 %v3069
    %v3369 = vpop.f32.mrb[0].mxu0
    %v3370 = vadd.f32 0.0, %v3369
    %v3371 = vpop.f32.mrb[0].mxu0
    %3372 = vmatprep.mubr.f32.mxu0 0.0
    %3373 = vmatmul.mubr.f32.gmra.mrb[0].mxu0 %v3071
    %v3374 = vpop.f32.mrb[0].mxu0
    %v3375 = vadd.f32 0.0, %v3374
    %v3376 = vpop.f32.mrb[0].mxu0
    %3377 = vmatprep.mubr.f32.mxu0 0.0
    %3378 = vmatmul.mubr.f32.gmra.mrb[0].mxu0 %v3073
    %v3379 = vpop.f32.mrb[0].mxu0
    %v3380 = vadd.f32 0.0, %v3379
    %v3381 = vpop.f32.mrb[0].mxu0
    %3382 = vmatprep.mubr.f32.mxu0 0.0
    %3383 = vmatmul.mubr.f32.gmra.mrb[0].mxu0 %v3075
    %v3384 = vpop.f32.mrb[0].mxu0
    %v3385 = vadd.f32 0.0, %v3384
    %v3386 = vpop.f32.mrb[0].mxu0
    %3387 = vmatprep.mubr.f32.mxu0 0.0
    %3388 = vmatmul.mubr.f32.gmra.mrb[0].mxu0 %v3077
    %v3389 = vpop.f32.mrb[0].mxu0
    %v3390 = vadd.f32 0.0, %v3389
    %v3391 = vpop.f32.mrb[0].mxu0
    %3392 = vdwg.mxu0
    %3393 = vmatprep.subr.mxu0 0.0
    %3394 = vmatpush1.msra.mxu0 %v3315
    %3395 = vmatprep.subr.mxu0 0.0
    %3396 = vmatpush1.msra.mxu0 %v3320
    %3397 = vmatprep.subr.mxu0 0.0
    %3398 = vmatpush1.msra.mxu0 %v3325
    %3399 = vmatprep.subr.mxu0 0.0
    %3400 = vmatpush1.msra.mxu0 %v3330
    %3401 = vmatprep.subr.mxu0 0.0
    %3402 = vmatpush1.msra.mxu0 %v3335
    %3403 = vmatprep.subr.mxu0 0.0
    %3404 = vmatpush1.msra.mxu0 %v3340
    %3405 = vmatprep.subr.mxu0 0.0
    %3406 = vmatpush1.msra.mxu0 %v3345
    %3407 = vmatprep.subr.mxu0 0.0
    %3408 = vmatpush1.msra.mxu0 %v3350
    %3409 = vmatprep.subr.mxu0 0.0
    %3410 = vmatpush1.msra.mxu0 %v3355
    %3411 = vmatprep.subr.mxu0 0.0
    %3412 = vmatpush1.msra.mxu0 %v3360
    %3413 = vmatprep.subr.mxu0 0.0
    %3414 = vmatpush1.msra.mxu0 %v3365
    %3415 = vmatprep.subr.mxu0 0.0
    %3416 = vmatpush1.msra.mxu0 %v3370
    %3417 = vmatprep.subr.mxu0 0.0
    %3418 = vmatpush1.msra.mxu0 %v3375
    %3419 = vmatprep.subr.mxu0 0.0
    %3420 = vmatpush1.msra.mxu0 %v3380
    %3421 = vmatprep.subr.mxu0 0.0
    %3422 = vmatpush1.msra.mxu0 %v3385
    %3423 = vmatprep.subr.mxu0 0.0
    %3424 = vmatpush1.msra.mxu0 %v3390
    %3425 = vmatprep.subr.mxu0 0.0
    %3426 = vmatpush1.msra.mxu0 0.0
    %3427 = vmatprep.subr.mxu0 0.0
    %3428 = vmatpush1.msra.mxu0 0.0
    %3429 = vmatprep.subr.mxu0 0.0
    %3430 = vmatpush1.msra.mxu0 0.0
    %3431 = vmatprep.subr.mxu0 0.0
    %3432 = vmatpush1.msra.mxu0 0.0
    %3433 = vmatprep.subr.mxu0 0.0
    %3434 = vmatpush1.msra.mxu0 0.0
    %3435 = vmatprep.subr.mxu0 0.0
    %3436 = vmatpush1.msra.mxu0 0.0
    %3437 = vmatprep.subr.mxu0 0.0
    %3438 = vmatpush1.msra.mxu0 0.0
    %3439 = vmatprep.subr.mxu0 0.0
    %3440 = vmatpush1.msra.mxu0 0.0
    %3441 = vmatprep.subr.mxu0 0.0
    %3442 = vmatpush1.msra.mxu0 0.0
    %3443 = vmatprep.subr.mxu0 0.0
    %3444 = vmatpush1.msra.mxu0 0.0
    %3445 = vmatprep.subr.mxu0 0.0
    %3446 = vmatpush1.msra.mxu0 0.0
    %3447 = vmatprep.subr.mxu0 0.0
    %3448 = vmatpush1.msra.mxu0 0.0
    %3449 = vmatprep.subr.mxu0 0.0
    %3450 = vmatpush1.msra.mxu0 0.0
    %3451 = vmatprep.subr.mxu0 0.0
    %3452 = vmatpush1.msra.mxu0 0.0
    %3453 = vmatprep.subr.mxu0 0.0
    %3454 = vmatpush1.msra.mxu0 0.0
    %3455 = vmatprep.subr.mxu0 0.0
    %3456 = vmatpush1.msra.mxu0 0.0
    %3457 = vmatprep.mubr.f32.mxu0 0.0
    %3458 = vmatmul.mubr.f32.gmra.mrb[0].mxu0 %v1569
    %v3459 = vpop.f32.mrb[0].mxu0
    %v3460 = vadd.f32 0.0, %v3459
    %v3461 = vpop.f32.mrb[0].mxu0
    %3462 = vmatprep.mubr.f32.mxu0 0.0
    %3463 = vmatmul.mubr.f32.gmra.mrb[0].mxu0 %v1570
    %v3464 = vpop.f32.mrb[0].mxu0
    %v3465 = vadd.f32 0.0, %v3464
    %v3466 = vpop.f32.mrb[0].mxu0
    %3467 = vmatprep.mubr.f32.mxu0 0.0
    %3468 = vmatmul.mubr.f32.gmra.mrb[0].mxu0 %v1571
    %v3469 = vpop.f32.mrb[0].mxu0
    %v3470 = vadd.f32 0.0, %v3469
    %v3471 = vpop.f32.mrb[0].mxu0
    %3472 = vmatprep.mubr.f32.mxu0 0.0
    %3473 = vmatmul.mubr.f32.gmra.mrb[0].mxu0 %v1572
    %v3474 = vpop.f32.mrb[0].mxu0
    %v3475 = vadd.f32 0.0, %v3474
    %v3476 = vpop.f32.mrb[0].mxu0
    %3477 = vdwg.mxu0
    %v3478 = vld [vmem:[#allocation2 + $0x448] sm:$0xff]
    %v3479 = vld [vmem:[#allocation2 + $0x450] sm:$0xff]
    %v3480 = vld [vmem:[#allocation2 + $0x458] sm:$0xff]
    %v3481 = vld [vmem:[#allocation2 + $0x460] sm:$0xff]
    %v3482 = vld [vmem:[#allocation2 + $0x468] sm:$0x1]
    %v3483 = vlaneseq
    %v3484 = vshrl.u32 %v3483, 7
    %v3485 = vsub.s32 0, %v3484
    %v3486 = vrot.slane %v3482, %v3485
    %v3488 = vsel %vm168, %v3460, 0
    %v3491 = vsel %vm168, %v3465, 0
    %v3494 = vsel %vm168, %v3470, 0
    %v3497 = vsel %vm168, %v3475, 0
    %3499 = vmatprep.subr.mxu0 0.0
    %3500 = vmatpush1.msra.mxu0 %v3478
    %3501 = vmatprep.subr.mxu0 0.0
    %3502 = vmatpush1.msra.mxu0 %v3479
    %3503 = vmatprep.subr.mxu0 0.0
    %3504 = vmatpush1.msra.mxu0 %v3480
    %3505 = vmatprep.subr.mxu0 0.0
    %3506 = vmatpush1.msra.mxu0 %v3481
    %3507 = vmatprep.subr.mxu0 0.0
    %3508 = vmatpush1.msra.mxu0 0.0
    %3509 = vmatprep.subr.mxu0 0.0
    %3510 = vmatpush1.msra.mxu0 0.0
    %3511 = vmatprep.subr.mxu0 0.0
    %3512 = vmatpush1.msra.mxu0 0.0
    %3513 = vmatprep.subr.mxu0 0.0
    %3514 = vmatpush1.msra.mxu0 0.0
    %3515 = vmatprep.subr.mxu0 0.0
    %3516 = vmatpush1.msra.mxu0 0.0
    %3517 = vmatprep.subr.mxu0 0.0
    %3518 = vmatpush1.msra.mxu0 0.0
    %3519 = vmatprep.subr.mxu0 0.0
    %3520 = vmatpush1.msra.mxu0 0.0
    %3521 = vmatprep.subr.mxu0 0.0
    %3522 = vmatpush1.msra.mxu0 0.0
    %3523 = vmatprep.subr.mxu0 0.0
    %3524 = vmatpush1.msra.mxu0 0.0
    %3525 = vmatprep.subr.mxu0 0.0
    %3526 = vmatpush1.msra.mxu0 0.0
    %3527 = vmatprep.subr.mxu0 0.0
    %3528 = vmatpush1.msra.mxu0 0.0
    %3529 = vmatprep.subr.mxu0 0.0
    %3530 = vmatpush1.msra.mxu0 0.0
    %3531 = vmatprep.subr.mxu0 0.0
    %3532 = vmatpush1.msra.mxu0 0.0
    %3533 = vmatprep.subr.mxu0 0.0
    %3534 = vmatpush1.msra.mxu0 0.0
    %3535 = vmatprep.subr.mxu0 0.0
    %3536 = vmatpush1.msra.mxu0 0.0
    %3537 = vmatprep.subr.mxu0 0.0
    %3538 = vmatpush1.msra.mxu0 0.0
    %3539 = vmatprep.subr.mxu0 0.0
    %3540 = vmatpush1.msra.mxu0 0.0
    %3541 = vmatprep.subr.mxu0 0.0
    %3542 = vmatpush1.msra.mxu0 0.0
    %3543 = vmatprep.subr.mxu0 0.0
    %3544 = vmatpush1.msra.mxu0 0.0
    %3545 = vmatprep.subr.mxu0 0.0
    %3546 = vmatpush1.msra.mxu0 0.0
    %3547 = vmatprep.subr.mxu0 0.0
    %3548 = vmatpush1.msra.mxu0 0.0
    %3549 = vmatprep.subr.mxu0 0.0
    %3550 = vmatpush1.msra.mxu0 0.0
    %3551 = vmatprep.subr.mxu0 0.0
    %3552 = vmatpush1.msra.mxu0 0.0
    %3553 = vmatprep.subr.mxu0 0.0
    %3554 = vmatpush1.msra.mxu0 0.0
    %3555 = vmatprep.subr.mxu0 0.0
    %3556 = vmatpush1.msra.mxu0 0.0
    %3557 = vmatprep.subr.mxu0 0.0
    %3558 = vmatpush1.msra.mxu0 0.0
    %3559 = vmatprep.subr.mxu0 0.0
    %3560 = vmatpush1.msra.mxu0 0.0
    %3561 = vmatprep.subr.mxu0 0.0
    %3562 = vmatpush1.msra.mxu0 0.0
    %3563 = vmatprep.mubr.f32.mxu0 0.0
    %3564 = vmatmul.mubr.f32.gmra.mrb[0].mxu0 %v3488
    %v3565 = vpop.f32.mrb[0].mxu0
    %v3566 = vadd.f32 %v3486, %v3565
    %v3567 = vpop.f32.mrb[0].mxu0
    %3568 = vmatprep.mubr.f32.mxu0 0.0
    %3569 = vmatmul.mubr.f32.gmra.mrb[0].mxu0 %v3491
    %v3570 = vpop.f32.mrb[0].mxu0
    %v3571 = vadd.f32 %v3486, %v3570
    %v3572 = vpop.f32.mrb[0].mxu0
    %3573 = vmatprep.mubr.f32.mxu0 0.0
    %3574 = vmatmul.mubr.f32.gmra.mrb[0].mxu0 %v3494
    %v3575 = vpop.f32.mrb[0].mxu0
    %v3576 = vadd.f32 %v3486, %v3575
    %v3577 = vpop.f32.mrb[0].mxu0
    %3578 = vmatprep.mubr.f32.mxu0 0.0
    %3579 = vmatmul.mubr.f32.gmra.mrb[0].mxu0 %v3497
    %v3580 = vpop.f32.mrb[0].mxu0
    %v3581 = vadd.f32 %v3486, %v3580
    %v3582 = vpop.f32.mrb[0].mxu0
    %3583 = vdwg.mxu0
    %v3584 = vadd.f32 %v2086, %v3566
    %v3585 = vadd.f32 %v2087, %v3571
    %v3586 = vadd.f32 %v2088, %v3576
    %v3587 = vadd.f32 %v2089, %v3581
    %v3588 = vsel %vm168, %v3584, 0.0
    %3589 = vadd.xlane.f32.xlu0 %v3588
    %v3590 = vpop.xlane.xlu0 %3589
    %v3591 = vsel %vm168, %v3585, 0.0
    %3592 = vadd.xlane.f32.xlu0 %v3591
    %v3593 = vpop.xlane.xlu0 %3592
    %v3594 = vsel %vm168, %v3586, 0.0
    %3595 = vadd.xlane.f32.xlu0 %v3594
    %v3596 = vpop.xlane.xlu0 %3595
    %v3597 = vsel %vm168, %v3587, 0.0
    %3598 = vadd.xlane.f32.xlu0 %v3597
    %v3599 = vpop.xlane.xlu0 %3598
    %v3600 = vmul.f32 %v3590, %v181
    %v3601 = vmul.f32 %v3593, %v181
    %v3602 = vmul.f32 %v3596, %v181
    %v3603 = vmul.f32 %v3599, %v181
    %v3604 = vsub.f32 %v3584, %v3600
    %v3605 = vsub.f32 %v3585, %v3601
    %v3606 = vsub.f32 %v3586, %v3602
    %v3607 = vsub.f32 %v3587, %v3603
    %v3608 = vmul.f32 %v3604, %v3604
    %v3609 = vmul.f32 %v3605, %v3605
    %v3610 = vmul.f32 %v3606, %v3606
    %v3611 = vmul.f32 %v3607, %v3607
    %v3612 = vsel %vm168, %v3608, 0.0
    %3613 = vadd.xlane.f32.xlu0 %v3612
    %v3614 = vpop.xlane.xlu0 %3613
    %v3615 = vsel %vm168, %v3609, 0.0
    %3616 = vadd.xlane.f32.xlu0 %v3615
    %v3617 = vpop.xlane.xlu0 %3616
    %v3618 = vsel %vm168, %v3610, 0.0
    %3619 = vadd.xlane.f32.xlu0 %v3618
    %v3620 = vpop.xlane.xlu0 %3619
    %v3621 = vsel %vm168, %v3611, 0.0
    %3622 = vadd.xlane.f32.xlu0 %v3621
    %v3623 = vpop.xlane.xlu0 %3622
    %v3624 = vmul.f32 %v3614, %v181
    %v3625 = vmul.f32 %v3617, %v181
    %v3626 = vmul.f32 %v3620, %v181
    %v3627 = vmul.f32 %v3623, %v181
    %v3628 = vadd.f32 %v3624, 1e-05
    %v3629 = vadd.f32 %v3625, 1e-05
    %v3630 = vadd.f32 %v3626, 1e-05
    %v3631 = vadd.f32 %v3627, 1e-05
    %v3632 = vrsqrt.pop %v3628
    %v3633 = vrsqrt.pop %v3629
    %v3634 = vrsqrt.pop %v3630
    %v3635 = vrsqrt.pop %v3631
    %v3636 = vmul.f32 %v3604, %v3632
    %v3637 = vmul.f32 %v3605, %v3633
    %v3638 = vmul.f32 %v3606, %v3634
    %v3639 = vmul.f32 %v3607, %v3635
    %v3640 = vld [vmem:[#allocation2 + $0x470] sm:$0x1]
    %v3641 = vlaneseq
    %v3642 = vshrl.u32 %v3641, 7
    %v3643 = vsub.s32 0, %v3642
    %v3644 = vrot.slane %v3640, %v3643
    %v3645 = vmul.f32 %v3636, %v3644
    %v3646 = vmul.f32 %v3637, %v3644
    %v3647 = vmul.f32 %v3638, %v3644
    %v3648 = vmul.f32 %v3639, %v3644
    %v3649 = vld [vmem:[#allocation2 + $0x478] sm:$0x1]
    %v3650 = vlaneseq
    %v3651 = vshrl.u32 %v3650, 7
    %v3652 = vsub.s32 0, %v3651
    %v3653 = vrot.slane %v3649, %v3652
    %v3654 = vadd.f32 %v3645, %v3653
    %v3655 = vadd.f32 %v3646, %v3653
    %v3656 = vadd.f32 %v3647, %v3653
    %v3657 = vadd.f32 %v3648, %v3653
    %v3658 = vld [vmem:[#allocation2 + $0x480] sm:$0xff]
    %v3659 = vld [vmem:[#allocation2 + $0x488] sm:$0xff]
    %v3660 = vld [vmem:[#allocation2 + $0x490] sm:$0xff]
    %v3661 = vld [vmem:[#allocation2 + $0x498] sm:$0xff]
    %v3662 = vld [vmem:[#allocation2 + $0x4a0] sm:$0x1]
    %v3663 = vlaneseq
    %v3664 = vshrl.u32 %v3663, 7
    %v3665 = vsub.s32 0, %v3664
    %v3666 = vrot.slane %v3662, %v3665
    %v3668 = vsel %vm168, %v3654, 0
    %v3671 = vsel %vm168, %v3655, 0
    %v3674 = vsel %vm168, %v3656, 0
    %v3677 = vsel %vm168, %v3657, 0
    %3679 = vmatprep.subr.mxu0 0.0
    %3680 = vmatpush1.msra.mxu0 %v3658
    %3681 = vmatprep.subr.mxu0 0.0
    %3682 = vmatpush1.msra.mxu0 %v3659
    %3683 = vmatprep.subr.mxu0 0.0
    %3684 = vmatpush1.msra.mxu0 %v3660
    %3685 = vmatprep.subr.mxu0 0.0
    %3686 = vmatpush1.msra.mxu0 %v3661
    %3687 = vmatprep.subr.mxu0 0.0
    %3688 = vmatpush1.msra.mxu0 0.0
    %3689 = vmatprep.subr.mxu0 0.0
    %3690 = vmatpush1.msra.mxu0 0.0
    %3691 = vmatprep.subr.mxu0 0.0
    %3692 = vmatpush1.msra.mxu0 0.0
    %3693 = vmatprep.subr.mxu0 0.0
    %3694 = vmatpush1.msra.mxu0 0.0
    %3695 = vmatprep.subr.mxu0 0.0
    %3696 = vmatpush1.msra.mxu0 0.0
    %3697 = vmatprep.subr.mxu0 0.0
    %3698 = vmatpush1.msra.mxu0 0.0
    %3699 = vmatprep.subr.mxu0 0.0
    %3700 = vmatpush1.msra.mxu0 0.0
    %3701 = vmatprep.subr.mxu0 0.0
    %3702 = vmatpush1.msra.mxu0 0.0
    %3703 = vmatprep.subr.mxu0 0.0
    %3704 = vmatpush1.msra.mxu0 0.0
    %3705 = vmatprep.subr.mxu0 0.0
    %3706 = vmatpush1.msra.mxu0 0.0
    %3707 = vmatprep.subr.mxu0 0.0
    %3708 = vmatpush1.msra.mxu0 0.0
    %3709 = vmatprep.subr.mxu0 0.0
    %3710 = vmatpush1.msra.mxu0 0.0
    %3711 = vmatprep.subr.mxu0 0.0
    %3712 = vmatpush1.msra.mxu0 0.0
    %3713 = vmatprep.subr.mxu0 0.0
    %3714 = vmatpush1.msra.mxu0 0.0
    %3715 = vmatprep.subr.mxu0 0.0
    %3716 = vmatpush1.msra.mxu0 0.0
    %3717 = vmatprep.subr.mxu0 0.0
    %3718 = vmatpush1.msra.mxu0 0.0
    %3719 = vmatprep.subr.mxu0 0.0
    %3720 = vmatpush1.msra.mxu0 0.0
    %3721 = vmatprep.subr.mxu0 0.0
    %3722 = vmatpush1.msra.mxu0 0.0
    %3723 = vmatprep.subr.mxu0 0.0
    %3724 = vmatpush1.msra.mxu0 0.0
    %3725 = vmatprep.subr.mxu0 0.0
    %3726 = vmatpush1.msra.mxu0 0.0
    %3727 = vmatprep.subr.mxu0 0.0
    %3728 = vmatpush1.msra.mxu0 0.0
    %3729 = vmatprep.subr.mxu0 0.0
    %3730 = vmatpush1.msra.mxu0 0.0
    %3731 = vmatprep.subr.mxu0 0.0
    %3732 = vmatpush1.msra.mxu0 0.0
    %3733 = vmatprep.subr.mxu0 0.0
    %3734 = vmatpush1.msra.mxu0 0.0
    %3735 = vmatprep.subr.mxu0 0.0
    %3736 = vmatpush1.msra.mxu0 0.0
    %3737 = vmatprep.subr.mxu0 0.0
    %3738 = vmatpush1.msra.mxu0 0.0
    %3739 = vmatprep.subr.mxu0 0.0
    %3740 = vmatpush1.msra.mxu0 0.0
    %3741 = vmatprep.subr.mxu0 0.0
    %3742 = vmatpush1.msra.mxu0 0.0
    %3743 = vmatprep.mubr.f32.mxu0 0.0
    %3744 = vmatmul.mubr.f32.gmra.mrb[0].mxu0 %v3668
    %v3745 = vpop.f32.mrb[0].mxu0
    %v3746 = vadd.f32 %v3666, %v3745
    %v3747 = vpop.f32.mrb[0].mxu0
    %3748 = vmatprep.mubr.f32.mxu0 0.0
    %3749 = vmatmul.mubr.f32.gmra.mrb[0].mxu0 %v3671
    %v3750 = vpop.f32.mrb[0].mxu0
    %v3751 = vadd.f32 %v3666, %v3750
    %v3752 = vpop.f32.mrb[0].mxu0
    %3753 = vmatprep.mubr.f32.mxu0 0.0
    %3754 = vmatmul.mubr.f32.gmra.mrb[0].mxu0 %v3674
    %v3755 = vpop.f32.mrb[0].mxu0
    %v3756 = vadd.f32 %v3666, %v3755
    %v3757 = vpop.f32.mrb[0].mxu0
    %3758 = vmatprep.mubr.f32.mxu0 0.0
    %3759 = vmatmul.mubr.f32.gmra.mrb[0].mxu0 %v3677
    %v3760 = vpop.f32.mrb[0].mxu0
    %v3761 = vadd.f32 %v3666, %v3760
    %v3762 = vpop.f32.mrb[0].mxu0
    %3763 = vdwg.mxu0
    %v3764 = vmul.f32 %v3746, %v3746
    %v3765 = vmul.f32 %v3751, %v3751
    %v3766 = vmul.f32 %v3756, %v3756
    %v3767 = vmul.f32 %v3761, %v3761
    %v3768 = vmul.f32 %v3746, %v3764
    %v3769 = vmul.f32 %v3751, %v3765
    %v3770 = vmul.f32 %v3756, %v3766
    %v3771 = vmul.f32 %v3761, %v3767
    %v3772 = vmul.f32 %v3768, 0.044715
    %v3773 = vmul.f32 %v3769, 0.044715
    %v3774 = vmul.f32 %v3770, 0.044715
    %v3775 = vmul.f32 %v3771, 0.044715
    %v3776 = vadd.f32 %v3746, %v3772
    %v3777 = vadd.f32 %v3751, %v3773
    %v3778 = vadd.f32 %v3756, %v3774
    %v3779 = vadd.f32 %v3761, %v3775
    %v3780 = vmul.f32 %v3776, 0.7978846
    %v3781 = vmul.f32 %v3777, 0.7978846
    %v3782 = vmul.f32 %v3778, 0.7978846
    %v3783 = vmul.f32 %v3779, 0.7978846
    %v3784 = vtanh.pop %v3780
    %v3785 = vtanh.pop %v3781
    %v3786 = vtanh.pop %v3782
    %v3787 = vtanh.pop %v3783
    %v3788 = vadd.f32 %v3784, 1.0
    %v3789 = vadd.f32 %v3785, 1.0
    %v3790 = vadd.f32 %v3786, 1.0
    %v3791 = vadd.f32 %v3787, 1.0
    %v3792 = vmul.f32 %v3788, 0.5
    %v3793 = vmul.f32 %v3789, 0.5
    %v3794 = vmul.f32 %v3790, 0.5
    %v3795 = vmul.f32 %v3791, 0.5
    %v3796 = vmul.f32 %v3746, %v3792
    %v3797 = vmul.f32 %v3751, %v3793
    %v3798 = vmul.f32 %v3756, %v3794
    %v3799 = vmul.f32 %v3761, %v3795
    %v3800 = vld [vmem:[#allocation2 + $0x4a8] sm:$0xff]
    %v3801 = vld [vmem:[#allocation2 + $0x4b0] sm:$0xff]
    %v3802 = vld [vmem:[#allocation2 + $0x4b8] sm:$0xff]
    %v3803 = vld [vmem:[#allocation2 + $0x4c0] sm:$0xff]
    %v3804 = vld [vmem:[#allocation2 + $0x4c8] sm:$0xff]
    %v3805 = vld [vmem:[#allocation2 + $0x4d0] sm:$0xff]
    %v3806 = vld [vmem:[#allocation2 + $0x4d8] sm:$0xff]
    %v3807 = vld [vmem:[#allocation2 + $0x4e0] sm:$0xff]
    %v3808 = vld [vmem:[#allocation2 + $0x4e8] sm:$0xff]
    %v3809 = vld [vmem:[#allocation2 + $0x4f0] sm:$0xff]
    %v3810 = vld [vmem:[#allocation2 + $0x4f8] sm:$0xff]
    %v3811 = vld [vmem:[#allocation2 + $0x500] sm:$0xff]
    %v3812 = vld [vmem:[#allocation2 + $0x508] sm:$0xff]
    %v3813 = vld [vmem:[#allocation2 + $0x510] sm:$0xff]
    %v3814 = vld [vmem:[#allocation2 + $0x518] sm:$0xff]
    %v3815 = vld [vmem:[#allocation2 + $0x520] sm:$0xff]
    %v3816 = vld [vmem:[#allocation2 + $0x528] sm:$0x1]
    %v3817 = vlaneseq
    %v3818 = vshrl.u32 %v3817, 7
    %v3819 = vsub.s32 0, %v3818
    %v3820 = vrot.slane %v3816, %v3819
    %3821 = vmatprep.subr.mxu0 0.0
    %3822 = vmatpush1.msra.mxu0 %v3800
    %3823 = vmatprep.subr.mxu0 0.0
    %3824 = vmatpush1.msra.mxu0 %v3801
    %3825 = vmatprep.subr.mxu0 0.0
    %3826 = vmatpush1.msra.mxu0 %v3802
    %3827 = vmatprep.subr.mxu0 0.0
    %3828 = vmatpush1.msra.mxu0 %v3803
    %3829 = vmatprep.subr.mxu0 0.0
    %3830 = vmatpush1.msra.mxu0 %v3804
    %3831 = vmatprep.subr.mxu0 0.0
    %3832 = vmatpush1.msra.mxu0 %v3805
    %3833 = vmatprep.subr.mxu0 0.0
    %3834 = vmatpush1.msra.mxu0 %v3806
    %3835 = vmatprep.subr.mxu0 0.0
    %3836 = vmatpush1.msra.mxu0 %v3807
    %3837 = vmatprep.subr.mxu0 0.0
    %3838 = vmatpush1.msra.mxu0 %v3808
    %3839 = vmatprep.subr.mxu0 0.0
    %3840 = vmatpush1.msra.mxu0 %v3809
    %3841 = vmatprep.subr.mxu0 0.0
    %3842 = vmatpush1.msra.mxu0 %v3810
    %3843 = vmatprep.subr.mxu0 0.0
    %3844 = vmatpush1.msra.mxu0 %v3811
    %3845 = vmatprep.subr.mxu0 0.0
    %3846 = vmatpush1.msra.mxu0 %v3812
    %3847 = vmatprep.subr.mxu0 0.0
    %3848 = vmatpush1.msra.mxu0 %v3813
    %3849 = vmatprep.subr.mxu0 0.0
    %3850 = vmatpush1.msra.mxu0 %v3814
    %3851 = vmatprep.subr.mxu0 0.0
    %3852 = vmatpush1.msra.mxu0 %v3815
    %3853 = vmatprep.subr.mxu0 0.0
    %3854 = vmatpush1.msra.mxu0 0.0
    %3855 = vmatprep.subr.mxu0 0.0
    %3856 = vmatpush1.msra.mxu0 0.0
    %3857 = vmatprep.subr.mxu0 0.0
    %3858 = vmatpush1.msra.mxu0 0.0
    %3859 = vmatprep.subr.mxu0 0.0
    %3860 = vmatpush1.msra.mxu0 0.0
    %3861 = vmatprep.subr.mxu0 0.0
    %3862 = vmatpush1.msra.mxu0 0.0
    %3863 = vmatprep.subr.mxu0 0.0
    %3864 = vmatpush1.msra.mxu0 0.0
    %3865 = vmatprep.subr.mxu0 0.0
    %3866 = vmatpush1.msra.mxu0 0.0
    %3867 = vmatprep.subr.mxu0 0.0
    %3868 = vmatpush1.msra.mxu0 0.0
    %3869 = vmatprep.subr.mxu0 0.0
    %3870 = vmatpush1.msra.mxu0 0.0
    %3871 = vmatprep.subr.mxu0 0.0
    %3872 = vmatpush1.msra.mxu0 0.0
    %3873 = vmatprep.subr.mxu0 0.0
    %3874 = vmatpush1.msra.mxu0 0.0
    %3875 = vmatprep.subr.mxu0 0.0
    %3876 = vmatpush1.msra.mxu0 0.0
    %3877 = vmatprep.subr.mxu0 0.0
    %3878 = vmatpush1.msra.mxu0 0.0
    %3879 = vmatprep.subr.mxu0 0.0
    %3880 = vmatpush1.msra.mxu0 0.0
    %3881 = vmatprep.subr.mxu0 0.0
    %3882 = vmatpush1.msra.mxu0 0.0
    %3883 = vmatprep.subr.mxu0 0.0
    %3884 = vmatpush1.msra.mxu0 0.0
    %3885 = vmatprep.mubr.f32.mxu0 0.0
    %3886 = vmatmul.mubr.f32.gmra.mrb[0].mxu0 %v3796
    %v3887 = vpop.f32.mrb[0].mxu0
    %v3888 = vadd.f32 %v3820, %v3887
    %v3889 = vpop.f32.mrb[0].mxu0
    %3890 = vmatprep.mubr.f32.mxu0 0.0
    %3891 = vmatmul.mubr.f32.gmra.mrb[0].mxu0 %v3797
    %v3892 = vpop.f32.mrb[0].mxu0
    %v3893 = vadd.f32 %v3820, %v3892
    %v3894 = vpop.f32.mrb[0].mxu0
    %3895 = vmatprep.mubr.f32.mxu0 0.0
    %3896 = vmatmul.mubr.f32.gmra.mrb[0].mxu0 %v3798
    %v3897 = vpop.f32.mrb[0].mxu0
    %v3898 = vadd.f32 %v3820, %v3897
    %v3899 = vpop.f32.mrb[0].mxu0
    %3900 = vmatprep.mubr.f32.mxu0 0.0
    %3901 = vmatmul.mubr.f32.gmra.mrb[0].mxu0 %v3799
    %v3902 = vpop.f32.mrb[0].mxu0
    %v3903 = vadd.f32 %v3820, %v3902
    %v3904 = vpop.f32.mrb[0].mxu0
    %3905 = vdwg.mxu0
    %v3906 = vadd.f32 %v3584, %v3888
    %v3907 = vadd.f32 %v3585, %v3893
    %v3908 = vadd.f32 %v3586, %v3898
    %v3909 = vadd.f32 %v3587, %v3903
    %v3910 = vsel %vm168, %v3906, 0.0
    %3911 = vadd.xlane.f32.xlu0 %v3910
    %v3912 = vpop.xlane.xlu0 %3911
    %v3913 = vsel %vm168, %v3907, 0.0
    %3914 = vadd.xlane.f32.xlu0 %v3913
    %v3915 = vpop.xlane.xlu0 %3914
    %v3916 = vsel %vm168, %v3908, 0.0
    %3917 = vadd.xlane.f32.xlu0 %v3916
    %v3918 = vpop.xlane.xlu0 %3917
    %v3919 = vsel %vm168, %v3909, 0.0
    %3920 = vadd.xlane.f32.xlu0 %v3919
    %v3921 = vpop.xlane.xlu0 %3920
    %v3922 = vmul.f32 %v3912, %v181
    %v3923 = vmul.f32 %v3915, %v181
    %v3924 = vmul.f32 %v3918, %v181
    %v3925 = vmul.f32 %v3921, %v181
    %v3926 = vsub.f32 %v3906, %v3922
    %v3927 = vsub.f32 %v3907, %v3923
    %v3928 = vsub.f32 %v3908, %v3924
    %v3929 = vsub.f32 %v3909, %v3925
    %v3930 = vmul.f32 %v3926, %v3926
    %v3931 = vmul.f32 %v3927, %v3927
    %v3932 = vmul.f32 %v3928, %v3928
    %v3933 = vmul.f32 %v3929, %v3929
    %v3934 = vsel %vm168, %v3930, 0.0
    %3935 = vadd.xlane.f32.xlu0 %v3934
    %v3936 = vpop.xlane.xlu0 %3935
    %v3937 = vsel %vm168, %v3931, 0.0
    %3938 = vadd.xlane.f32.xlu0 %v3937
    %v3939 = vpop.xlane.xlu0 %3938
    %v3940 = vsel %vm168, %v3932, 0.0
    %3941 = vadd.xlane.f32.xlu0 %v3940
    %v3942 = vpop.xlane.xlu0 %3941
    %v3943 = vsel %vm168, %v3933, 0.0
    %3944 = vadd.xlane.f32.xlu0 %v3943
    %v3945 = vpop.xlane.xlu0 %3944
    %v3946 = vmul.f32 %v3936, %v181
    %v3947 = vmul.f32 %v3939, %v181
    %v3948 = vmul.f32 %v3942, %v181
    %v3949 = vmul.f32 %v3945, %v181
    %v3950 = vadd.f32 %v3946, 1e-05
    %v3951 = vadd.f32 %v3947, 1e-05
    %v3952 = vadd.f32 %v3948, 1e-05
    %v3953 = vadd.f32 %v3949, 1e-05
    %v3954 = vrsqrt.pop %v3950
    %v3955 = vrsqrt.pop %v3951
    %v3956 = vrsqrt.pop %v3952
    %v3957 = vrsqrt.pop %v3953
    %v3958 = vmul.f32 %v3926, %v3954
    %v3959 = vmul.f32 %v3927, %v3955
    %v3960 = vmul.f32 %v3928, %v3956
    %v3961 = vmul.f32 %v3929, %v3957
    %v3962 = vld [vmem:[#allocation2 + $0x238] sm:$0x1]
    %v3963 = vlaneseq
    %v3964 = vshrl.u32 %v3963, 7
    %v3965 = vsub.s32 0, %v3964
    %v3966 = vrot.slane %v3962, %v3965
    %v3967 = vmul.f32 %v3958, %v3966
    %v3968 = vmul.f32 %v3959, %v3966
    %v3969 = vmul.f32 %v3960, %v3966
    %v3970 = vmul.f32 %v3961, %v3966
    %v3971 = vld [vmem:[#allocation2 + $0x240] sm:$0x1]
    %v3972 = vlaneseq
    %v3973 = vshrl.u32 %v3972, 7
    %v3974 = vsub.s32 0, %v3973
    %v3975 = vrot.slane %v3971, %v3974
    %v3976 = vadd.f32 %v3967, %v3975
    %v3977 = vadd.f32 %v3968, %v3975
    %v3978 = vadd.f32 %v3969, %v3975
    %v3979 = vadd.f32 %v3970, %v3975
    %v3980 = vld [vmem:[#allocation2 + $0x248] sm:$0x1]
    %v3981 = vlaneseq
    %v3982 = vshrl.u32 %v3981, 7
    %v3983 = vsub.s32 0, %v3982
    %v3984 = vrot.slane %v3980, %v3983
    %v3985 = vmul.f32 %v3976, %v3984
    %v3986 = vmul.f32 %v3977, %v3984
    %v3987 = vmul.f32 %v3978, %v3984
    %v3988 = vmul.f32 %v3979, %v3984
    %v3989 = vsel %vm168, %v3985, 0.0
    %3990 = vadd.xlane.f32.xlu0 %v3989
    %v3991 = vpop.xlane.xlu0 %3990
    %v3992 = vsel %vm168, %v3986, 0.0
    %3993 = vadd.xlane.f32.xlu0 %v3992
    %v3994 = vpop.xlane.xlu0 %3993
    %v3995 = vsel %vm168, %v3987, 0.0
    %3996 = vadd.xlane.f32.xlu0 %v3995
    %v3997 = vpop.xlane.xlu0 %3996
    %v3998 = vsel %vm168, %v3988, 0.0
    %3999 = vadd.xlane.f32.xlu0 %v3998
    %v4000 = vpop.xlane.xlu0 %3999
    %v4001 = vld [vmem:[#allocation2 + $0x200] sm:$0xff]
    %v4002 = vld [vmem:[#allocation2 + $0x208] sm:$0xff]
    %v4003 = vld [vmem:[#allocation2 + $0x210] sm:$0xff]
    %v4004 = vld [vmem:[#allocation2 + $0x218] sm:$0xff]
    %v4005 = vmul.f32 %v3991, %v4001
    %v4006 = vmul.f32 %v3994, %v4002
    %v4007 = vmul.f32 %v3997, %v4003
    %v4008 = vmul.f32 %v4000, %v4004
    %v4009 = vld [vmem:[#allocation2 + $0x220] sm:$0x3]
    %v4011 = vsel %vm168, %v4009, 0
    %4013 = vmatprep.subr.mxu0 0.0
    %4014 = vmatpush1.msra.mxu0 %v4005
    %4015 = vmatprep.subr.mxu0 0.0
    %4016 = vmatpush1.msra.mxu0 %v4006
    %4017 = vmatprep.subr.mxu0 0.0
    %4018 = vmatpush1.msra.mxu0 %v4007
    %4019 = vmatprep.subr.mxu0 0.0
    %4020 = vmatpush1.msra.mxu0 %v4008
    %4021 = vmatprep.subr.mxu0 0.0
    %4022 = vmatpush1.msra.mxu0 0.0
    %4023 = vmatprep.subr.mxu0 0.0
    %4024 = vmatpush1.msra.mxu0 0.0
    %4025 = vmatprep.subr.mxu0 0.0
    %4026 = vmatpush1.msra.mxu0 0.0
    %4027 = vmatprep.subr.mxu0 0.0
    %4028 = vmatpush1.msra.mxu0 0.0
    %4029 = vmatprep.subr.mxu0 0.0
    %4030 = vmatpush1.msra.mxu0 0.0
    %4031 = vmatprep.subr.mxu0 0.0
    %4032 = vmatpush1.msra.mxu0 0.0
    %4033 = vmatprep.subr.mxu0 0.0
    %4034 = vmatpush1.msra.mxu0 0.0
    %4035 = vmatprep.subr.mxu0 0.0
    %4036 = vmatpush1.msra.mxu0 0.0
    %4037 = vmatprep.subr.mxu0 0.0
    %4038 = vmatpush1.msra.mxu0 0.0
    %4039 = vmatprep.subr.mxu0 0.0
    %4040 = vmatpush1.msra.mxu0 0.0
    %4041 = vmatprep.subr.mxu0 0.0
    %4042 = vmatpush1.msra.mxu0 0.0
    %4043 = vmatprep.subr.mxu0 0.0
    %4044 = vmatpush1.msra.mxu0 0.0
    %4045 = vmatprep.subr.mxu0 0.0
    %4046 = vmatpush1.msra.mxu0 0.0
    %4047 = vmatprep.subr.mxu0 0.0
    %4048 = vmatpush1.msra.mxu0 0.0
    %4049 = vmatprep.subr.mxu0 0.0
    %4050 = vmatpush1.msra.mxu0 0.0
    %4051 = vmatprep.subr.mxu0 0.0
    %4052 = vmatpush1.msra.mxu0 0.0
    %4053 = vmatprep.subr.mxu0 0.0
    %4054 = vmatpush1.msra.mxu0 0.0
    %4055 = vmatprep.subr.mxu0 0.0
    %4056 = vmatpush1.msra.mxu0 0.0
    %4057 = vmatprep.subr.mxu0 0.0
    %4058 = vmatpush1.msra.mxu0 0.0
    %4059 = vmatprep.subr.mxu0 0.0
    %4060 = vmatpush1.msra.mxu0 0.0
    %4061 = vmatprep.subr.mxu0 0.0
    %4062 = vmatpush1.msra.mxu0 0.0
    %4063 = vmatprep.subr.mxu0 0.0
    %4064 = vmatpush1.msra.mxu0 0.0
    %4065 = vmatprep.subr.mxu0 0.0
    %4066 = vmatpush1.msra.mxu0 0.0
    %4067 = vmatprep.subr.mxu0 0.0
    %4068 = vmatpush1.msra.mxu0 0.0
    %4069 = vmatprep.subr.mxu0 0.0
    %4070 = vmatpush1.msra.mxu0 0.0
    %4071 = vmatprep.subr.mxu0 0.0
    %4072 = vmatpush1.msra.mxu0 0.0
    %4073 = vmatprep.subr.mxu0 0.0
    %4074 = vmatpush1.msra.mxu0 0.0
    %4075 = vmatprep.subr.mxu0 0.0
    %4076 = vmatpush1.msra.mxu0 0.0
    %4077 = vmatprep.mubr.f32.mxu0 0.0
    %4078 = vmatmul.mubr.f32.gmra.mrb[0].mxu0 %v4011
    %v4079 = vpop.f32.mrb[0].mxu0
    %v4080 = vadd.f32 0.0, %v4079
    %v4081 = vpop.f32.mrb[0].mxu0
    %4082 = vdwg.mxu0
    %v4083 = vld [vmem:[#allocation2 + $0x228] sm:$0x3]
    %v4085 = vsel %vm168, %v4083, 0
    %4087 = vmatprep.subr.mxu0 0.0
    %4088 = vmatpush1.msra.mxu0 %v4005
    %4089 = vmatprep.subr.mxu0 0.0
    %4090 = vmatpush1.msra.mxu0 %v4006
    %4091 = vmatprep.subr.mxu0 0.0
    %4092 = vmatpush1.msra.mxu0 %v4007
    %4093 = vmatprep.subr.mxu0 0.0
    %4094 = vmatpush1.msra.mxu0 %v4008
    %4095 = vmatprep.subr.mxu0 0.0
    %4096 = vmatpush1.msra.mxu0 0.0
    %4097 = vmatprep.subr.mxu0 0.0
    %4098 = vmatpush1.msra.mxu0 0.0
    %4099 = vmatprep.subr.mxu0 0.0
    %4100 = vmatpush1.msra.mxu0 0.0
    %4101 = vmatprep.subr.mxu0 0.0
    %4102 = vmatpush1.msra.mxu0 0.0
    %4103 = vmatprep.subr.mxu0 0.0
    %4104 = vmatpush1.msra.mxu0 0.0
    %4105 = vmatprep.subr.mxu0 0.0
    %4106 = vmatpush1.msra.mxu0 0.0
    %4107 = vmatprep.subr.mxu0 0.0
    %4108 = vmatpush1.msra.mxu0 0.0
    %4109 = vmatprep.subr.mxu0 0.0
    %4110 = vmatpush1.msra.mxu0 0.0
    %4111 = vmatprep.subr.mxu0 0.0
    %4112 = vmatpush1.msra.mxu0 0.0
    %4113 = vmatprep.subr.mxu0 0.0
    %4114 = vmatpush1.msra.mxu0 0.0
    %4115 = vmatprep.subr.mxu0 0.0
    %4116 = vmatpush1.msra.mxu0 0.0
    %4117 = vmatprep.subr.mxu0 0.0
    %4118 = vmatpush1.msra.mxu0 0.0
    %4119 = vmatprep.subr.mxu0 0.0
    %4120 = vmatpush1.msra.mxu0 0.0
    %4121 = vmatprep.subr.mxu0 0.0
    %4122 = vmatpush1.msra.mxu0 0.0
    %4123 = vmatprep.subr.mxu0 0.0
    %4124 = vmatpush1.msra.mxu0 0.0
    %4125 = vmatprep.subr.mxu0 0.0
    %4126 = vmatpush1.msra.mxu0 0.0
    %4127 = vmatprep.subr.mxu0 0.0
    %4128 = vmatpush1.msra.mxu0 0.0
    %4129 = vmatprep.subr.mxu0 0.0
    %4130 = vmatpush1.msra.mxu0 0.0
    %4131 = vmatprep.subr.mxu0 0.0
    %4132 = vmatpush1.msra.mxu0 0.0
    %4133 = vmatprep.subr.mxu0 0.0
    %4134 = vmatpush1.msra.mxu0 0.0
    %4135 = vmatprep.subr.mxu0 0.0
    %4136 = vmatpush1.msra.mxu0 0.0
    %4137 = vmatprep.subr.mxu0 0.0
    %4138 = vmatpush1.msra.mxu0 0.0
    %4139 = vmatprep.subr.mxu0 0.0
    %4140 = vmatpush1.msra.mxu0 0.0
    %4141 = vmatprep.subr.mxu0 0.0
    %4142 = vmatpush1.msra.mxu0 0.0
    %4143 = vmatprep.subr.mxu0 0.0
    %4144 = vmatpush1.msra.mxu0 0.0
    %4145 = vmatprep.subr.mxu0 0.0
    %4146 = vmatpush1.msra.mxu0 0.0
    %4147 = vmatprep.subr.mxu0 0.0
    %4148 = vmatpush1.msra.mxu0 0.0
    %4149 = vmatprep.subr.mxu0 0.0
    %4150 = vmatpush1.msra.mxu0 0.0
    %4151 = vmatprep.mubr.f32.mxu0 0.0
    %4152 = vmatmul.mubr.f32.gmra.mrb[0].mxu0 %v4085
    %v4153 = vpop.f32.mrb[0].mxu0
    %v4154 = vadd.f32 0.0, %v4153
    %v4155 = vpop.f32.mrb[0].mxu0
    %4156 = vdwg.mxu0
    %v4157 = vld [vmem:[%s1] sm:$0x3]
    %v4158 = vld [vmem:[%s1 + $0x2] sm:$0x3]
    %vm4159 = vcmp.eq.s32.totalorder %v4157, 63
    %v4160 = vsel %vm4159, %v33, 8
    %vm4161 = vcmask 58368
    %v4162 = vsel %vm4161, %v4160, 2147483647
    %v4163 = vand.u32 %v4162, 65535
    %v4164 = vshra.s32 %v4162, 16
    %v4165 = vcvt.s32.f32 %v4163
    %v4166 = vcvt.s32.f32 %v4164
    %4167 = vmin.xlane.f32.xlu0 %v4166
    %v4168 = vpop.xlane.xlu0 %4167
    %vm4169 = vcmp.eq.f32.partialorder %v4166, %v4168
    %v4170 = vsel %vm4169, %v4165, inf
    %4171 = vmin.xlane.f32.xlu0 %v4170
    %v4172 = vpop.xlane.xlu0 %4171
    %v4173 = vcvt.f32.s32 %v4172
    %v4174 = vcvt.f32.s32 %v4168
    %v4175 = vshll.u32 %v4174, 16
    %v4176 = vadd.s32 %v4175, %v4173
    %vm4177 = vcmp.eq.s32.totalorder %v4158, 63
    %v4178 = vsel %vm4177, %v33, 8
    %v4179 = vsel %vm4161, %v4178, 2147483647
    %v4180 = vand.u32 %v4179, 65535
    %v4181 = vshra.s32 %v4179, 16
    %v4182 = vcvt.s32.f32 %v4180
    %v4183 = vcvt.s32.f32 %v4181
    %4184 = vmin.xlane.f32.xlu0 %v4183
    %v4185 = vpop.xlane.xlu0 %4184
    %vm4186 = vcmp.eq.f32.partialorder %v4183, %v4185
    %v4187 = vsel %vm4186, %v4182, inf
    %4188 = vmin.xlane.f32.xlu0 %v4187
    %v4189 = vpop.xlane.xlu0 %4188
    %v4190 = vcvt.f32.s32 %v4189
    %v4191 = vcvt.f32.s32 %v4185
    %v4192 = vshll.u32 %v4191, 16
    %v4193 = vadd.s32 %v4192, %v4190
    %vm4194 = vcmp.gt.s32.totalorder %v4176, %v4193
    %v4195 = vsel %vm4194, %v4176, %v4193
    %vm4196 = vcmp.ne.s32.totalorder %v4157, %v4158
    %v4197 = vsel %vm4196, %v33, 8
    %v4198 = vsel %vm4161, %v4197, 2147483647
    %v4199 = vand.u32 %v4198, 65535
    %v4200 = vshra.s32 %v4198, 16
    %v4201 = vcvt.s32.f32 %v4199
    %v4202 = vcvt.s32.f32 %v4200
    %4203 = vmin.xlane.f32.xlu0 %v4202
    %v4204 = vpop.xlane.xlu0 %4203
    %vm4205 = vcmp.eq.f32.partialorder %v4202, %v4204
    %v4206 = vsel %vm4205, %v4201, inf
    %4207 = vmin.xlane.f32.xlu0 %v4206
    %v4208 = vpop.xlane.xlu0 %4207
    %v4209 = vcvt.f32.s32 %v4208
    %v4210 = vcvt.f32.s32 %v4204
    %v4211 = vshll.u32 %v4210, 16
    %v4212 = vadd.s32 %v4211, %v4209
    %vm4213 = vcmp.ge.s32.totalorder %v33, %v4212
    %vm4214 = vcmp.lt.s32.totalorder %v33, %v4195
    %vm4215 = vmand %vm4213, %vm4214
    %v4216 = vsel %vm4215, 1, 0
    %v4217 = vcvt.s32.f32 %v4216
    %v4218 = vsub.f32 %v4080, %v4154
    %v4219 = vsub.f32 0.0, %v4218
    %v4220 = vmax.f32 %v4219, 0.0
    %v4221 = vand.u32 2147483647, %v4218
    %v4222 = vsub.f32 0.0, %v4221
    %v4223 = vmul.f32 %v4222, 1.442695
    %v4224 = vpow.pop %v4223
    %v4225 = vadd.f32 %v4224, 1.0
    %vm4226 = vcmp.eq.f32.partialorder %v4225, 1.0
    %v4227 = vlog2.pop %v4225
    %v4228 = vmul.f32 %v4227, 0.6931472
    %v4229 = vsub.f32 %v4225, 1.0
    %v4230 = vrcp.pop %v4229
    %v4231 = vmul.f32 %v4224, %v4230
    %v4232 = vmul.f32 %v4228, %v4231
    %v4233 = vsel %vm4226, %v4224, %v4232
    %v4234 = vadd.f32 %v4220, %v4233
    %v4235 = vsel %vm4161, %v4217, 0.0
    %4236 = vadd.xlane.f32.xlu0 %v4235
    %v4237 = vpop.xlane.xlu0 %4236
    %v4238 = vmul.f32 %v4234, %v4217
    %v4239 = vsel %vm4161, %v4238, 0.0
    %4240 = vadd.xlane.f32.xlu0 %v4239
    %v4241 = vpop.xlane.xlu0 %4240
    %v4242 = vmax.f32 %v4237, 1.0
    %v4243 = vrcp.pop %v4242
    %v4244 = vmul.f32 %v4241, %v4243
    %vm4245 = vcmask 1041408
    %v4246 = vsel %vm4245, %v4244, 0.0
    %v4247 = vrot.slane %v4246, 4
    %v4248 = vadd.f32 %v4246, %v4247
    %v4249 = vrot.slane %v4248, 2
    %v4250 = vadd.f32 %v4248, %v4249
    %v4251 = vrot.slane %v4250, 1
    %v4252 = vadd.f32 %v4250, %v4251
    %v4253 = vmul.f32 %v4252, 0.5
    %v4254 = vsub.s32 %v4195, 1
    %vm4255 = vcmp.eq.s32.totalorder %v33, %v4254
    %v4256 = vsel %vm4255, 1, 0
    %v4257 = vcvt.s32.f32 %v4256
    %v4258 = vmul.f32 %v4080, %v4257
    %v4259 = vsel %vm4161, %v4258, 0.0
    %4260 = vadd.xlane.f32.xlu0 %v4259
    %v4261 = vpop.xlane.xlu0 %4260
    %v4262 = vmul.f32 %v4154, %v4257
    %v4263 = vsel %vm4161, %v4262, 0.0
    %4264 = vadd.xlane.f32.xlu0 %v4263
    %v4265 = vpop.xlane.xlu0 %4264
    %vm4266 = vcmp.eq.s32.totalorder %v33, 0
    %v4267 = vsel %vm4266, %v4261, 0.0
    %vm4268 = vcmp.eq.s32.totalorder %v33, 1
    %v4269 = vsel %vm4268, %v4265, 0.0
    %v4270 = vadd.f32 %v4267, %v4269
    %vm4271 = vcmp.eq.s32.totalorder %v33, 2
    %v4272 = vsel %vm4271, %v4253, 0.0
    %v4273 = vadd.f32 %v4270, %v4272
    %v4274 = vld [vmem:[#allocation2 + $0x230] sm:$0xff]
    %vm4275 = vcmask 15360
    %v4277 = vsel %vm4275, %v4274, 0
    %v4280 = vsel %vm4245, %v4273, 0
    %4282 = vmatprep.subr.mxu0 0.0
    %4283 = vmatpush1.msra.mxu0 %v4280
    %4284 = vmatprep.subr.mxu0 0.0
    %4285 = vmatpush1.msra.mxu0 0.0
    %4286 = vmatprep.subr.mxu0 0.0
    %4287 = vmatpush1.msra.mxu0 0.0
    %4288 = vmatprep.subr.mxu0 0.0
    %4289 = vmatpush1.msra.mxu0 0.0
    %4290 = vmatprep.subr.mxu0 0.0
    %4291 = vmatpush1.msra.mxu0 0.0
    %4292 = vmatprep.subr.mxu0 0.0
    %4293 = vmatpush1.msra.mxu0 0.0
    %4294 = vmatprep.subr.mxu0 0.0
    %4295 = vmatpush1.msra.mxu0 0.0
    %4296 = vmatprep.subr.mxu0 0.0
    %4297 = vmatpush1.msra.mxu0 0.0
    %4298 = vmatprep.subr.mxu0 0.0
    %4299 = vmatpush1.msra.mxu0 0.0
    %4300 = vmatprep.subr.mxu0 0.0
    %4301 = vmatpush1.msra.mxu0 0.0
    %4302 = vmatprep.subr.mxu0 0.0
    %4303 = vmatpush1.msra.mxu0 0.0
    %4304 = vmatprep.subr.mxu0 0.0
    %4305 = vmatpush1.msra.mxu0 0.0
    %4306 = vmatprep.subr.mxu0 0.0
    %4307 = vmatpush1.msra.mxu0 0.0
    %4308 = vmatprep.subr.mxu0 0.0
    %4309 = vmatpush1.msra.mxu0 0.0
    %4310 = vmatprep.subr.mxu0 0.0
    %4311 = vmatpush1.msra.mxu0 0.0
    %4312 = vmatprep.subr.mxu0 0.0
    %4313 = vmatpush1.msra.mxu0 0.0
    %4314 = vmatprep.subr.mxu0 0.0
    %4315 = vmatpush1.msra.mxu0 0.0
    %4316 = vmatprep.subr.mxu0 0.0
    %4317 = vmatpush1.msra.mxu0 0.0
    %4318 = vmatprep.subr.mxu0 0.0
    %4319 = vmatpush1.msra.mxu0 0.0
    %4320 = vmatprep.subr.mxu0 0.0
    %4321 = vmatpush1.msra.mxu0 0.0
    %4322 = vmatprep.subr.mxu0 0.0
    %4323 = vmatpush1.msra.mxu0 0.0
    %4324 = vmatprep.subr.mxu0 0.0
    %4325 = vmatpush1.msra.mxu0 0.0
    %4326 = vmatprep.subr.mxu0 0.0
    %4327 = vmatpush1.msra.mxu0 0.0
    %4328 = vmatprep.subr.mxu0 0.0
    %4329 = vmatpush1.msra.mxu0 0.0
    %4330 = vmatprep.subr.mxu0 0.0
    %4331 = vmatpush1.msra.mxu0 0.0
    %4332 = vmatprep.subr.mxu0 0.0
    %4333 = vmatpush1.msra.mxu0 0.0
    %4334 = vmatprep.subr.mxu0 0.0
    %4335 = vmatpush1.msra.mxu0 0.0
    %4336 = vmatprep.subr.mxu0 0.0
    %4337 = vmatpush1.msra.mxu0 0.0
    %4338 = vmatprep.subr.mxu0 0.0
    %4339 = vmatpush1.msra.mxu0 0.0
    %4340 = vmatprep.subr.mxu0 0.0
    %4341 = vmatpush1.msra.mxu0 0.0
    %4342 = vmatprep.subr.mxu0 0.0
    %4343 = vmatpush1.msra.mxu0 0.0
    %4344 = vmatprep.subr.mxu0 0.0
    %4345 = vmatpush1.msra.mxu0 0.0
    %4346 = vmatprep.mubr.f32.mxu0 0.0
    %4347 = vmatmul.mubr.f32.gmra.mrb[0].mxu0 %v4277
    %v4348 = vpop.f32.mrb[0].mxu0
    %v4349 = vadd.f32 0.0, %v4348
    %v4350 = vpop.f32.mrb[0].mxu0
    %4351 = vdwg.mxu0
    %4352 = vst [vmem:[%s3] sm:$0xff] %v4349
    // Predicated region
    $region18: #{reward_model_forward.1} parent=1 // pred_check
      _
    $region19: #{reward_model_forward.1} parent=1 // pred_check_branch
      %4354 = sbr.rel (0) target = $region21
    $region20: #{reward_model_forward.1} parent=1 // pred_region
      _
    $region21: #{reward_model_forward.1} parent=1 // pred_fallthru
      _
    // Predicated region
    $region22: #{reward_model_forward.1} parent=1 // pred_check
      _
    $region23: #{reward_model_forward.1} parent=1 // pred_check_branch
      %4356 = sbr.rel (0) target = $region25
    $region24: #{reward_model_forward.1} parent=1 // pred_region
      _
    $region25: #{reward_model_forward.1} parent=1 // pred_fallthru
      _
    %4357 = vsyncpa [#allocation3], 1

</llo_original>
